<compile_context>
chip_gen: v7x
topology: tpu7x:2x2x1
jax: 0.10.0
libtpu: 0.0.40
codegen_flags: <defaults>
</compile_context>

<pallas_src>
import functools

import jax
import jax.numpy as jnp
from jax.experimental import pallas as pl
from jax.experimental.pallas import tpu as pltpu

_BN_EPS = 1e-5
_TM_MAX = 512                          # rows per GEMM tile (fallback path)
_LANE = 128
_VMEM_LIMIT = 48 * 1024 * 1024         # explicit scoped-VMEM budget
_FUSED_VMEM_BUDGET = 24 * 1024 * 1024  # threshold for the fully-fused path


def _round_up(x, m):
    return (x + m - 1) // m * m


# ------------------------------------------------------------------ im2col --
def _im2col_nhwc(x, k, stride, pad):
    """x: [N, H, W, C] -> bf16 patches [N*Ho*Wo, k*k*C], plus (Ho, Wo).

    Column order is (kh, kw, cin), matching _flatten_w_nhwc below.
    """
    N, H, W, C = x.shape
    xp = jnp.pad(x, ((0, 0), (pad, pad), (pad, pad), (0, 0)))
    Ho = (H + 2 * pad - k) // stride + 1
    Wo = (W + 2 * pad - k) // stride + 1
    cols = []
    for i in range(k):
        for j in range(k):
            cols.append(xp[:, i:i + stride * Ho:stride, j:j + stride * Wo:stride, :])
    patches = jnp.stack(cols, axis=3)                  # [N, Ho, Wo, k*k, C]
    patches = patches.reshape(N * Ho * Wo, k * k * C)
    # TODO(synk): the materialized im2col still costs k*k x HBM traffic; moving
    # patch extraction into the kernel (manual DMA over (n, ho) tiles) would
    # remove it but is left out of this revision.
    return patches.astype(jnp.bfloat16), Ho, Wo


def _pad_rows(p, tm_max=_TM_MAX):
    """Pick a row tile and zero-pad M up to a multiple of it.

    Zero rows contribute exactly 0 to the BN sum / sum-of-squares (no pre-BN
    bias), so padding never changes the statistics; the padded rows are sliced
    off after the kernels.
    """
    M = p.shape[0]
    tm = tm_max if M >= tm_max else _round_up(M, 8)
    M_pad = _round_up(M, tm)
    if M_pad != M:
        p = jnp.pad(p, ((0, M_pad - M), (0, 0)))
    return p, tm, M_pad


def _pad_channels(w_flat, gamma, beta):
    """Zero-pad Cout to a multiple of 128 lanes; gamma pads with 1, beta with 0.

    Padded channels have y == 0 everywhere => mean 0, var 0, output 0 after
    BN+ReLU, so they are inert; they are sliced off outside the kernels.
    """
    K, Cout = w_flat.shape
    Cp = _round_up(Cout, _LANE)
    if Cp != Cout:
        w_flat = jnp.pad(w_flat, ((0, 0), (0, Cp - Cout)))
        gamma = jnp.pad(gamma, (0, Cp - Cout), constant_values=1.0)
        beta = jnp.pad(beta, (0, Cp - Cout))
    return w_flat, gamma.reshape(1, Cp), beta.reshape(1, Cp), Cp


# ----------------------------------------------------------- Pallas kernels --
def _fused_conv_bn_relu_kernel(p_ref, w_ref, g_ref, bt_ref, o_ref, *, inv_count):
    # Whole layer in one shot: GEMM -> batch stats -> normalize -> affine -> ReLU.
    y = jnp.dot(p_ref[...], w_ref[...], preferred_element_type=jnp.float32)
    mean = jnp.sum(y, axis=0, keepdims=True) * inv_count
    var = jnp.maximum(jnp.sum(y * y, axis=0, keepdims=True) * inv_count - mean * mean, 0.0)
    scale = g_ref[...] * jax.lax.rsqrt(var + _BN_EPS)
    shift = bt_ref[...] - mean * scale
    o_ref[...] = jnp.maximum(y * scale + shift, 0.0).astype(o_ref.dtype)


def _matmul_stats_kernel(p_ref, w_ref, y_ref, sum_ref, sq_ref):
    # conv-as-GEMM on the MXU: bf16 inputs, f32 accumulation.
    y = jnp.dot(p_ref[...], w_ref[...], preferred_element_type=jnp.float32)
    y_ref[...] = y

    # One-pass cross-tile BN statistics: resident (1, Cp) accumulator blocks
    # across the "arbitrary" M-grid axis, init on the first tile.
    @pl.when(pl.program_id(0) == 0)
    def _():
        sum_ref[...] = jnp.zeros_like(sum_ref)
        sq_ref[...] = jnp.zeros_like(sq_ref)

    sum_ref[...] += jnp.sum(y, axis=0, keepdims=True)
    sq_ref[...] += jnp.sum(y * y, axis=0, keepdims=True)


def _bn_relu_kernel(y_ref, sum_ref, sq_ref, g_ref, bt_ref, o_ref, *, inv_count):
    # Fold the (tiny, Cp-wide) stats->scale/shift math into the tile pass.
    mean = sum_ref[...] * inv_count
    var = jnp.maximum(sq_ref[...] * inv_count - mean * mean, 0.0)
    scale = g_ref[...] * jax.lax.rsqrt(var + _BN_EPS)
    shift = bt_ref[...] - mean * scale
    o_ref[...] = jnp.maximum(y_ref[...] * scale + shift, 0.0).astype(o_ref.dtype)


def _matmul_bias_sigmoid_kernel(p_ref, w_ref, b_ref, o_ref):
    y = jnp.dot(p_ref[...], w_ref[...], preferred_element_type=jnp.float32)
    o_ref[...] = jax.nn.sigmoid(y + b_ref[...])


# --------------------------------------------------------------- layer ops --
def _fused_fits(M_pad, K, Cp):
    need = (2 * (M_pad * K * 2)          # patches (double-buffered)
            + 2 * (K * Cp * 2)           # weights
            + 2 * (M_pad * Cp * 2)       # output
            + 4 * (M_pad * Cp * 4))      # f32 temporaries (y, y*y, ...)
    return need <= _FUSED_VMEM_BUDGET


def _conv_bn_relu(patches, w_flat, gamma, beta):
    """bf16 patches [M, K] @ bf16 weights + BN(train) + ReLU -> bf16 [M, Cout]."""
    M, K = patches.shape
    Cout = w_flat.shape[1]
    w_p, g_p, b_p, Cp = _pad_channels(w_flat, gamma, beta)
    p, tm, M_pad = _pad_rows(patches)

    if _fused_fits(M_pad, K, Cp):
        # Fully fused: one kernel, no intermediate HBM traffic.
        out = pl.pallas_call(
            functools.partial(_fused_conv_bn_relu_kernel, inv_count=1.0 / float(M)),
            grid=(1,),
            in_specs=[
                pl.BlockSpec((M_pad, K), lambda i: (0, 0)),
                pl.BlockSpec((K, Cp), lambda i: (0, 0)),
                pl.BlockSpec((1, Cp), lambda i: (0, 0)),
                pl.BlockSpec((1, Cp), lambda i: (0, 0)),
            ],
            out_specs=pl.BlockSpec((M_pad, Cp), lambda i: (0, 0)),
            out_shape=jax.ShapeDtypeStruct((M_pad, Cp), jnp.bfloat16),
            compiler_params=pltpu.CompilerParams(
                dimension_semantics=("arbitrary",),
                vmem_limit_bytes=_VMEM_LIMIT),
        )(p, w_p, g_p, b_p)
        return out[:M, :Cout]

    grid = (M_pad // tm,)

    # Pass 1: matmul + per-channel sum / sumsq reduction across the grid.
    y, s1, s2 = pl.pallas_call(
        _matmul_stats_kernel,
        grid=grid,
        in_specs=[
            pl.BlockSpec((tm, K), lambda i: (i, 0)),
            pl.BlockSpec((K, Cp), lambda i: (0, 0)),
        ],
        out_specs=[
            pl.BlockSpec((tm, Cp), lambda i: (i, 0)),
            pl.BlockSpec((1, Cp), lambda i: (0, 0)),
            pl.BlockSpec((1, Cp), lambda i: (0, 0)),
        ],
        out_shape=[
            jax.ShapeDtypeStruct((M_pad, Cp), jnp.float32),
            jax.ShapeDtypeStruct((1, Cp), jnp.float32),
            jax.ShapeDtypeStruct((1, Cp), jnp.float32),
        ],
        compiler_params=pltpu.CompilerParams(
            dimension_semantics=("arbitrary",),      # cross-tile accumulation
            vmem_limit_bytes=_VMEM_LIMIT),
    )(p, w_p)

    # Pass 2: normalize * gamma + beta + ReLU (parallel over tiles).
    out = pl.pallas_call(
        functools.partial(_bn_relu_kernel, inv_count=1.0 / float(M)),
        grid=grid,
        in_specs=[
            pl.BlockSpec((tm, Cp), lambda i: (i, 0)),
            pl.BlockSpec((1, Cp), lambda i: (0, 0)),
            pl.BlockSpec((1, Cp), lambda i: (0, 0)),
            pl.BlockSpec((1, Cp), lambda i: (0, 0)),
            pl.BlockSpec((1, Cp), lambda i: (0, 0)),
        ],
        out_specs=pl.BlockSpec((tm, Cp), lambda i: (i, 0)),
        out_shape=jax.ShapeDtypeStruct((M_pad, Cp), jnp.bfloat16),
        compiler_params=pltpu.CompilerParams(
            dimension_semantics=("parallel",),
            vmem_limit_bytes=_VMEM_LIMIT),
    )(y, s1, s2, g_p, b_p)

    return out[:M, :Cout]


def _conv_bias_sigmoid(patches, w_flat, b):
    """Final conv: bf16 GEMM + bias + sigmoid; output channels padded to 128 lanes."""
    M, K = patches.shape
    Cout = w_flat.shape[1]
    Cp = _round_up(Cout, _LANE)
    p, tm, M_pad = _pad_rows(patches)
    w_p = jnp.zeros((K, Cp), jnp.bfloat16).at[:, :Cout].set(w_flat)
    b_p = jnp.zeros((1, Cp), jnp.float32).at[0, :Cout].set(b)
    grid = (M_pad // tm,)

    out = pl.pallas_call(
        _matmul_bias_sigmoid_kernel,
        grid=grid,
        in_specs=[
            pl.BlockSpec((tm, K), lambda i: (i, 0)),
            pl.BlockSpec((K, Cp), lambda i: (0, 0)),
            pl.BlockSpec((1, Cp), lambda i: (0, 0)),
        ],
        out_specs=pl.BlockSpec((tm, Cp), lambda i: (i, 0)),
        out_shape=jax.ShapeDtypeStruct((M_pad, Cp), jnp.float32),
        compiler_params=pltpu.CompilerParams(
            dimension_semantics=("parallel",),
            vmem_limit_bytes=_VMEM_LIMIT),
    )(p, w_p, b_p)

    return out[:M, :Cout]


# ------------------------------------------------------------ param helpers --
def _xavier_normal_conv(key, cout, cin, k):
    fan_in = cin * k * k
    fan_out = cout * k * k
    std = jnp.sqrt(2.0 / (fan_in + fan_out))
    return jax.random.normal(key, (cout, cin, k, k), jnp.float32) * std


def _conv_bias(key, cout, cin, k):
    bound = 1.0 / jnp.sqrt(cin * k * k)
    return jax.random.uniform(key, (cout,), jnp.float32, -bound, bound)


def init_params(key):
    ks = jax.random.split(key, 8)
    params = {}
    cfgs = [("1", 3, 32, 4), ("2", 32, 64, 4), ("3", 64, 128, 4), ("4", 128, 1, 4)]
    for idx, (name, cin, cout, k) in enumerate(cfgs):
        params[f"w{name}"] = _xavier_normal_conv(ks[2 * idx], cout, cin, k)
        params[f"b{name}"] = _conv_bias(ks[2 * idx + 1], cout, cin, k)
    # BatchNorm affine params: PyTorch default init (weight=1, bias=0)
    for name, c in [("1", 32), ("2", 64), ("3", 128)]:
        params[f"gamma{name}"] = jnp.ones((c,), jnp.float32)
        params[f"beta{name}"] = jnp.zeros((c,), jnp.float32)
    return params


def _flatten_w_nhwc(w):
    # [Cout, Cin, kh, kw] -> [kh*kw*Cin, Cout], bf16 for the MXU.
    cout = w.shape[0]
    return jnp.transpose(w, (2, 3, 1, 0)).reshape(-1, cout).astype(jnp.bfloat16)


# ---------------------------------------------------------------- forward ----
def discriminator_forward(params, x):
    """x: [N, 3, H, W] float32 -> [N, 1, H', W'] float32 (sigmoid scores)."""
    N = x.shape[0]
    h = jnp.transpose(x.astype(jnp.float32), (0, 2, 3, 1))    # NHWC throughout

    def layer(h, name, stride):
        w = params[f"w{name}"]
        k = w.shape[-1]
        patches, Ho, Wo = _im2col_nhwc(h, k, stride, pad=1)
        # NOTE: conv bias b{name} is intentionally NOT applied -- a per-channel
        # bias before training-mode BatchNorm is exactly cancelled by the mean
        # subtraction, so the forward output is unchanged.
        out = _conv_bn_relu(patches, _flatten_w_nhwc(w),
                            params[f"gamma{name}"], params[f"beta{name}"])
        return out.reshape(N, Ho, Wo, -1)

    h = layer(h, "1", stride=2)
    h = layer(h, "2", stride=2)
    h = layer(h, "3", stride=2)

    # conv4 (stride=1) + bias + sigmoid (config.use_wgan_loss assumed False)
    patches, Ho, Wo = _im2col_nhwc(h, 4, stride=1, pad=1)
    y = _conv_bias_sigmoid(patches, _flatten_w_nhwc(params["w4"]), params["b4"])
    return jnp.transpose(y.reshape(N, Ho, Wo, 1), (0, 3, 1, 2))


# ------------------------------------------------------------------- main ----
if __name__ == "__main__":
    key = jax.random.PRNGKey(0)
    pkey, xkey = jax.random.split(key)
    params = init_params(pkey)

    # Small DCGAN-style input: batch=2, 3 channels, 32x32 spatial.
    x = jax.random.normal(xkey, (2, 3, 32, 32), jnp.float32)

    fwd = jax.jit(discriminator_forward)
    out = jax.block_until_ready(fwd(params, x))

    assert out.shape == (2, 1, 3, 3), out.shape
    assert bool(jnp.all(jnp.isfinite(out)))
    assert bool(jnp.all((out >= 0.0) & (out <= 1.0)))   # sigmoid range
    print("KERNEL_OK")
</pallas_src>

<mosaic_0001>
module attributes {stable_mosaic.version = 11 : i64} {
  func.func @_fused_conv_bn_relu_kernel(%arg0: i32, %arg1: memref<512x48xbf16, #tpu.memory_space<vmem>>, %arg2: memref<48x128xbf16, #tpu.memory_space<vmem>>, %arg3: memref<1x128xf32, #tpu.memory_space<vmem>>, %arg4: memref<1x128xf32, #tpu.memory_space<vmem>>, %arg5: memref<512x128xbf16, #tpu.memory_space<vmem>>) attributes {dimension_semantics = [#tpu.dimension_semantics<arbitrary>], iteration_bounds = array<i64: 1>, scalar_prefetch = 0 : i64, scratch_operands = 0 : i64, tpu.core_type = #tpu.core_type<tc>, window_params = [{pipeline_mode = #tpu.pipeline_mode<synchronous>, transform_indices = @transform_0, window_bounds = array<i64: 512, 48>}, {pipeline_mode = #tpu.pipeline_mode<synchronous>, transform_indices = @transform_1, window_bounds = array<i64: 48, 128>}, {pipeline_mode = #tpu.pipeline_mode<synchronous>, transform_indices = @transform_2, window_bounds = array<i64: 1, 128>}, {pipeline_mode = #tpu.pipeline_mode<synchronous>, transform_indices = @transform_3, window_bounds = array<i64: 1, 128>}, {pipeline_mode = #tpu.pipeline_mode<synchronous>, transform_indices = @transform_4, window_bounds = array<i64: 512, 128>}]} {
    %c0 = arith.constant 0 : index
    %c0_0 = arith.constant 0 : index
    %0 = vector.load %arg1[%c0, %c0_0] : memref<512x48xbf16, #tpu.memory_space<vmem>>, vector<512x48xbf16>
    %c0_1 = arith.constant 0 : index
    %c0_2 = arith.constant 0 : index
    %1 = vector.load %arg2[%c0_1, %c0_2] : memref<48x128xbf16, #tpu.memory_space<vmem>>, vector<48x128xbf16>
    %cst = arith.constant dense<0.000000e+00> : vector<512x128xf32>
    %2 = tpu.matmul %0, %1, %cst {dimension_numbers = #tpu.dot_dimension_numbers<[1], [0], [0], [1], [0, 0, 1, 1], [], []>} : vector<512x48xbf16>, vector<48x128xbf16>, vector<512x128xf32> -> vector<512x128xf32>
    %cst_3 = arith.constant dense<0.000000e+00> : vector<128xf32>
    %3 = vector.multi_reduction <add>, %2, %cst_3 [0] : vector<512x128xf32> to vector<128xf32>
    %4 = vector.shape_cast %3 : vector<128xf32> to vector<1x128xf32>
    %cst_4 = arith.constant 0.001953125 : f32
    %5 = vector.broadcast %cst_4 : f32 to vector<1x128xf32>
    %6 = arith.mulf %4, %5 : vector<1x128xf32>
    %7 = arith.mulf %2, %2 : vector<512x128xf32>
    %cst_5 = arith.constant dense<0.000000e+00> : vector<128xf32>
    %8 = vector.multi_reduction <add>, %7, %cst_5 [0] : vector<512x128xf32> to vector<128xf32>
    %9 = vector.shape_cast %8 : vector<128xf32> to vector<1x128xf32>
    %cst_6 = arith.constant 0.001953125 : f32
    %10 = vector.broadcast %cst_6 : f32 to vector<1x128xf32>
    %11 = arith.mulf %9, %10 : vector<1x128xf32>
    %12 = arith.mulf %6, %6 : vector<1x128xf32>
    %13 = arith.subf %11, %12 : vector<1x128xf32>
    %cst_7 = arith.constant 0.000000e+00 : f32
    %14 = vector.broadcast %cst_7 : f32 to vector<1x128xf32>
    %15 = arith.maximumf %13, %14 : vector<1x128xf32>
    %c0_8 = arith.constant 0 : index
    %c0_9 = arith.constant 0 : index
    %16 = vector.load %arg3[%c0_8, %c0_9] : memref<1x128xf32, #tpu.memory_space<vmem>>, vector<1x128xf32>
    %cst_10 = arith.constant 9.99999974E-6 : f32
    %17 = vector.broadcast %cst_10 : f32 to vector<1x128xf32>
    %18 = arith.addf %15, %17 : vector<1x128xf32>
    %19 = math.rsqrt %18 : vector<1x128xf32>
    %20 = arith.mulf %16, %19 : vector<1x128xf32>
    %c0_11 = arith.constant 0 : index
    %c0_12 = arith.constant 0 : index
    %21 = vector.load %arg4[%c0_11, %c0_12] : memref<1x128xf32, #tpu.memory_space<vmem>>, vector<1x128xf32>
    %22 = arith.mulf %6, %20 : vector<1x128xf32>
    %23 = arith.subf %21, %22 : vector<1x128xf32>
    %24 = vector.broadcast %20 : vector<1x128xf32> to vector<512x128xf32>
    %25 = arith.mulf %2, %24 : vector<512x128xf32>
    %26 = vector.broadcast %23 : vector<1x128xf32> to vector<512x128xf32>
    %27 = arith.addf %25, %26 : vector<512x128xf32>
    %cst_13 = arith.constant 0.000000e+00 : f32
    %28 = vector.broadcast %cst_13 : f32 to vector<512x128xf32>
    %29 = arith.maximumf %27, %28 : vector<512x128xf32>
    %30 = arith.truncf %29 : vector<512x128xf32> to vector<512x128xbf16>
    %c0_14 = arith.constant 0 : index
    %c0_15 = arith.constant 0 : index
    %31 = vector.load %arg5[%c0_14, %c0_15] : memref<512x128xbf16, #tpu.memory_space<vmem>>, vector<512x128xbf16>
    tpu.vector_store %arg5[%c0_14, %c0_15], %30 {strides = array<i32>} : memref<512x128xbf16, #tpu.memory_space<vmem>>, vector<512x128xbf16>,
    return
  }
  func.func @transform_0(%arg0: i32) -> (i32, i32) {
    %c0_i32 = arith.constant 0 : i32
    %c0_i32_0 = arith.constant 0 : i32
    %c0_i32_1 = arith.constant 0 : i32
    return %c0_i32, %c0_i32_0 : i32, i32
  }
  func.func @transform_1(%arg0: i32) -> (i32, i32) {
    %c0_i32 = arith.constant 0 : i32
    %c0_i32_0 = arith.constant 0 : i32
    %c0_i32_1 = arith.constant 0 : i32
    return %c0_i32, %c0_i32_0 : i32, i32
  }
  func.func @transform_2(%arg0: i32) -> (i32, i32) {
    %c0_i32 = arith.constant 0 : i32
    %c0_i32_0 = arith.constant 0 : i32
    %c0_i32_1 = arith.constant 0 : i32
    return %c0_i32, %c0_i32_0 : i32, i32
  }
  func.func @transform_3(%arg0: i32) -> (i32, i32) {
    %c0_i32 = arith.constant 0 : i32
    %c0_i32_0 = arith.constant 0 : i32
    %c0_i32_1 = arith.constant 0 : i32
    return %c0_i32, %c0_i32_0 : i32, i32
  }
  func.func @transform_4(%arg0: i32) -> (i32, i32) {
    %c0_i32 = arith.constant 0 : i32
    %c0_i32_0 = arith.constant 0 : i32
    %c0_i32_1 = arith.constant 0 : i32
    return %c0_i32, %c0_i32_0 : i32, i32
  }
}

module attributes {stable_mosaic.version = 11 : i64} {
  func.func @_fused_conv_bn_relu_kernel(%arg0: i32, %arg1: memref<128x512xbf16, #tpu.memory_space<vmem>>, %arg2: memref<512x128xbf16, #tpu.memory_space<vmem>>, %arg3: memref<1x128xf32, #tpu.memory_space<vmem>>, %arg4: memref<1x128xf32, #tpu.memory_space<vmem>>, %arg5: memref<128x128xbf16, #tpu.memory_space<vmem>>) attributes {dimension_semantics = [#tpu.dimension_semantics<arbitrary>], iteration_bounds = array<i64: 1>, scalar_prefetch = 0 : i64, scratch_operands = 0 : i64, tpu.core_type = #tpu.core_type<tc>, window_params = [{pipeline_mode = #tpu.pipeline_mode<synchronous>, transform_indices = @transform_0, window_bounds = array<i64: 128, 512>}, {pipeline_mode = #tpu.pipeline_mode<synchronous>, transform_indices = @transform_1, window_bounds = array<i64: 512, 128>}, {pipeline_mode = #tpu.pipeline_mode<synchronous>, transform_indices = @transform_2, window_bounds = array<i64: 1, 128>}, {pipeline_mode = #tpu.pipeline_mode<synchronous>, transform_indices = @transform_3, window_bounds = array<i64: 1, 128>}, {pipeline_mode = #tpu.pipeline_mode<synchronous>, transform_indices = @transform_4, window_bounds = array<i64: 128, 128>}]} {
    %c0 = arith.constant 0 : index
    %c0_0 = arith.constant 0 : index
    %0 = vector.load %arg1[%c0, %c0_0] : memref<128x512xbf16, #tpu.memory_space<vmem>>, vector<128x512xbf16>
    %c0_1 = arith.constant 0 : index
    %c0_2 = arith.constant 0 : index
    %1 = vector.load %arg2[%c0_1, %c0_2] : memref<512x128xbf16, #tpu.memory_space<vmem>>, vector<512x128xbf16>
    %cst = arith.constant dense<0.000000e+00> : vector<128x128xf32>
    %2 = tpu.matmul %0, %1, %cst {dimension_numbers = #tpu.dot_dimension_numbers<[1], [0], [0], [1], [0, 0, 1, 1], [], []>} : vector<128x512xbf16>, vector<512x128xbf16>, vector<128x128xf32> -> vector<128x128xf32>
    %cst_3 = arith.constant dense<0.000000e+00> : vector<128xf32>
    %3 = vector.multi_reduction <add>, %2, %cst_3 [0] : vector<128x128xf32> to vector<128xf32>
    %4 = vector.shape_cast %3 : vector<128xf32> to vector<1x128xf32>
    %cst_4 = arith.constant 7.812500e-03 : f32
    %5 = vector.broadcast %cst_4 : f32 to vector<1x128xf32>
    %6 = arith.mulf %4, %5 : vector<1x128xf32>
    %7 = arith.mulf %2, %2 : vector<128x128xf32>
    %cst_5 = arith.constant dense<0.000000e+00> : vector<128xf32>
    %8 = vector.multi_reduction <add>, %7, %cst_5 [0] : vector<128x128xf32> to vector<128xf32>
    %9 = vector.shape_cast %8 : vector<128xf32> to vector<1x128xf32>
    %cst_6 = arith.constant 7.812500e-03 : f32
    %10 = vector.broadcast %cst_6 : f32 to vector<1x128xf32>
    %11 = arith.mulf %9, %10 : vector<1x128xf32>
    %12 = arith.mulf %6, %6 : vector<1x128xf32>
    %13 = arith.subf %11, %12 : vector<1x128xf32>
    %cst_7 = arith.constant 0.000000e+00 : f32
    %14 = vector.broadcast %cst_7 : f32 to vector<1x128xf32>
    %15 = arith.maximumf %13, %14 : vector<1x128xf32>
    %c0_8 = arith.constant 0 : index
    %c0_9 = arith.constant 0 : index
    %16 = vector.load %arg3[%c0_8, %c0_9] : memref<1x128xf32, #tpu.memory_space<vmem>>, vector<1x128xf32>
    %cst_10 = arith.constant 9.99999974E-6 : f32
    %17 = vector.broadcast %cst_10 : f32 to vector<1x128xf32>
    %18 = arith.addf %15, %17 : vector<1x128xf32>
    %19 = math.rsqrt %18 : vector<1x128xf32>
    %20 = arith.mulf %16, %19 : vector<1x128xf32>
    %c0_11 = arith.constant 0 : index
    %c0_12 = arith.constant 0 : index
    %21 = vector.load %arg4[%c0_11, %c0_12] : memref<1x128xf32, #tpu.memory_space<vmem>>, vector<1x128xf32>
    %22 = arith.mulf %6, %20 : vector<1x128xf32>
    %23 = arith.subf %21, %22 : vector<1x128xf32>
    %24 = vector.broadcast %20 : vector<1x128xf32> to vector<128x128xf32>
    %25 = arith.mulf %2, %24 : vector<128x128xf32>
    %26 = vector.broadcast %23 : vector<1x128xf32> to vector<128x128xf32>
    %27 = arith.addf %25, %26 : vector<128x128xf32>
    %cst_13 = arith.constant 0.000000e+00 : f32
    %28 = vector.broadcast %cst_13 : f32 to vector<128x128xf32>
    %29 = arith.maximumf %27, %28 : vector<128x128xf32>
    %30 = arith.truncf %29 : vector<128x128xf32> to vector<128x128xbf16>
    %c0_14 = arith.constant 0 : index
    %c0_15 = arith.constant 0 : index
    %31 = vector.load %arg5[%c0_14, %c0_15] : memref<128x128xbf16, #tpu.memory_space<vmem>>, vector<128x128xbf16>
    tpu.vector_store %arg5[%c0_14, %c0_15], %30 {strides = array<i32>} : memref<128x128xbf16, #tpu.memory_space<vmem>>, vector<128x128xbf16>,
    return
  }
  func.func @transform_0(%arg0: i32) -> (i32, i32) {
    %c0_i32 = arith.constant 0 : i32
    %c0_i32_0 = arith.constant 0 : i32
    %c0_i32_1 = arith.constant 0 : i32
    return %c0_i32, %c0_i32_0 : i32, i32
  }
  func.func @transform_1(%arg0: i32) -> (i32, i32) {
    %c0_i32 = arith.constant 0 : i32
    %c0_i32_0 = arith.constant 0 : i32
    %c0_i32_1 = arith.constant 0 : i32
    return %c0_i32, %c0_i32_0 : i32, i32
  }
  func.func @transform_2(%arg0: i32) -> (i32, i32) {
    %c0_i32 = arith.constant 0 : i32
    %c0_i32_0 = arith.constant 0 : i32
    %c0_i32_1 = arith.constant 0 : i32
    return %c0_i32, %c0_i32_0 : i32, i32
  }
  func.func @transform_3(%arg0: i32) -> (i32, i32) {
    %c0_i32 = arith.constant 0 : i32
    %c0_i32_0 = arith.constant 0 : i32
    %c0_i32_1 = arith.constant 0 : i32
    return %c0_i32, %c0_i32_0 : i32, i32
  }
  func.func @transform_4(%arg0: i32) -> (i32, i32) {
    %c0_i32 = arith.constant 0 : i32
    %c0_i32_0 = arith.constant 0 : i32
    %c0_i32_1 = arith.constant 0 : i32
    return %c0_i32, %c0_i32_0 : i32, i32
  }
}

module attributes {stable_mosaic.version = 11 : i64} {
  func.func @_fused_conv_bn_relu_kernel(%arg0: i32, %arg1: memref<32x1024xbf16, #tpu.memory_space<vmem>>, %arg2: memref<1024x128xbf16, #tpu.memory_space<vmem>>, %arg3: memref<1x128xf32, #tpu.memory_space<vmem>>, %arg4: memref<1x128xf32, #tpu.memory_space<vmem>>, %arg5: memref<32x128xbf16, #tpu.memory_space<vmem>>) attributes {dimension_semantics = [#tpu.dimension_semantics<arbitrary>], iteration_bounds = array<i64: 1>, scalar_prefetch = 0 : i64, scratch_operands = 0 : i64, tpu.core_type = #tpu.core_type<tc>, window_params = [{pipeline_mode = #tpu.pipeline_mode<synchronous>, transform_indices = @transform_0, window_bounds = array<i64: 32, 1024>}, {pipeline_mode = #tpu.pipeline_mode<synchronous>, transform_indices = @transform_1, window_bounds = array<i64: 1024, 128>}, {pipeline_mode = #tpu.pipeline_mode<synchronous>, transform_indices = @transform_2, window_bounds = array<i64: 1, 128>}, {pipeline_mode = #tpu.pipeline_mode<synchronous>, transform_indices = @transform_3, window_bounds = array<i64: 1, 128>}, {pipeline_mode = #tpu.pipeline_mode<synchronous>, transform_indices = @transform_4, window_bounds = array<i64: 32, 128>}]} {
    %c0 = arith.constant 0 : index
    %c0_0 = arith.constant 0 : index
    %0 = vector.load %arg1[%c0, %c0_0] : memref<32x1024xbf16, #tpu.memory_space<vmem>>, vector<32x1024xbf16>
    %c0_1 = arith.constant 0 : index
    %c0_2 = arith.constant 0 : index
    %1 = vector.load %arg2[%c0_1, %c0_2] : memref<1024x128xbf16, #tpu.memory_space<vmem>>, vector<1024x128xbf16>
    %cst = arith.constant dense<0.000000e+00> : vector<32x128xf32>
    %2 = tpu.matmul %0, %1, %cst {dimension_numbers = #tpu.dot_dimension_numbers<[1], [0], [0], [1], [0, 0, 1, 1], [], []>} : vector<32x1024xbf16>, vector<1024x128xbf16>, vector<32x128xf32> -> vector<32x128xf32>
    %cst_3 = arith.constant dense<0.000000e+00> : vector<128xf32>
    %3 = vector.multi_reduction <add>, %2, %cst_3 [0] : vector<32x128xf32> to vector<128xf32>
    %4 = vector.shape_cast %3 : vector<128xf32> to vector<1x128xf32>
    %cst_4 = arith.constant 3.125000e-02 : f32
    %5 = vector.broadcast %cst_4 : f32 to vector<1x128xf32>
    %6 = arith.mulf %4, %5 : vector<1x128xf32>
    %7 = arith.mulf %2, %2 : vector<32x128xf32>
    %cst_5 = arith.constant dense<0.000000e+00> : vector<128xf32>
    %8 = vector.multi_reduction <add>, %7, %cst_5 [0] : vector<32x128xf32> to vector<128xf32>
    %9 = vector.shape_cast %8 : vector<128xf32> to vector<1x128xf32>
    %cst_6 = arith.constant 3.125000e-02 : f32
    %10 = vector.broadcast %cst_6 : f32 to vector<1x128xf32>
    %11 = arith.mulf %9, %10 : vector<1x128xf32>
    %12 = arith.mulf %6, %6 : vector<1x128xf32>
    %13 = arith.subf %11, %12 : vector<1x128xf32>
    %cst_7 = arith.constant 0.000000e+00 : f32
    %14 = vector.broadcast %cst_7 : f32 to vector<1x128xf32>
    %15 = arith.maximumf %13, %14 : vector<1x128xf32>
    %c0_8 = arith.constant 0 : index
    %c0_9 = arith.constant 0 : index
    %16 = vector.load %arg3[%c0_8, %c0_9] : memref<1x128xf32, #tpu.memory_space<vmem>>, vector<1x128xf32>
    %cst_10 = arith.constant 9.99999974E-6 : f32
    %17 = vector.broadcast %cst_10 : f32 to vector<1x128xf32>
    %18 = arith.addf %15, %17 : vector<1x128xf32>
    %19 = math.rsqrt %18 : vector<1x128xf32>
    %20 = arith.mulf %16, %19 : vector<1x128xf32>
    %c0_11 = arith.constant 0 : index
    %c0_12 = arith.constant 0 : index
    %21 = vector.load %arg4[%c0_11, %c0_12] : memref<1x128xf32, #tpu.memory_space<vmem>>, vector<1x128xf32>
    %22 = arith.mulf %6, %20 : vector<1x128xf32>
    %23 = arith.subf %21, %22 : vector<1x128xf32>
    %24 = vector.broadcast %20 : vector<1x128xf32> to vector<32x128xf32>
    %25 = arith.mulf %2, %24 : vector<32x128xf32>
    %26 = vector.broadcast %23 : vector<1x128xf32> to vector<32x128xf32>
    %27 = arith.addf %25, %26 : vector<32x128xf32>
    %cst_13 = arith.constant 0.000000e+00 : f32
    %28 = vector.broadcast %cst_13 : f32 to vector<32x128xf32>
    %29 = arith.maximumf %27, %28 : vector<32x128xf32>
    %30 = arith.truncf %29 : vector<32x128xf32> to vector<32x128xbf16>
    %c0_14 = arith.constant 0 : index
    %c0_15 = arith.constant 0 : index
    %31 = vector.load %arg5[%c0_14, %c0_15] : memref<32x128xbf16, #tpu.memory_space<vmem>>, vector<32x128xbf16>
    tpu.vector_store %arg5[%c0_14, %c0_15], %30 {strides = array<i32>} : memref<32x128xbf16, #tpu.memory_space<vmem>>, vector<32x128xbf16>,
    return
  }
  func.func @transform_0(%arg0: i32) -> (i32, i32) {
    %c0_i32 = arith.constant 0 : i32
    %c0_i32_0 = arith.constant 0 : i32
    %c0_i32_1 = arith.constant 0 : i32
    return %c0_i32, %c0_i32_0 : i32, i32
  }
  func.func @transform_1(%arg0: i32) -> (i32, i32) {
    %c0_i32 = arith.constant 0 : i32
    %c0_i32_0 = arith.constant 0 : i32
    %c0_i32_1 = arith.constant 0 : i32
    return %c0_i32, %c0_i32_0 : i32, i32
  }
  func.func @transform_2(%arg0: i32) -> (i32, i32) {
    %c0_i32 = arith.constant 0 : i32
    %c0_i32_0 = arith.constant 0 : i32
    %c0_i32_1 = arith.constant 0 : i32
    return %c0_i32, %c0_i32_0 : i32, i32
  }
  func.func @transform_3(%arg0: i32) -> (i32, i32) {
    %c0_i32 = arith.constant 0 : i32
    %c0_i32_0 = arith.constant 0 : i32
    %c0_i32_1 = arith.constant 0 : i32
    return %c0_i32, %c0_i32_0 : i32, i32
  }
  func.func @transform_4(%arg0: i32) -> (i32, i32) {
    %c0_i32 = arith.constant 0 : i32
    %c0_i32_0 = arith.constant 0 : i32
    %c0_i32_1 = arith.constant 0 : i32
    return %c0_i32, %c0_i32_0 : i32, i32
  }
}

module attributes {stable_mosaic.version = 11 : i64} {
  func.func @_matmul_bias_sigmoid_kernel(%arg0: i32, %arg1: memref<24x2048xbf16, #tpu.memory_space<vmem>>, %arg2: memref<2048x128xbf16, #tpu.memory_space<vmem>>, %arg3: memref<1x128xf32, #tpu.memory_space<vmem>>, %arg4: memref<24x128xf32, #tpu.memory_space<vmem>>) attributes {dimension_semantics = [#tpu.dimension_semantics<parallel>], iteration_bounds = array<i64: 1>, scalar_prefetch = 0 : i64, scratch_operands = 0 : i64, tpu.core_type = #tpu.core_type<tc>, window_params = [{transform_indices = @transform_0, window_bounds = array<i64: 24, 2048>}, {pipeline_mode = #tpu.pipeline_mode<synchronous>, transform_indices = @transform_1, window_bounds = array<i64: 2048, 128>}, {pipeline_mode = #tpu.pipeline_mode<synchronous>, transform_indices = @transform_2, window_bounds = array<i64: 1, 128>}, {transform_indices = @transform_3, window_bounds = array<i64: 24, 128>}]} {
    %c0 = arith.constant 0 : index
    %c0_0 = arith.constant 0 : index
    %0 = vector.load %arg1[%c0, %c0_0] : memref<24x2048xbf16, #tpu.memory_space<vmem>>, vector<24x2048xbf16>
    %c0_1 = arith.constant 0 : index
    %c0_2 = arith.constant 0 : index
    %1 = vector.load %arg2[%c0_1, %c0_2] : memref<2048x128xbf16, #tpu.memory_space<vmem>>, vector<2048x128xbf16>
    %cst = arith.constant dense<0.000000e+00> : vector<24x128xf32>
    %2 = tpu.matmul %0, %1, %cst {dimension_numbers = #tpu.dot_dimension_numbers<[1], [0], [0], [1], [0, 0, 1, 1], [], []>} : vector<24x2048xbf16>, vector<2048x128xbf16>, vector<24x128xf32> -> vector<24x128xf32>
    %c0_3 = arith.constant 0 : index
    %c0_4 = arith.constant 0 : index
    %3 = vector.load %arg3[%c0_3, %c0_4] : memref<1x128xf32, #tpu.memory_space<vmem>>, vector<1x128xf32>
    %4 = vector.broadcast %3 : vector<1x128xf32> to vector<24x128xf32>
    %5 = arith.addf %2, %4 : vector<24x128xf32>
    %6 = arith.negf %5 : vector<24x128xf32>
    %7 = math.exp %6 : vector<24x128xf32>
    %cst_5 = arith.constant 1.000000e+00 : f32
    %8 = vector.broadcast %cst_5 : f32 to vector<24x128xf32>
    %9 = arith.addf %8, %7 : vector<24x128xf32>
    %10 = arith.divf %8, %9 : vector<24x128xf32>
    %c0_6 = arith.constant 0 : index
    %c0_7 = arith.constant 0 : index
    %11 = vector.load %arg4[%c0_6, %c0_7] : memref<24x128xf32, #tpu.memory_space<vmem>>, vector<24x128xf32>
    tpu.vector_store %arg4[%c0_6, %c0_7], %10 {strides = array<i32>} : memref<24x128xf32, #tpu.memory_space<vmem>>, vector<24x128xf32>,
    return
  }
  func.func @transform_0(%arg0: i32) -> (i32, i32) {
    %c0_i32 = arith.constant 0 : i32
    %c0_i32_0 = arith.constant 0 : i32
    return %arg0, %c0_i32 : i32, i32
  }
  func.func @transform_1(%arg0: i32) -> (i32, i32) {
    %c0_i32 = arith.constant 0 : i32
    %c0_i32_0 = arith.constant 0 : i32
    %c0_i32_1 = arith.constant 0 : i32
    return %c0_i32, %c0_i32_0 : i32, i32
  }
  func.func @transform_2(%arg0: i32) -> (i32, i32) {
    %c0_i32 = arith.constant 0 : i32
    %c0_i32_0 = arith.constant 0 : i32
    %c0_i32_1 = arith.constant 0 : i32
    return %c0_i32, %c0_i32_0 : i32, i32
  }
  func.func @transform_3(%arg0: i32) -> (i32, i32) {
    %c0_i32 = arith.constant 0 : i32
    %c0_i32_0 = arith.constant 0 : i32
    return %arg0, %c0_i32 : i32, i32
  }
}

</mosaic_0001>

<llo_original>
// kernel: discriminator_forward.4
$region0: #{discriminator_forward.4}
  #allocation0 [shape = 'u32[]', space=smem, size = 0x4, offset = 0x4, fixed_abs, tag = 'smem constant byte address 0x4 - core index']
  #allocation1 [shape = 'u32[144,128]{1,0:T(1,128)}', space=vmem, size = 0x12000, scoped, tag = 'internal scratch']
  %s0 = inlined_call_operand.vmem [shape: bf16[512,48], index: 0, kind: input, shape index: {}]
  %s1 = inlined_call_operand.vmem [shape: bf16[48,128], index: 1, kind: input, shape index: {}]
  %s2 = inlined_call_operand.vmem [shape: f32[1,128], index: 2, kind: input, shape index: {}]
  %s3 = inlined_call_operand.vmem [shape: f32[1,128], index: 3, kind: input, shape index: {}]
  %s4 = inlined_call_operand.vmem [shape: bf16[512,128], index: 4, kind: output, shape index: {}]
  %s5 = sld [smem:[#allocation0]]
  $region26: #{discriminator_forward.4} parent=0
    _
  %s7 = ssub.s32 1, %s5
  %s8 = scalar_select 0, %s7, %s5
  // Predicated region
  $region2: #{discriminator_forward.4} parent=0 // pred_check
    _
  $region3: #{discriminator_forward.4} parent=0 // pred_check_branch
    %10 = sbr.rel (0) target = $region5
  $region4: #{discriminator_forward.4} parent=0 // pred_region
    _
  $region5: #{discriminator_forward.4} parent=0 // pred_fallthru
    _
  // Predicated region
  $region6: #{discriminator_forward.4} parent=0 // pred_check
    _
  $region7: #{discriminator_forward.4} parent=0 // pred_check_branch
    %12 = sbr.rel (0) target = $region9
  $region8: #{discriminator_forward.4} parent=0 // pred_region
    _
  $region9: #{discriminator_forward.4} parent=0 // pred_fallthru
    _
  // Predicated region
  $region10: #{discriminator_forward.4} parent=0 // pred_check
    _
  $region11: #{discriminator_forward.4} parent=0 // pred_check_branch
    %14 = sbr.rel (0) target = $region13
  $region12: #{discriminator_forward.4} parent=0 // pred_region
    _
  $region13: #{discriminator_forward.4} parent=0 // pred_fallthru
    _
  // Predicated region
  $region14: #{discriminator_forward.4} parent=0 // pred_check
    _
  $region15: #{discriminator_forward.4} parent=0 // pred_check_branch
    %16 = sbr.rel (0) target = $region17
  $region16: #{discriminator_forward.4} parent=0 // pred_region
    _
  $region17: #{discriminator_forward.4} parent=0 // pred_fallthru
    _
  %v18 = vld [vmem:[%s0] sm:$0xf]
  %v19 = vld [vmem:[%s0 + $0x4] sm:$0xf]
  %v20 = vld [vmem:[%s0 + $0x8] sm:$0xf]
  %v21 = vld [vmem:[%s0 + $0xc] sm:$0xf]
  %v22 = vld [vmem:[%s0 + $0x10] sm:$0xf]
  %v23 = vld [vmem:[%s0 + $0x14] sm:$0xf]
  %v24 = vld [vmem:[%s0 + $0x18] sm:$0xf]
  %v25 = vld [vmem:[%s0 + $0x1c] sm:$0xf]
  %v26 = vld [vmem:[%s0 + $0x20] sm:$0xf]
  %v27 = vld [vmem:[%s0 + $0x24] sm:$0xf]
  %v28 = vld [vmem:[%s0 + $0x28] sm:$0xf]
  %v29 = vld [vmem:[%s0 + $0x2c] sm:$0xf]
  %v30 = vld [vmem:[%s0 + $0x30] sm:$0xf]
  %v31 = vld [vmem:[%s0 + $0x34] sm:$0xf]
  %v32 = vld [vmem:[%s0 + $0x38] sm:$0xf]
  %v33 = vld [vmem:[%s0 + $0x3c] sm:$0xf]
  %v34 = vld [vmem:[%s0 + $0x40] sm:$0xf]
  %v35 = vld [vmem:[%s0 + $0x44] sm:$0xf]
  %v36 = vld [vmem:[%s0 + $0x48] sm:$0xf]
  %v37 = vld [vmem:[%s0 + $0x4c] sm:$0xf]
  %v38 = vld [vmem:[%s0 + $0x50] sm:$0xf]
  %v39 = vld [vmem:[%s0 + $0x54] sm:$0xf]
  %v40 = vld [vmem:[%s0 + $0x58] sm:$0xf]
  %v41 = vld [vmem:[%s0 + $0x5c] sm:$0xf]
  %v42 = vld [vmem:[%s0 + $0x60] sm:$0xf]
  %v43 = vld [vmem:[%s0 + $0x64] sm:$0xf]
  %v44 = vld [vmem:[%s0 + $0x68] sm:$0xf]
  %v45 = vld [vmem:[%s0 + $0x6c] sm:$0xf]
  %v46 = vld [vmem:[%s0 + $0x70] sm:$0xf]
  %v47 = vld [vmem:[%s0 + $0x74] sm:$0xf]
  %v48 = vld [vmem:[%s0 + $0x78] sm:$0xf]
  %v49 = vld [vmem:[%s0 + $0x7c] sm:$0xf]
  %v50 = vld [vmem:[%s0 + $0x80] sm:$0xf]
  %v51 = vld [vmem:[%s0 + $0x84] sm:$0xf]
  %v52 = vld [vmem:[%s0 + $0x88] sm:$0xf]
  %v53 = vld [vmem:[%s0 + $0x8c] sm:$0xf]
  %v54 = vld [vmem:[%s0 + $0x90] sm:$0xf]
  %v55 = vld [vmem:[%s0 + $0x94] sm:$0xf]
  %v56 = vld [vmem:[%s0 + $0x98] sm:$0xf]
  %v57 = vld [vmem:[%s0 + $0x9c] sm:$0xf]
  %v58 = vld [vmem:[%s0 + $0xa0] sm:$0xf]
  %v59 = vld [vmem:[%s0 + $0xa4] sm:$0xf]
  %v60 = vld [vmem:[%s0 + $0xa8] sm:$0xf]
  %v61 = vld [vmem:[%s0 + $0xac] sm:$0xf]
  %v62 = vld [vmem:[%s0 + $0xb0] sm:$0xf]
  %v63 = vld [vmem:[%s0 + $0xb4] sm:$0xf]
  %v64 = vld [vmem:[%s0 + $0xb8] sm:$0xf]
  %v65 = vld [vmem:[%s0 + $0xbc] sm:$0xf]
  %v66 = vld [vmem:[%s0 + $0xc0] sm:$0xf]
  %v67 = vld [vmem:[%s0 + $0xc4] sm:$0xf]
  %v68 = vld [vmem:[%s0 + $0xc8] sm:$0xf]
  %v69 = vld [vmem:[%s0 + $0xcc] sm:$0xf]
  %v70 = vld [vmem:[%s0 + $0xd0] sm:$0xf]
  %v71 = vld [vmem:[%s0 + $0xd4] sm:$0xf]
  %v72 = vld [vmem:[%s0 + $0xd8] sm:$0xf]
  %v73 = vld [vmem:[%s0 + $0xdc] sm:$0xf]
  %v74 = vld [vmem:[%s0 + $0xe0] sm:$0xf]
  %v75 = vld [vmem:[%s0 + $0xe4] sm:$0xf]
  %v76 = vld [vmem:[%s0 + $0xe8] sm:$0xf]
  %v77 = vld [vmem:[%s0 + $0xec] sm:$0xf]
  %v78 = vld [vmem:[%s0 + $0xf0] sm:$0xf]
  %v79 = vld [vmem:[%s0 + $0xf4] sm:$0xf]
  %v80 = vld [vmem:[%s0 + $0xf8] sm:$0xf]
  %v81 = vld [vmem:[%s0 + $0xfc] sm:$0xf]
  %v82 = vld [vmem:[%s1] sm:$0xf]
  %v83 = vld [vmem:[%s1 + $0x4] sm:$0xf]
  %v84 = vld [vmem:[%s1 + $0x8] sm:$0xf]
  %v85 = vld [vmem:[%s1 + $0xc] sm:$0xf]
  %v86 = vld [vmem:[%s1 + $0x10] sm:$0xf]
  %v87 = vld [vmem:[%s1 + $0x14] sm:$0xf]
  %v152 = vunpack.c.l.b16 %v18
  %v153 = vunpack.c.l.b16 %v19
  %v154 = vunpack.c.l.b16 %v20
  %v155 = vunpack.c.l.b16 %v21
  %v156 = vunpack.c.l.b16 %v22
  %v157 = vunpack.c.l.b16 %v23
  %v158 = vunpack.c.l.b16 %v24
  %v159 = vunpack.c.l.b16 %v25
  %v160 = vunpack.c.l.b16 %v26
  %v161 = vunpack.c.l.b16 %v27
  %v162 = vunpack.c.l.b16 %v28
  %v163 = vunpack.c.l.b16 %v29
  %v164 = vunpack.c.l.b16 %v30
  %v165 = vunpack.c.l.b16 %v31
  %v166 = vunpack.c.l.b16 %v32
  %v167 = vunpack.c.l.b16 %v33
  %v168 = vunpack.c.l.b16 %v34
  %v169 = vunpack.c.l.b16 %v35
  %v170 = vunpack.c.l.b16 %v36
  %v171 = vunpack.c.l.b16 %v37
  %v172 = vunpack.c.l.b16 %v38
  %v173 = vunpack.c.l.b16 %v39
  %v174 = vunpack.c.l.b16 %v40
  %v175 = vunpack.c.l.b16 %v41
  %v176 = vunpack.c.l.b16 %v42
  %v177 = vunpack.c.l.b16 %v43
  %v178 = vunpack.c.l.b16 %v44
  %v179 = vunpack.c.l.b16 %v45
  %v180 = vunpack.c.l.b16 %v46
  %v181 = vunpack.c.l.b16 %v47
  %v182 = vunpack.c.l.b16 %v48
  %v183 = vunpack.c.l.b16 %v49
  %v184 = vunpack.c.l.b16 %v50
  %v185 = vunpack.c.l.b16 %v51
  %v186 = vunpack.c.l.b16 %v52
  %v187 = vunpack.c.l.b16 %v53
  %v188 = vunpack.c.l.b16 %v54
  %v189 = vunpack.c.l.b16 %v55
  %v190 = vunpack.c.l.b16 %v56
  %v191 = vunpack.c.l.b16 %v57
  %v192 = vunpack.c.l.b16 %v58
  %v193 = vunpack.c.l.b16 %v59
  %v194 = vunpack.c.l.b16 %v60
  %v195 = vunpack.c.l.b16 %v61
  %v196 = vunpack.c.l.b16 %v62
  %v197 = vunpack.c.l.b16 %v63
  %v198 = vunpack.c.l.b16 %v64
  %v199 = vunpack.c.l.b16 %v65
  %v200 = vunpack.c.l.b16 %v66
  %v201 = vunpack.c.l.b16 %v67
  %v202 = vunpack.c.l.b16 %v68
  %v203 = vunpack.c.l.b16 %v69
  %v204 = vunpack.c.l.b16 %v70
  %v205 = vunpack.c.l.b16 %v71
  %v206 = vunpack.c.l.b16 %v72
  %v207 = vunpack.c.l.b16 %v73
  %v208 = vunpack.c.l.b16 %v74
  %v209 = vunpack.c.l.b16 %v75
  %v210 = vunpack.c.l.b16 %v76
  %v211 = vunpack.c.l.b16 %v77
  %v212 = vunpack.c.l.b16 %v78
  %v213 = vunpack.c.l.b16 %v79
  %v214 = vunpack.c.l.b16 %v80
  %v215 = vunpack.c.l.b16 %v81
  %v216 = vpack.c.b16 %v153, %v152
  %v217 = vpack.c.b16 %v155, %v154
  %v218 = vpack.c.b16 %v157, %v156
  %v219 = vpack.c.b16 %v159, %v158
  %v220 = vpack.c.b16 %v161, %v160
  %v221 = vpack.c.b16 %v163, %v162
  %v222 = vpack.c.b16 %v165, %v164
  %v223 = vpack.c.b16 %v167, %v166
  %v224 = vpack.c.b16 %v169, %v168
  %v225 = vpack.c.b16 %v171, %v170
  %v226 = vpack.c.b16 %v173, %v172
  %v227 = vpack.c.b16 %v175, %v174
  %v228 = vpack.c.b16 %v177, %v176
  %v229 = vpack.c.b16 %v179, %v178
  %v230 = vpack.c.b16 %v181, %v180
  %v231 = vpack.c.b16 %v183, %v182
  %v232 = vpack.c.b16 %v185, %v184
  %v233 = vpack.c.b16 %v187, %v186
  %v234 = vpack.c.b16 %v189, %v188
  %v235 = vpack.c.b16 %v191, %v190
  %v236 = vpack.c.b16 %v193, %v192
  %v237 = vpack.c.b16 %v195, %v194
  %v238 = vpack.c.b16 %v197, %v196
  %v239 = vpack.c.b16 %v199, %v198
  %v240 = vpack.c.b16 %v201, %v200
  %v241 = vpack.c.b16 %v203, %v202
  %v242 = vpack.c.b16 %v205, %v204
  %v243 = vpack.c.b16 %v207, %v206
  %v244 = vpack.c.b16 %v209, %v208
  %v245 = vpack.c.b16 %v211, %v210
  %v246 = vpack.c.b16 %v213, %v212
  %v247 = vpack.c.b16 %v215, %v214
  %v254 = vunpack.c.l.b16 %v82
  %v255 = vunpack.c.l.b16 %v83
  %v256 = vunpack.c.l.b16 %v84
  %v257 = vunpack.c.l.b16 %v85
  %v258 = vunpack.c.l.b16 %v86
  %v259 = vunpack.c.l.b16 %v87
  %v260 = vpack.c.b16 %v255, %v254
  %v261 = vpack.c.b16 %v257, %v256
  %v262 = vpack.c.b16 %v259, %v258
  %vm266 = vcmask 392192
  %v268 = vsel %vm266, %v216, 0
  %v271 = vsel %vm266, %v217, 0
  %v274 = vsel %vm266, %v218, 0
  %v277 = vsel %vm266, %v219, 0
  %v280 = vsel %vm266, %v220, 0
  %v283 = vsel %vm266, %v221, 0
  %v286 = vsel %vm266, %v222, 0
  %v289 = vsel %vm266, %v223, 0
  %v292 = vsel %vm266, %v224, 0
  %v295 = vsel %vm266, %v225, 0
  %v298 = vsel %vm266, %v226, 0
  %v301 = vsel %vm266, %v227, 0
  %v304 = vsel %vm266, %v228, 0
  %v307 = vsel %vm266, %v229, 0
  %v310 = vsel %vm266, %v230, 0
  %v313 = vsel %vm266, %v231, 0
  %v316 = vsel %vm266, %v232, 0
  %v319 = vsel %vm266, %v233, 0
  %v322 = vsel %vm266, %v234, 0
  %v325 = vsel %vm266, %v235, 0
  %v328 = vsel %vm266, %v236, 0
  %v331 = vsel %vm266, %v237, 0
  %v334 = vsel %vm266, %v238, 0
  %v337 = vsel %vm266, %v239, 0
  %v340 = vsel %vm266, %v240, 0
  %v343 = vsel %vm266, %v241, 0
  %v346 = vsel %vm266, %v242, 0
  %v349 = vsel %vm266, %v243, 0
  %v352 = vsel %vm266, %v244, 0
  %v355 = vsel %vm266, %v245, 0
  %v358 = vsel %vm266, %v246, 0
  %v361 = vsel %vm266, %v247, 0
  %363 = vmatprep.subr.bf16.mxu0 0
  %364 = vmatpush1.bf16.msra.mxu0 %v260
  %365 = vmatprep.subr.bf16.mxu0 0
  %366 = vmatpush1.bf16.msra.mxu0 %v261
  %367 = vmatprep.subr.bf16.mxu0 0
  %368 = vmatpush1.bf16.msra.mxu0 %v262
  %369 = vmatprep.subr.bf16.mxu0 0
  %370 = vmatpush1.bf16.msra.mxu0 0
  %371 = vmatprep.subr.bf16.mxu0 0
  %372 = vmatpush1.bf16.msra.mxu0 0
  %373 = vmatprep.subr.bf16.mxu0 0
  %374 = vmatpush1.bf16.msra.mxu0 0
  %375 = vmatprep.subr.bf16.mxu0 0
  %376 = vmatpush1.bf16.msra.mxu0 0
  %377 = vmatprep.subr.bf16.mxu0 0
  %378 = vmatpush1.bf16.msra.mxu0 0
  %379 = vmatprep.subr.bf16.mxu0 0
  %380 = vmatpush1.bf16.msra.mxu0 0
  %381 = vmatprep.subr.bf16.mxu0 0
  %382 = vmatpush1.bf16.msra.mxu0 0
  %383 = vmatprep.subr.bf16.mxu0 0
  %384 = vmatpush1.bf16.msra.mxu0 0
  %385 = vmatprep.subr.bf16.mxu0 0
  %386 = vmatpush1.bf16.msra.mxu0 0
  %387 = vmatprep.subr.bf16.mxu0 0
  %388 = vmatpush1.bf16.msra.mxu0 0
  %389 = vmatprep.subr.bf16.mxu0 0
  %390 = vmatpush1.bf16.msra.mxu0 0
  %391 = vmatprep.subr.bf16.mxu0 0
  %392 = vmatpush1.bf16.msra.mxu0 0
  %393 = vmatprep.subr.bf16.mxu0 0
  %394 = vmatpush1.bf16.msra.mxu0 0
  %395 = vmatprep.mubr.bf16.mxu0 0
  %396 = vmatmul.mubr.bf16.gmra.mrb[0].mxu0 %v268
  %v397 = vpop.f32.mrb[0].mxu0
  %v398 = vadd.f32 0.0, %v397
  %v399 = vpop.f32.mrb[0].mxu0
  %v400 = vpop.f32.mrb[0].mxu0
  %v401 = vadd.f32 0.0, %v400
  %v402 = vpop.f32.mrb[0].mxu0
  %403 = vmatprep.mubr.bf16.mxu0 0
  %404 = vmatmul.mubr.bf16.gmra.mrb[0].mxu0 %v271
  %v405 = vpop.f32.mrb[0].mxu0
  %v406 = vadd.f32 0.0, %v405
  %v407 = vpop.f32.mrb[0].mxu0
  %v408 = vpop.f32.mrb[0].mxu0
  %v409 = vadd.f32 0.0, %v408
  %v410 = vpop.f32.mrb[0].mxu0
  %411 = vmatprep.mubr.bf16.mxu0 0
  %412 = vmatmul.mubr.bf16.gmra.mrb[0].mxu0 %v274
  %v413 = vpop.f32.mrb[0].mxu0
  %v414 = vadd.f32 0.0, %v413
  %v415 = vpop.f32.mrb[0].mxu0
  %v416 = vpop.f32.mrb[0].mxu0
  %v417 = vadd.f32 0.0, %v416
  %v418 = vpop.f32.mrb[0].mxu0
  %419 = vmatprep.mubr.bf16.mxu0 0
  %420 = vmatmul.mubr.bf16.gmra.mrb[0].mxu0 %v277
  %v421 = vpop.f32.mrb[0].mxu0
  %v422 = vadd.f32 0.0, %v421
  %v423 = vpop.f32.mrb[0].mxu0
  %v424 = vpop.f32.mrb[0].mxu0
  %v425 = vadd.f32 0.0, %v424
  %v426 = vpop.f32.mrb[0].mxu0
  %427 = vmatprep.mubr.bf16.mxu0 0
  %428 = vmatmul.mubr.bf16.gmra.mrb[0].mxu0 %v280
  %v429 = vpop.f32.mrb[0].mxu0
  %v430 = vadd.f32 0.0, %v429
  %v431 = vpop.f32.mrb[0].mxu0
  %v432 = vpop.f32.mrb[0].mxu0
  %v433 = vadd.f32 0.0, %v432
  %v434 = vpop.f32.mrb[0].mxu0
  %435 = vmatprep.mubr.bf16.mxu0 0
  %436 = vmatmul.mubr.bf16.gmra.mrb[0].mxu0 %v283
  %v437 = vpop.f32.mrb[0].mxu0
  %v438 = vadd.f32 0.0, %v437
  %v439 = vpop.f32.mrb[0].mxu0
  %v440 = vpop.f32.mrb[0].mxu0
  %v441 = vadd.f32 0.0, %v440
  %v442 = vpop.f32.mrb[0].mxu0
  %443 = vmatprep.mubr.bf16.mxu0 0
  %444 = vmatmul.mubr.bf16.gmra.mrb[0].mxu0 %v286
  %v445 = vpop.f32.mrb[0].mxu0
  %v446 = vadd.f32 0.0, %v445
  %v447 = vpop.f32.mrb[0].mxu0
  %v448 = vpop.f32.mrb[0].mxu0
  %v449 = vadd.f32 0.0, %v448
  %v450 = vpop.f32.mrb[0].mxu0
  %451 = vmatprep.mubr.bf16.mxu0 0
  %452 = vmatmul.mubr.bf16.gmra.mrb[0].mxu0 %v289
  %v453 = vpop.f32.mrb[0].mxu0
  %v454 = vadd.f32 0.0, %v453
  %v455 = vpop.f32.mrb[0].mxu0
  %v456 = vpop.f32.mrb[0].mxu0
  %v457 = vadd.f32 0.0, %v456
  %v458 = vpop.f32.mrb[0].mxu0
  %459 = vmatprep.mubr.bf16.mxu0 0
  %460 = vmatmul.mubr.bf16.gmra.mrb[0].mxu0 %v292
  %v461 = vpop.f32.mrb[0].mxu0
  %v462 = vadd.f32 0.0, %v461
  %v463 = vpop.f32.mrb[0].mxu0
  %v464 = vpop.f32.mrb[0].mxu0
  %v465 = vadd.f32 0.0, %v464
  %v466 = vpop.f32.mrb[0].mxu0
  %467 = vmatprep.mubr.bf16.mxu0 0
  %468 = vmatmul.mubr.bf16.gmra.mrb[0].mxu0 %v295
  %v469 = vpop.f32.mrb[0].mxu0
  %v470 = vadd.f32 0.0, %v469
  %v471 = vpop.f32.mrb[0].mxu0
  %v472 = vpop.f32.mrb[0].mxu0
  %v473 = vadd.f32 0.0, %v472
  %v474 = vpop.f32.mrb[0].mxu0
  %475 = vmatprep.mubr.bf16.mxu0 0
  %476 = vmatmul.mubr.bf16.gmra.mrb[0].mxu0 %v298
  %v477 = vpop.f32.mrb[0].mxu0
  %v478 = vadd.f32 0.0, %v477
  %v479 = vpop.f32.mrb[0].mxu0
  %v480 = vpop.f32.mrb[0].mxu0
  %v481 = vadd.f32 0.0, %v480
  %v482 = vpop.f32.mrb[0].mxu0
  %483 = vmatprep.mubr.bf16.mxu0 0
  %484 = vmatmul.mubr.bf16.gmra.mrb[0].mxu0 %v301
  %v485 = vpop.f32.mrb[0].mxu0
  %v486 = vadd.f32 0.0, %v485
  %v487 = vpop.f32.mrb[0].mxu0
  %v488 = vpop.f32.mrb[0].mxu0
  %v489 = vadd.f32 0.0, %v488
  %v490 = vpop.f32.mrb[0].mxu0
  %491 = vmatprep.mubr.bf16.mxu0 0
  %492 = vmatmul.mubr.bf16.gmra.mrb[0].mxu0 %v304
  %v493 = vpop.f32.mrb[0].mxu0
  %v494 = vadd.f32 0.0, %v493
  %v495 = vpop.f32.mrb[0].mxu0
  %v496 = vpop.f32.mrb[0].mxu0
  %v497 = vadd.f32 0.0, %v496
  %v498 = vpop.f32.mrb[0].mxu0
  %499 = vmatprep.mubr.bf16.mxu0 0
  %500 = vmatmul.mubr.bf16.gmra.mrb[0].mxu0 %v307
  %v501 = vpop.f32.mrb[0].mxu0
  %v502 = vadd.f32 0.0, %v501
  %v503 = vpop.f32.mrb[0].mxu0
  %v504 = vpop.f32.mrb[0].mxu0
  %v505 = vadd.f32 0.0, %v504
  %v506 = vpop.f32.mrb[0].mxu0
  %507 = vmatprep.mubr.bf16.mxu0 0
  %508 = vmatmul.mubr.bf16.gmra.mrb[0].mxu0 %v310
  %v509 = vpop.f32.mrb[0].mxu0
  %v510 = vadd.f32 0.0, %v509
  %v511 = vpop.f32.mrb[0].mxu0
  %v512 = vpop.f32.mrb[0].mxu0
  %v513 = vadd.f32 0.0, %v512
  %v514 = vpop.f32.mrb[0].mxu0
  %515 = vmatprep.mubr.bf16.mxu0 0
  %516 = vmatmul.mubr.bf16.gmra.mrb[0].mxu0 %v313
  %v517 = vpop.f32.mrb[0].mxu0
  %v518 = vadd.f32 0.0, %v517
  %v519 = vpop.f32.mrb[0].mxu0
  %v520 = vpop.f32.mrb[0].mxu0
  %v521 = vadd.f32 0.0, %v520
  %v522 = vpop.f32.mrb[0].mxu0
  %523 = vmatprep.mubr.bf16.mxu0 0
  %524 = vmatmul.mubr.bf16.gmra.mrb[0].mxu0 %v316
  %v525 = vpop.f32.mrb[0].mxu0
  %v526 = vadd.f32 0.0, %v525
  %v527 = vpop.f32.mrb[0].mxu0
  %v528 = vpop.f32.mrb[0].mxu0
  %v529 = vadd.f32 0.0, %v528
  %v530 = vpop.f32.mrb[0].mxu0
  %531 = vmatprep.mubr.bf16.mxu0 0
  %532 = vmatmul.mubr.bf16.gmra.mrb[0].mxu0 %v319
  %v533 = vpop.f32.mrb[0].mxu0
  %v534 = vadd.f32 0.0, %v533
  %v535 = vpop.f32.mrb[0].mxu0
  %v536 = vpop.f32.mrb[0].mxu0
  %v537 = vadd.f32 0.0, %v536
  %v538 = vpop.f32.mrb[0].mxu0
  %539 = vmatprep.mubr.bf16.mxu0 0
  %540 = vmatmul.mubr.bf16.gmra.mrb[0].mxu0 %v322
  %v541 = vpop.f32.mrb[0].mxu0
  %v542 = vadd.f32 0.0, %v541
  %v543 = vpop.f32.mrb[0].mxu0
  %v544 = vpop.f32.mrb[0].mxu0
  %v545 = vadd.f32 0.0, %v544
  %v546 = vpop.f32.mrb[0].mxu0
  %547 = vmatprep.mubr.bf16.mxu0 0
  %548 = vmatmul.mubr.bf16.gmra.mrb[0].mxu0 %v325
  %v549 = vpop.f32.mrb[0].mxu0
  %v550 = vadd.f32 0.0, %v549
  %v551 = vpop.f32.mrb[0].mxu0
  %v552 = vpop.f32.mrb[0].mxu0
  %v553 = vadd.f32 0.0, %v552
  %v554 = vpop.f32.mrb[0].mxu0
  %555 = vmatprep.mubr.bf16.mxu0 0
  %556 = vmatmul.mubr.bf16.gmra.mrb[0].mxu0 %v328
  %v557 = vpop.f32.mrb[0].mxu0
  %v558 = vadd.f32 0.0, %v557
  %v559 = vpop.f32.mrb[0].mxu0
  %v560 = vpop.f32.mrb[0].mxu0
  %v561 = vadd.f32 0.0, %v560
  %v562 = vpop.f32.mrb[0].mxu0
  %563 = vmatprep.mubr.bf16.mxu0 0
  %564 = vmatmul.mubr.bf16.gmra.mrb[0].mxu0 %v331
  %v565 = vpop.f32.mrb[0].mxu0
  %v566 = vadd.f32 0.0, %v565
  %v567 = vpop.f32.mrb[0].mxu0
  %v568 = vpop.f32.mrb[0].mxu0
  %v569 = vadd.f32 0.0, %v568
  %v570 = vpop.f32.mrb[0].mxu0
  %571 = vmatprep.mubr.bf16.mxu0 0
  %572 = vmatmul.mubr.bf16.gmra.mrb[0].mxu0 %v334
  %v573 = vpop.f32.mrb[0].mxu0
  %v574 = vadd.f32 0.0, %v573
  %v575 = vpop.f32.mrb[0].mxu0
  %v576 = vpop.f32.mrb[0].mxu0
  %v577 = vadd.f32 0.0, %v576
  %v578 = vpop.f32.mrb[0].mxu0
  %579 = vmatprep.mubr.bf16.mxu0 0
  %580 = vmatmul.mubr.bf16.gmra.mrb[0].mxu0 %v337
  %v581 = vpop.f32.mrb[0].mxu0
  %v582 = vadd.f32 0.0, %v581
  %v583 = vpop.f32.mrb[0].mxu0
  %v584 = vpop.f32.mrb[0].mxu0
  %v585 = vadd.f32 0.0, %v584
  %v586 = vpop.f32.mrb[0].mxu0
  %587 = vmatprep.mubr.bf16.mxu0 0
  %588 = vmatmul.mubr.bf16.gmra.mrb[0].mxu0 %v340
  %v589 = vpop.f32.mrb[0].mxu0
  %v590 = vadd.f32 0.0, %v589
  %v591 = vpop.f32.mrb[0].mxu0
  %v592 = vpop.f32.mrb[0].mxu0
  %v593 = vadd.f32 0.0, %v592
  %v594 = vpop.f32.mrb[0].mxu0
  %595 = vmatprep.mubr.bf16.mxu0 0
  %596 = vmatmul.mubr.bf16.gmra.mrb[0].mxu0 %v343
  %v597 = vpop.f32.mrb[0].mxu0
  %v598 = vadd.f32 0.0, %v597
  %v599 = vpop.f32.mrb[0].mxu0
  %v600 = vpop.f32.mrb[0].mxu0
  %v601 = vadd.f32 0.0, %v600
  %v602 = vpop.f32.mrb[0].mxu0
  %603 = vmatprep.mubr.bf16.mxu0 0
  %604 = vmatmul.mubr.bf16.gmra.mrb[0].mxu0 %v346
  %v605 = vpop.f32.mrb[0].mxu0
  %v606 = vadd.f32 0.0, %v605
  %v607 = vpop.f32.mrb[0].mxu0
  %v608 = vpop.f32.mrb[0].mxu0
  %v609 = vadd.f32 0.0, %v608
  %v610 = vpop.f32.mrb[0].mxu0
  %611 = vmatprep.mubr.bf16.mxu0 0
  %612 = vmatmul.mubr.bf16.gmra.mrb[0].mxu0 %v349
  %v613 = vpop.f32.mrb[0].mxu0
  %v614 = vadd.f32 0.0, %v613
  %v615 = vpop.f32.mrb[0].mxu0
  %v616 = vpop.f32.mrb[0].mxu0
  %v617 = vadd.f32 0.0, %v616
  %v618 = vpop.f32.mrb[0].mxu0
  %619 = vmatprep.mubr.bf16.mxu0 0
  %620 = vmatmul.mubr.bf16.gmra.mrb[0].mxu0 %v352
  %v621 = vpop.f32.mrb[0].mxu0
  %v622 = vadd.f32 0.0, %v621
  %v623 = vpop.f32.mrb[0].mxu0
  %v624 = vpop.f32.mrb[0].mxu0
  %v625 = vadd.f32 0.0, %v624
  %v626 = vpop.f32.mrb[0].mxu0
  %627 = vmatprep.mubr.bf16.mxu0 0
  %628 = vmatmul.mubr.bf16.gmra.mrb[0].mxu0 %v355
  %v629 = vpop.f32.mrb[0].mxu0
  %v630 = vadd.f32 0.0, %v629
  %v631 = vpop.f32.mrb[0].mxu0
  %v632 = vpop.f32.mrb[0].mxu0
  %v633 = vadd.f32 0.0, %v632
  %v634 = vpop.f32.mrb[0].mxu0
  %635 = vmatprep.mubr.bf16.mxu0 0
  %636 = vmatmul.mubr.bf16.gmra.mrb[0].mxu0 %v358
  %v637 = vpop.f32.mrb[0].mxu0
  %v638 = vadd.f32 0.0, %v637
  %v639 = vpop.f32.mrb[0].mxu0
  %v640 = vpop.f32.mrb[0].mxu0
  %v641 = vadd.f32 0.0, %v640
  %v642 = vpop.f32.mrb[0].mxu0
  %643 = vmatprep.mubr.bf16.mxu0 0
  %644 = vmatmul.mubr.bf16.gmra.mrb[0].mxu0 %v361
  %v645 = vpop.f32.mrb[0].mxu0
  %v646 = vadd.f32 0.0, %v645
  %v647 = vpop.f32.mrb[0].mxu0
  %v648 = vpop.f32.mrb[0].mxu0
  %v649 = vadd.f32 0.0, %v648
  %v650 = vpop.f32.mrb[0].mxu0
  %651 = vdwg.mxu0
  %v652 = vadd.f32 %v398, %v401
  %v653 = vadd.f32 %v652, %v406
  %v654 = vadd.f32 %v653, %v409
  %v655 = vadd.f32 %v654, %v414
  %v656 = vadd.f32 %v655, %v417
  %v657 = vadd.f32 %v656, %v422
  %v658 = vadd.f32 %v657, %v425
  %v659 = vadd.f32 %v658, %v430
  %v660 = vadd.f32 %v659, %v433
  %v661 = vadd.f32 %v660, %v438
  %v662 = vadd.f32 %v661, %v441
  %v663 = vadd.f32 %v662, %v446
  %v664 = vadd.f32 %v663, %v449
  %v665 = vadd.f32 %v664, %v454
  %v666 = vadd.f32 %v665, %v457
  %v667 = vadd.f32 %v666, %v462
  %v668 = vadd.f32 %v667, %v465
  %v669 = vadd.f32 %v668, %v470
  %v670 = vadd.f32 %v669, %v473
  %v671 = vadd.f32 %v670, %v478
  %v672 = vadd.f32 %v671, %v481
  %v673 = vadd.f32 %v672, %v486
  %v674 = vadd.f32 %v673, %v489
  %v675 = vadd.f32 %v674, %v494
  %v676 = vadd.f32 %v675, %v497
  %v677 = vadd.f32 %v676, %v502
  %v678 = vadd.f32 %v677, %v505
  %v679 = vadd.f32 %v678, %v510
  %v680 = vadd.f32 %v679, %v513
  %v681 = vadd.f32 %v680, %v518
  %v682 = vadd.f32 %v681, %v521
  %v683 = vadd.f32 %v682, %v526
  %v684 = vadd.f32 %v683, %v529
  %v685 = vadd.f32 %v684, %v534
  %v686 = vadd.f32 %v685, %v537
  %v687 = vadd.f32 %v686, %v542
  %v688 = vadd.f32 %v687, %v545
  %v689 = vadd.f32 %v688, %v550
  %v690 = vadd.f32 %v689, %v553
  %v691 = vadd.f32 %v690, %v558
  %v692 = vadd.f32 %v691, %v561
  %v693 = vadd.f32 %v692, %v566
  %v694 = vadd.f32 %v693, %v569
  %v695 = vadd.f32 %v694, %v574
  %v696 = vadd.f32 %v695, %v577
  %v697 = vadd.f32 %v696, %v582
  %v698 = vadd.f32 %v697, %v585
  %v699 = vadd.f32 %v698, %v590
  %v700 = vadd.f32 %v699, %v593
  %v701 = vadd.f32 %v700, %v598
  %v702 = vadd.f32 %v701, %v601
  %v703 = vadd.f32 %v702, %v606
  %v704 = vadd.f32 %v703, %v609
  %v705 = vadd.f32 %v704, %v614
  %v706 = vadd.f32 %v705, %v617
  %v707 = vadd.f32 %v706, %v622
  %v708 = vadd.f32 %v707, %v625
  %v709 = vadd.f32 %v708, %v630
  %v710 = vadd.f32 %v709, %v633
  %v711 = vadd.f32 %v710, %v638
  %v712 = vadd.f32 %v711, %v641
  %v713 = vadd.f32 %v712, %v646
  %v714 = vadd.f32 %v713, %v649
  %v715 = vrot.slane %v714, 4
  %v716 = vadd.f32 %v714, %v715
  %v717 = vrot.slane %v716, 2
  %v718 = vadd.f32 %v716, %v717
  %v719 = vrot.slane %v718, 1
  %v720 = vadd.f32 %v718, %v719
  %v721 = vmul.f32 %v720, 0.001953125
  %v722 = vmul.f32 %v398, %v398
  %v723 = vmul.f32 %v401, %v401
  %v724 = vmul.f32 %v406, %v406
  %v725 = vmul.f32 %v409, %v409
  %v726 = vmul.f32 %v414, %v414
  %v727 = vmul.f32 %v417, %v417
  %v728 = vmul.f32 %v422, %v422
  %v729 = vmul.f32 %v425, %v425
  %v730 = vmul.f32 %v430, %v430
  %v731 = vmul.f32 %v433, %v433
  %v732 = vmul.f32 %v438, %v438
  %v733 = vmul.f32 %v441, %v441
  %v734 = vmul.f32 %v446, %v446
  %v735 = vmul.f32 %v449, %v449
  %v736 = vmul.f32 %v454, %v454
  %v737 = vmul.f32 %v457, %v457
  %v738 = vmul.f32 %v462, %v462
  %v739 = vmul.f32 %v465, %v465
  %v740 = vmul.f32 %v470, %v470
  %v741 = vmul.f32 %v473, %v473
  %v742 = vmul.f32 %v478, %v478
  %v743 = vmul.f32 %v481, %v481
  %v744 = vmul.f32 %v486, %v486
  %v745 = vmul.f32 %v489, %v489
  %v746 = vmul.f32 %v494, %v494
  %v747 = vmul.f32 %v497, %v497
  %v748 = vmul.f32 %v502, %v502
  %v749 = vmul.f32 %v505, %v505
  %v750 = vmul.f32 %v510, %v510
  %v751 = vmul.f32 %v513, %v513
  %v752 = vmul.f32 %v518, %v518
  %v753 = vmul.f32 %v521, %v521
  %v754 = vmul.f32 %v526, %v526
  %v755 = vmul.f32 %v529, %v529
  %v756 = vmul.f32 %v534, %v534
  %v757 = vmul.f32 %v537, %v537
  %v758 = vmul.f32 %v542, %v542
  %v759 = vmul.f32 %v545, %v545
  %v760 = vmul.f32 %v550, %v550
  %v761 = vmul.f32 %v553, %v553
  %v762 = vmul.f32 %v558, %v558
  %v763 = vmul.f32 %v561, %v561
  %v764 = vmul.f32 %v566, %v566
  %v765 = vmul.f32 %v569, %v569
  %v766 = vmul.f32 %v574, %v574
  %v767 = vmul.f32 %v577, %v577
  %v768 = vmul.f32 %v582, %v582
  %v769 = vmul.f32 %v585, %v585
  %v770 = vmul.f32 %v590, %v590
  %v771 = vmul.f32 %v593, %v593
  %v772 = vmul.f32 %v598, %v598
  %v773 = vmul.f32 %v601, %v601
  %v774 = vmul.f32 %v606, %v606
  %v775 = vmul.f32 %v609, %v609
  %v776 = vmul.f32 %v614, %v614
  %v777 = vmul.f32 %v617, %v617
  %v778 = vmul.f32 %v622, %v622
  %v779 = vmul.f32 %v625, %v625
  %v780 = vmul.f32 %v630, %v630
  %v781 = vmul.f32 %v633, %v633
  %v782 = vmul.f32 %v638, %v638
  %v783 = vmul.f32 %v641, %v641
  %v784 = vmul.f32 %v646, %v646
  %v785 = vmul.f32 %v649, %v649
  %v786 = vadd.f32 %v722, %v723
  %v787 = vadd.f32 %v786, %v724
  %v788 = vadd.f32 %v787, %v725
  %v789 = vadd.f32 %v788, %v726
  %v790 = vadd.f32 %v789, %v727
  %v791 = vadd.f32 %v790, %v728
  %v792 = vadd.f32 %v791, %v729
  %v793 = vadd.f32 %v792, %v730
  %v794 = vadd.f32 %v793, %v731
  %v795 = vadd.f32 %v794, %v732
  %v796 = vadd.f32 %v795, %v733
  %v797 = vadd.f32 %v796, %v734
  %v798 = vadd.f32 %v797, %v735
  %v799 = vadd.f32 %v798, %v736
  %v800 = vadd.f32 %v799, %v737
  %v801 = vadd.f32 %v800, %v738
  %v802 = vadd.f32 %v801, %v739
  %v803 = vadd.f32 %v802, %v740
  %v804 = vadd.f32 %v803, %v741
  %v805 = vadd.f32 %v804, %v742
  %v806 = vadd.f32 %v805, %v743
  %v807 = vadd.f32 %v806, %v744
  %v808 = vadd.f32 %v807, %v745
  %v809 = vadd.f32 %v808, %v746
  %v810 = vadd.f32 %v809, %v747
  %v811 = vadd.f32 %v810, %v748
  %v812 = vadd.f32 %v811, %v749
  %v813 = vadd.f32 %v812, %v750
  %v814 = vadd.f32 %v813, %v751
  %v815 = vadd.f32 %v814, %v752
  %v816 = vadd.f32 %v815, %v753
  %v817 = vadd.f32 %v816, %v754
  %v818 = vadd.f32 %v817, %v755
  %v819 = vadd.f32 %v818, %v756
  %v820 = vadd.f32 %v819, %v757
  %v821 = vadd.f32 %v820, %v758
  %v822 = vadd.f32 %v821, %v759
  %v823 = vadd.f32 %v822, %v760
  %v824 = vadd.f32 %v823, %v761
  %v825 = vadd.f32 %v824, %v762
  %v826 = vadd.f32 %v825, %v763
  %v827 = vadd.f32 %v826, %v764
  %v828 = vadd.f32 %v827, %v765
  %v829 = vadd.f32 %v828, %v766
  %v830 = vadd.f32 %v829, %v767
  %v831 = vadd.f32 %v830, %v768
  %v832 = vadd.f32 %v831, %v769
  %v833 = vadd.f32 %v832, %v770
  %v834 = vadd.f32 %v833, %v771
  %v835 = vadd.f32 %v834, %v772
  %v836 = vadd.f32 %v835, %v773
  %v837 = vadd.f32 %v836, %v774
  %v838 = vadd.f32 %v837, %v775
  %v839 = vadd.f32 %v838, %v776
  %v840 = vadd.f32 %v839, %v777
  %v841 = vadd.f32 %v840, %v778
  %v842 = vadd.f32 %v841, %v779
  %v843 = vadd.f32 %v842, %v780
  %v844 = vadd.f32 %v843, %v781
  %v845 = vadd.f32 %v844, %v782
  %v846 = vadd.f32 %v845, %v783
  %v847 = vadd.f32 %v846, %v784
  %v848 = vadd.f32 %v847, %v785
  %v849 = vrot.slane %v848, 4
  %v850 = vadd.f32 %v848, %v849
  %v851 = vrot.slane %v850, 2
  %v852 = vadd.f32 %v850, %v851
  %v853 = vrot.slane %v852, 1
  %v854 = vadd.f32 %v852, %v853
  %v855 = vmul.f32 %v854, 0.001953125
  %v856 = vmul.f32 %v721, %v721
  %v857 = vsub.f32 %v855, %v856
  %v858 = vmax.f32 %v857, 0.0
  %v859 = vld [vmem:[%s2] sm:$0x1]
  %v860 = vadd.f32 %v858, 1e-05
  %v861 = vrsqrt.pop %v860
  %v862 = vmul.f32 %v859, %v861
  %v863 = vld [vmem:[%s3] sm:$0x1]
  %v864 = vmul.f32 %v721, %v862
  %v865 = vsub.f32 %v863, %v864
  %v867 = vlaneseq
  %v868 = vshrl.u32 %v867, 7
  %v869 = vsub.s32 0, %v868
  %v870 = vrot.slane %v862, %v869
  %v872 = vmul.f32 %v398, %v870
  %v873 = vmul.f32 %v401, %v870
  %v874 = vmul.f32 %v406, %v870
  %v875 = vmul.f32 %v409, %v870
  %v876 = vmul.f32 %v414, %v870
  %v877 = vmul.f32 %v417, %v870
  %v878 = vmul.f32 %v422, %v870
  %v879 = vmul.f32 %v425, %v870
  %v880 = vmul.f32 %v430, %v870
  %v881 = vmul.f32 %v433, %v870
  %v882 = vmul.f32 %v438, %v870
  %v883 = vmul.f32 %v441, %v870
  %v884 = vmul.f32 %v446, %v870
  %v885 = vmul.f32 %v449, %v870
  %v886 = vmul.f32 %v454, %v870
  %v887 = vmul.f32 %v457, %v870
  %v888 = vmul.f32 %v462, %v870
  %v889 = vmul.f32 %v465, %v870
  %v890 = vmul.f32 %v470, %v870
  %v891 = vmul.f32 %v473, %v870
  %v892 = vmul.f32 %v478, %v870
  %v893 = vmul.f32 %v481, %v870
  %v894 = vmul.f32 %v486, %v870
  %v895 = vmul.f32 %v489, %v870
  %v896 = vmul.f32 %v494, %v870
  %v897 = vmul.f32 %v497, %v870
  %v898 = vmul.f32 %v502, %v870
  %v899 = vmul.f32 %v505, %v870
  %v900 = vmul.f32 %v510, %v870
  %v901 = vmul.f32 %v513, %v870
  %v902 = vmul.f32 %v518, %v870
  %v903 = vmul.f32 %v521, %v870
  %v904 = vmul.f32 %v526, %v870
  %v905 = vmul.f32 %v529, %v870
  %v906 = vmul.f32 %v534, %v870
  %v907 = vmul.f32 %v537, %v870
  %v908 = vmul.f32 %v542, %v870
  %v909 = vmul.f32 %v545, %v870
  %v910 = vmul.f32 %v550, %v870
  %v911 = vmul.f32 %v553, %v870
  %v912 = vmul.f32 %v558, %v870
  %v913 = vmul.f32 %v561, %v870
  %v914 = vmul.f32 %v566, %v870
  %v915 = vmul.f32 %v569, %v870
  %v916 = vmul.f32 %v574, %v870
  %v917 = vmul.f32 %v577, %v870
  %v918 = vmul.f32 %v582, %v870
  %v919 = vmul.f32 %v585, %v870
  %v920 = vmul.f32 %v590, %v870
  %v921 = vmul.f32 %v593, %v870
  %v922 = vmul.f32 %v598, %v870
  %v923 = vmul.f32 %v601, %v870
  %v924 = vmul.f32 %v606, %v870
  %v925 = vmul.f32 %v609, %v870
  %v926 = vmul.f32 %v614, %v870
  %v927 = vmul.f32 %v617, %v870
  %v928 = vmul.f32 %v622, %v870
  %v929 = vmul.f32 %v625, %v870
  %v930 = vmul.f32 %v630, %v870
  %v931 = vmul.f32 %v633, %v870
  %v932 = vmul.f32 %v638, %v870
  %v933 = vmul.f32 %v641, %v870
  %v934 = vmul.f32 %v646, %v870
  %v935 = vmul.f32 %v649, %v870
  %v937 = vlaneseq
  %v938 = vshrl.u32 %v937, 7
  %v939 = vsub.s32 0, %v938
  %v940 = vrot.slane %v865, %v939
  %v942 = vadd.f32 %v872, %v940
  %v943 = vadd.f32 %v873, %v940
  %v944 = vadd.f32 %v874, %v940
  %v945 = vadd.f32 %v875, %v940
  %v946 = vadd.f32 %v876, %v940
  %v947 = vadd.f32 %v877, %v940
  %v948 = vadd.f32 %v878, %v940
  %v949 = vadd.f32 %v879, %v940
  %v950 = vadd.f32 %v880, %v940
  %v951 = vadd.f32 %v881, %v940
  %v952 = vadd.f32 %v882, %v940
  %v953 = vadd.f32 %v883, %v940
  %v954 = vadd.f32 %v884, %v940
  %v955 = vadd.f32 %v885, %v940
  %v956 = vadd.f32 %v886, %v940
  %v957 = vadd.f32 %v887, %v940
  %v958 = vadd.f32 %v888, %v940
  %v959 = vadd.f32 %v889, %v940
  %v960 = vadd.f32 %v890, %v940
  %v961 = vadd.f32 %v891, %v940
  %v962 = vadd.f32 %v892, %v940
  %v963 = vadd.f32 %v893, %v940
  %v964 = vadd.f32 %v894, %v940
  %v965 = vadd.f32 %v895, %v940
  %v966 = vadd.f32 %v896, %v940
  %v967 = vadd.f32 %v897, %v940
  %v968 = vadd.f32 %v898, %v940
  %v969 = vadd.f32 %v899, %v940
  %v970 = vadd.f32 %v900, %v940
  %v971 = vadd.f32 %v901, %v940
  %v972 = vadd.f32 %v902, %v940
  %v973 = vadd.f32 %v903, %v940
  %v974 = vadd.f32 %v904, %v940
  %v975 = vadd.f32 %v905, %v940
  %v976 = vadd.f32 %v906, %v940
  %v977 = vadd.f32 %v907, %v940
  %v978 = vadd.f32 %v908, %v940
  %v979 = vadd.f32 %v909, %v940
  %v980 = vadd.f32 %v910, %v940
  %v981 = vadd.f32 %v911, %v940
  %v982 = vadd.f32 %v912, %v940
  %v983 = vadd.f32 %v913, %v940
  %v984 = vadd.f32 %v914, %v940
  %v985 = vadd.f32 %v915, %v940
  %v986 = vadd.f32 %v916, %v940
  %v987 = vadd.f32 %v917, %v940
  %v988 = vadd.f32 %v918, %v940
  %v989 = vadd.f32 %v919, %v940
  %v990 = vadd.f32 %v920, %v940
  %v991 = vadd.f32 %v921, %v940
  %v992 = vadd.f32 %v922, %v940
  %v993 = vadd.f32 %v923, %v940
  %v994 = vadd.f32 %v924, %v940
  %v995 = vadd.f32 %v925, %v940
  %v996 = vadd.f32 %v926, %v940
  %v997 = vadd.f32 %v927, %v940
  %v998 = vadd.f32 %v928, %v940
  %v999 = vadd.f32 %v929, %v940
  %v1000 = vadd.f32 %v930, %v940
  %v1001 = vadd.f32 %v931, %v940
  %v1002 = vadd.f32 %v932, %v940
  %v1003 = vadd.f32 %v933, %v940
  %v1004 = vadd.f32 %v934, %v940
  %v1005 = vadd.f32 %v935, %v940
  %v1006 = vmax.f32 %v942, 0.0
  %v1007 = vmax.f32 %v943, 0.0
  %v1008 = vmax.f32 %v944, 0.0
  %v1009 = vmax.f32 %v945, 0.0
  %v1010 = vmax.f32 %v946, 0.0
  %v1011 = vmax.f32 %v947, 0.0
  %v1012 = vmax.f32 %v948, 0.0
  %v1013 = vmax.f32 %v949, 0.0
  %v1014 = vmax.f32 %v950, 0.0
  %v1015 = vmax.f32 %v951, 0.0
  %v1016 = vmax.f32 %v952, 0.0
  %v1017 = vmax.f32 %v953, 0.0
  %v1018 = vmax.f32 %v954, 0.0
  %v1019 = vmax.f32 %v955, 0.0
  %v1020 = vmax.f32 %v956, 0.0
  %v1021 = vmax.f32 %v957, 0.0
  %v1022 = vmax.f32 %v958, 0.0
  %v1023 = vmax.f32 %v959, 0.0
  %v1024 = vmax.f32 %v960, 0.0
  %v1025 = vmax.f32 %v961, 0.0
  %v1026 = vmax.f32 %v962, 0.0
  %v1027 = vmax.f32 %v963, 0.0
  %v1028 = vmax.f32 %v964, 0.0
  %v1029 = vmax.f32 %v965, 0.0
  %v1030 = vmax.f32 %v966, 0.0
  %v1031 = vmax.f32 %v967, 0.0
  %v1032 = vmax.f32 %v968, 0.0
  %v1033 = vmax.f32 %v969, 0.0
  %v1034 = vmax.f32 %v970, 0.0
  %v1035 = vmax.f32 %v971, 0.0
  %v1036 = vmax.f32 %v972, 0.0
  %v1037 = vmax.f32 %v973, 0.0
  %v1038 = vmax.f32 %v974, 0.0
  %v1039 = vmax.f32 %v975, 0.0
  %v1040 = vmax.f32 %v976, 0.0
  %v1041 = vmax.f32 %v977, 0.0
  %v1042 = vmax.f32 %v978, 0.0
  %v1043 = vmax.f32 %v979, 0.0
  %v1044 = vmax.f32 %v980, 0.0
  %v1045 = vmax.f32 %v981, 0.0
  %v1046 = vmax.f32 %v982, 0.0
  %v1047 = vmax.f32 %v983, 0.0
  %v1048 = vmax.f32 %v984, 0.0
  %v1049 = vmax.f32 %v985, 0.0
  %v1050 = vmax.f32 %v986, 0.0
  %v1051 = vmax.f32 %v987, 0.0
  %v1052 = vmax.f32 %v988, 0.0
  %v1053 = vmax.f32 %v989, 0.0
  %v1054 = vmax.f32 %v990, 0.0
  %v1055 = vmax.f32 %v991, 0.0
  %v1056 = vmax.f32 %v992, 0.0
  %v1057 = vmax.f32 %v993, 0.0
  %v1058 = vmax.f32 %v994, 0.0
  %v1059 = vmax.f32 %v995, 0.0
  %v1060 = vmax.f32 %v996, 0.0
  %v1061 = vmax.f32 %v997, 0.0
  %v1062 = vmax.f32 %v998, 0.0
  %v1063 = vmax.f32 %v999, 0.0
  %v1064 = vmax.f32 %v1000, 0.0
  %v1065 = vmax.f32 %v1001, 0.0
  %v1066 = vmax.f32 %v1002, 0.0
  %v1067 = vmax.f32 %v1003, 0.0
  %v1068 = vmax.f32 %v1004, 0.0
  %v1069 = vmax.f32 %v1005, 0.0
  %v1070 = vpack.c.bf16 %v1007, %v1006
  %v1071 = vpack.c.bf16 %v1009, %v1008
  %v1072 = vpack.c.bf16 %v1011, %v1010
  %v1073 = vpack.c.bf16 %v1013, %v1012
  %v1074 = vpack.c.bf16 %v1015, %v1014
  %v1075 = vpack.c.bf16 %v1017, %v1016
  %v1076 = vpack.c.bf16 %v1019, %v1018
  %v1077 = vpack.c.bf16 %v1021, %v1020
  %v1078 = vpack.c.bf16 %v1023, %v1022
  %v1079 = vpack.c.bf16 %v1025, %v1024
  %v1080 = vpack.c.bf16 %v1027, %v1026
  %v1081 = vpack.c.bf16 %v1029, %v1028
  %v1082 = vpack.c.bf16 %v1031, %v1030
  %v1083 = vpack.c.bf16 %v1033, %v1032
  %v1084 = vpack.c.bf16 %v1035, %v1034
  %v1085 = vpack.c.bf16 %v1037, %v1036
  %v1086 = vpack.c.bf16 %v1039, %v1038
  %v1087 = vpack.c.bf16 %v1041, %v1040
  %v1088 = vpack.c.bf16 %v1043, %v1042
  %v1089 = vpack.c.bf16 %v1045, %v1044
  %v1090 = vpack.c.bf16 %v1047, %v1046
  %v1091 = vpack.c.bf16 %v1049, %v1048
  %v1092 = vpack.c.bf16 %v1051, %v1050
  %v1093 = vpack.c.bf16 %v1053, %v1052
  %v1094 = vpack.c.bf16 %v1055, %v1054
  %v1095 = vpack.c.bf16 %v1057, %v1056
  %v1096 = vpack.c.bf16 %v1059, %v1058
  %v1097 = vpack.c.bf16 %v1061, %v1060
  %v1098 = vpack.c.bf16 %v1063, %v1062
  %v1099 = vpack.c.bf16 %v1065, %v1064
  %v1100 = vpack.c.bf16 %v1067, %v1066
  %v1101 = vpack.c.bf16 %v1069, %v1068
  %v1134 = vunpack.c.l.b16 %v1070
  %v1135 = vunpack.c.h.b16 %v1070
  %v1136 = vunpack.c.l.b16 %v1071
  %v1137 = vunpack.c.h.b16 %v1071
  %v1138 = vunpack.c.l.b16 %v1072
  %v1139 = vunpack.c.h.b16 %v1072
  %v1140 = vunpack.c.l.b16 %v1073
  %v1141 = vunpack.c.h.b16 %v1073
  %v1142 = vunpack.c.l.b16 %v1074
  %v1143 = vunpack.c.h.b16 %v1074
  %v1144 = vunpack.c.l.b16 %v1075
  %v1145 = vunpack.c.h.b16 %v1075
  %v1146 = vunpack.c.l.b16 %v1076
  %v1147 = vunpack.c.h.b16 %v1076
  %v1148 = vunpack.c.l.b16 %v1077
  %v1149 = vunpack.c.h.b16 %v1077
  %v1150 = vunpack.c.l.b16 %v1078
  %v1151 = vunpack.c.h.b16 %v1078
  %v1152 = vunpack.c.l.b16 %v1079
  %v1153 = vunpack.c.h.b16 %v1079
  %v1154 = vunpack.c.l.b16 %v1080
  %v1155 = vunpack.c.h.b16 %v1080
  %v1156 = vunpack.c.l.b16 %v1081
  %v1157 = vunpack.c.h.b16 %v1081
  %v1158 = vunpack.c.l.b16 %v1082
  %v1159 = vunpack.c.h.b16 %v1082
  %v1160 = vunpack.c.l.b16 %v1083
  %v1161 = vunpack.c.h.b16 %v1083
  %v1162 = vunpack.c.l.b16 %v1084
  %v1163 = vunpack.c.h.b16 %v1084
  %v1164 = vunpack.c.l.b16 %v1085
  %v1165 = vunpack.c.h.b16 %v1085
  %v1166 = vunpack.c.l.b16 %v1086
  %v1167 = vunpack.c.h.b16 %v1086
  %v1168 = vunpack.c.l.b16 %v1087
  %v1169 = vunpack.c.h.b16 %v1087
  %v1170 = vunpack.c.l.b16 %v1088
  %v1171 = vunpack.c.h.b16 %v1088
  %v1172 = vunpack.c.l.b16 %v1089
  %v1173 = vunpack.c.h.b16 %v1089
  %v1174 = vunpack.c.l.b16 %v1090
  %v1175 = vunpack.c.h.b16 %v1090
  %v1176 = vunpack.c.l.b16 %v1091
  %v1177 = vunpack.c.h.b16 %v1091
  %v1178 = vunpack.c.l.b16 %v1092
  %v1179 = vunpack.c.h.b16 %v1092
  %v1180 = vunpack.c.l.b16 %v1093
  %v1181 = vunpack.c.h.b16 %v1093
  %v1182 = vunpack.c.l.b16 %v1094
  %v1183 = vunpack.c.h.b16 %v1094
  %v1184 = vunpack.c.l.b16 %v1095
  %v1185 = vunpack.c.h.b16 %v1095
  %v1186 = vunpack.c.l.b16 %v1096
  %v1187 = vunpack.c.h.b16 %v1096
  %v1188 = vunpack.c.l.b16 %v1097
  %v1189 = vunpack.c.h.b16 %v1097
  %v1190 = vunpack.c.l.b16 %v1098
  %v1191 = vunpack.c.h.b16 %v1098
  %v1192 = vunpack.c.l.b16 %v1099
  %v1193 = vunpack.c.h.b16 %v1099
  %v1194 = vunpack.c.l.b16 %v1100
  %v1195 = vunpack.c.h.b16 %v1100
  %v1196 = vunpack.c.l.b16 %v1101
  %v1197 = vunpack.c.h.b16 %v1101
  %v1198 = vpack.c.b16 %v1134, %v1134
  %v1199 = vpack.c.b16 %v1135, %v1135
  %v1200 = vpack.c.b16 %v1136, %v1136
  %v1201 = vpack.c.b16 %v1137, %v1137
  %v1202 = vpack.c.b16 %v1138, %v1138
  %v1203 = vpack.c.b16 %v1139, %v1139
  %v1204 = vpack.c.b16 %v1140, %v1140
  %v1205 = vpack.c.b16 %v1141, %v1141
  %v1206 = vpack.c.b16 %v1142, %v1142
  %v1207 = vpack.c.b16 %v1143, %v1143
  %v1208 = vpack.c.b16 %v1144, %v1144
  %v1209 = vpack.c.b16 %v1145, %v1145
  %v1210 = vpack.c.b16 %v1146, %v1146
  %v1211 = vpack.c.b16 %v1147, %v1147
  %v1212 = vpack.c.b16 %v1148, %v1148
  %v1213 = vpack.c.b16 %v1149, %v1149
  %v1214 = vpack.c.b16 %v1150, %v1150
  %v1215 = vpack.c.b16 %v1151, %v1151
  %v1216 = vpack.c.b16 %v1152, %v1152
  %v1217 = vpack.c.b16 %v1153, %v1153
  %v1218 = vpack.c.b16 %v1154, %v1154
  %v1219 = vpack.c.b16 %v1155, %v1155
  %v1220 = vpack.c.b16 %v1156, %v1156
  %v1221 = vpack.c.b16 %v1157, %v1157
  %v1222 = vpack.c.b16 %v1158, %v1158
  %v1223 = vpack.c.b16 %v1159, %v1159
  %v1224 = vpack.c.b16 %v1160, %v1160
  %v1225 = vpack.c.b16 %v1161, %v1161
  %v1226 = vpack.c.b16 %v1162, %v1162
  %v1227 = vpack.c.b16 %v1163, %v1163
  %v1228 = vpack.c.b16 %v1164, %v1164
  %v1229 = vpack.c.b16 %v1165, %v1165
  %v1230 = vpack.c.b16 %v1166, %v1166
  %v1231 = vpack.c.b16 %v1167, %v1167
  %v1232 = vpack.c.b16 %v1168, %v1168
  %v1233 = vpack.c.b16 %v1169, %v1169
  %v1234 = vpack.c.b16 %v1170, %v1170
  %v1235 = vpack.c.b16 %v1171, %v1171
  %v1236 = vpack.c.b16 %v1172, %v1172
  %v1237 = vpack.c.b16 %v1173, %v1173
  %v1238 = vpack.c.b16 %v1174, %v1174
  %v1239 = vpack.c.b16 %v1175, %v1175
  %v1240 = vpack.c.b16 %v1176, %v1176
  %v1241 = vpack.c.b16 %v1177, %v1177
  %v1242 = vpack.c.b16 %v1178, %v1178
  %v1243 = vpack.c.b16 %v1179, %v1179
  %v1244 = vpack.c.b16 %v1180, %v1180
  %v1245 = vpack.c.b16 %v1181, %v1181
  %v1246 = vpack.c.b16 %v1182, %v1182
  %v1247 = vpack.c.b16 %v1183, %v1183
  %v1248 = vpack.c.b16 %v1184, %v1184
  %v1249 = vpack.c.b16 %v1185, %v1185
  %v1250 = vpack.c.b16 %v1186, %v1186
  %v1251 = vpack.c.b16 %v1187, %v1187
  %v1252 = vpack.c.b16 %v1188, %v1188
  %v1253 = vpack.c.b16 %v1189, %v1189
  %v1254 = vpack.c.b16 %v1190, %v1190
  %v1255 = vpack.c.b16 %v1191, %v1191
  %v1256 = vpack.c.b16 %v1192, %v1192
  %v1257 = vpack.c.b16 %v1193, %v1193
  %v1258 = vpack.c.b16 %v1194, %v1194
  %v1259 = vpack.c.b16 %v1195, %v1195
  %v1260 = vpack.c.b16 %v1196, %v1196
  %v1261 = vpack.c.b16 %v1197, %v1197
  %1326 = vst [vmem:[%s4] sm:$0xf] %v1198
  %1327 = vst [vmem:[%s4 + $0x4] sm:$0xf] %v1199
  %1328 = vst [vmem:[%s4 + $0x8] sm:$0xf] %v1200
  %1329 = vst [vmem:[%s4 + $0xc] sm:$0xf] %v1201
  %1330 = vst [vmem:[%s4 + $0x10] sm:$0xf] %v1202
  %1331 = vst [vmem:[%s4 + $0x14] sm:$0xf] %v1203
  %1332 = vst [vmem:[%s4 + $0x18] sm:$0xf] %v1204
  %1333 = vst [vmem:[%s4 + $0x1c] sm:$0xf] %v1205
  %1334 = vst [vmem:[%s4 + $0x20] sm:$0xf] %v1206
  %1335 = vst [vmem:[%s4 + $0x24] sm:$0xf] %v1207
  %1336 = vst [vmem:[%s4 + $0x28] sm:$0xf] %v1208
  %1337 = vst [vmem:[%s4 + $0x2c] sm:$0xf] %v1209
  %1338 = vst [vmem:[%s4 + $0x30] sm:$0xf] %v1210
  %1339 = vst [vmem:[%s4 + $0x34] sm:$0xf] %v1211
  %1340 = vst [vmem:[%s4 + $0x38] sm:$0xf] %v1212
  %1341 = vst [vmem:[%s4 + $0x3c] sm:$0xf] %v1213
  %1342 = vst [vmem:[%s4 + $0x40] sm:$0xf] %v1214
  %1343 = vst [vmem:[%s4 + $0x44] sm:$0xf] %v1215
  %1344 = vst [vmem:[%s4 + $0x48] sm:$0xf] %v1216
  %1345 = vst [vmem:[%s4 + $0x4c] sm:$0xf] %v1217
  %1346 = vst [vmem:[%s4 + $0x50] sm:$0xf] %v1218
  %1347 = vst [vmem:[%s4 + $0x54] sm:$0xf] %v1219
  %1348 = vst [vmem:[%s4 + $0x58] sm:$0xf] %v1220
  %1349 = vst [vmem:[%s4 + $0x5c] sm:$0xf] %v1221
  %1350 = vst [vmem:[%s4 + $0x60] sm:$0xf] %v1222
  %1351 = vst [vmem:[%s4 + $0x64] sm:$0xf] %v1223
  %1352 = vst [vmem:[%s4 + $0x68] sm:$0xf] %v1224
  %1353 = vst [vmem:[%s4 + $0x6c] sm:$0xf] %v1225
  %1354 = vst [vmem:[%s4 + $0x70] sm:$0xf] %v1226
  %1355 = vst [vmem:[%s4 + $0x74] sm:$0xf] %v1227
  %1356 = vst [vmem:[%s4 + $0x78] sm:$0xf] %v1228
  %1357 = vst [vmem:[%s4 + $0x7c] sm:$0xf] %v1229
  %1358 = vst [vmem:[%s4 + $0x80] sm:$0xf] %v1230
  %1359 = vst [vmem:[%s4 + $0x84] sm:$0xf] %v1231
  %1360 = vst [vmem:[%s4 + $0x88] sm:$0xf] %v1232
  %1361 = vst [vmem:[%s4 + $0x8c] sm:$0xf] %v1233
  %1362 = vst [vmem:[%s4 + $0x90] sm:$0xf] %v1234
  %1363 = vst [vmem:[%s4 + $0x94] sm:$0xf] %v1235
  %1364 = vst [vmem:[%s4 + $0x98] sm:$0xf] %v1236
  %1365 = vst [vmem:[%s4 + $0x9c] sm:$0xf] %v1237
  %1366 = vst [vmem:[%s4 + $0xa0] sm:$0xf] %v1238
  %1367 = vst [vmem:[%s4 + $0xa4] sm:$0xf] %v1239
  %1368 = vst [vmem:[%s4 + $0xa8] sm:$0xf] %v1240
  %1369 = vst [vmem:[%s4 + $0xac] sm:$0xf] %v1241
  %1370 = vst [vmem:[%s4 + $0xb0] sm:$0xf] %v1242
  %1371 = vst [vmem:[%s4 + $0xb4] sm:$0xf] %v1243
  %1372 = vst [vmem:[%s4 + $0xb8] sm:$0xf] %v1244
  %1373 = vst [vmem:[%s4 + $0xbc] sm:$0xf] %v1245
  %1374 = vst [vmem:[%s4 + $0xc0] sm:$0xf] %v1246
  %1375 = vst [vmem:[%s4 + $0xc4] sm:$0xf] %v1247
  %1376 = vst [vmem:[%s4 + $0xc8] sm:$0xf] %v1248
  %1377 = vst [vmem:[%s4 + $0xcc] sm:$0xf] %v1249
  %1378 = vst [vmem:[%s4 + $0xd0] sm:$0xf] %v1250
  %1379 = vst [vmem:[%s4 + $0xd4] sm:$0xf] %v1251
  %1380 = vst [vmem:[%s4 + $0xd8] sm:$0xf] %v1252
  %1381 = vst [vmem:[%s4 + $0xdc] sm:$0xf] %v1253
  %1382 = vst [vmem:[%s4 + $0xe0] sm:$0xf] %v1254
  %1383 = vst [vmem:[%s4 + $0xe4] sm:$0xf] %v1255
  %1384 = vst [vmem:[%s4 + $0xe8] sm:$0xf] %v1256
  %1385 = vst [vmem:[%s4 + $0xec] sm:$0xf] %v1257
  %1386 = vst [vmem:[%s4 + $0xf0] sm:$0xf] %v1258
  %1387 = vst [vmem:[%s4 + $0xf4] sm:$0xf] %v1259
  %1388 = vst [vmem:[%s4 + $0xf8] sm:$0xf] %v1260
  %1389 = vst [vmem:[%s4 + $0xfc] sm:$0xf] %v1261
  // Predicated region
  $region18: #{discriminator_forward.4} parent=0 // pred_check
    _
  $region19: #{discriminator_forward.4} parent=0 // pred_check_branch
    %1391 = sbr.rel (0) target = $region21
  $region20: #{discriminator_forward.4} parent=0 // pred_region
    _
  $region21: #{discriminator_forward.4} parent=0 // pred_fallthru
    _
  // Predicated region
  $region22: #{discriminator_forward.4} parent=0 // pred_check
    _
  $region23: #{discriminator_forward.4} parent=0 // pred_check_branch
    %1393 = sbr.rel (0) target = $region25
  $region24: #{discriminator_forward.4} parent=0 // pred_region
    _
  $region25: #{discriminator_forward.4} parent=0 // pred_fallthru
    _

// kernel: discriminator_forward.5
$region0: #{discriminator_forward.5}
  #allocation0 [shape = 'u32[]', space=smem, size = 0x4, offset = 0x4, fixed_abs, tag = 'smem constant byte address 0x4 - core index']
  #allocation1 [shape = 'u32[144,128]{1,0:T(1,128)}', space=vmem, size = 0x12000, scoped, tag = 'internal scratch']
  %s0 = inlined_call_operand.vmem [shape: bf16[128,512], index: 0, kind: input, shape index: {}]
  %s1 = inlined_call_operand.vmem [shape: bf16[512,128], index: 1, kind: input, shape index: {}]
  %s2 = inlined_call_operand.vmem [shape: f32[1,128], index: 2, kind: input, shape index: {}]
  %s3 = inlined_call_operand.vmem [shape: f32[1,128], index: 3, kind: input, shape index: {}]
  %s4 = inlined_call_operand.vmem [shape: bf16[128,128], index: 4, kind: output, shape index: {}]
  %s5 = sld [smem:[#allocation0]]
  $region26: #{discriminator_forward.5} parent=0
    _
  %s7 = ssub.s32 1, %s5
  %s8 = scalar_select 0, %s7, %s5
  // Predicated region
  $region2: #{discriminator_forward.5} parent=0 // pred_check
    _
  $region3: #{discriminator_forward.5} parent=0 // pred_check_branch
    %10 = sbr.rel (0) target = $region5
  $region4: #{discriminator_forward.5} parent=0 // pred_region
    _
  $region5: #{discriminator_forward.5} parent=0 // pred_fallthru
    _
  // Predicated region
  $region6: #{discriminator_forward.5} parent=0 // pred_check
    _
  $region7: #{discriminator_forward.5} parent=0 // pred_check_branch
    %12 = sbr.rel (0) target = $region9
  $region8: #{discriminator_forward.5} parent=0 // pred_region
    _
  $region9: #{discriminator_forward.5} parent=0 // pred_fallthru
    _
  // Predicated region
  $region10: #{discriminator_forward.5} parent=0 // pred_check
    _
  $region11: #{discriminator_forward.5} parent=0 // pred_check_branch
    %14 = sbr.rel (0) target = $region13
  $region12: #{discriminator_forward.5} parent=0 // pred_region
    _
  $region13: #{discriminator_forward.5} parent=0 // pred_fallthru
    _
  // Predicated region
  $region14: #{discriminator_forward.5} parent=0 // pred_check
    _
  $region15: #{discriminator_forward.5} parent=0 // pred_check_branch
    %16 = sbr.rel (0) target = $region17
  $region16: #{discriminator_forward.5} parent=0 // pred_region
    _
  $region17: #{discriminator_forward.5} parent=0 // pred_fallthru
    _
  %v18 = vld [vmem:[%s0] sm:$0xff]
  %v19 = vld [vmem:[%s0 + $0x8] sm:$0xff]
  %v20 = vld [vmem:[%s0 + $0x10] sm:$0xff]
  %v21 = vld [vmem:[%s0 + $0x18] sm:$0xff]
  %v22 = vld [vmem:[%s0 + $0x20] sm:$0xff]
  %v23 = vld [vmem:[%s0 + $0x28] sm:$0xff]
  %v24 = vld [vmem:[%s0 + $0x30] sm:$0xff]
  %v25 = vld [vmem:[%s0 + $0x38] sm:$0xff]
  %v26 = vld [vmem:[%s0 + $0x40] sm:$0xff]
  %v27 = vld [vmem:[%s0 + $0x48] sm:$0xff]
  %v28 = vld [vmem:[%s0 + $0x50] sm:$0xff]
  %v29 = vld [vmem:[%s0 + $0x58] sm:$0xff]
  %v30 = vld [vmem:[%s0 + $0x60] sm:$0xff]
  %v31 = vld [vmem:[%s0 + $0x68] sm:$0xff]
  %v32 = vld [vmem:[%s0 + $0x70] sm:$0xff]
  %v33 = vld [vmem:[%s0 + $0x78] sm:$0xff]
  %v34 = vld [vmem:[%s0 + $0x80] sm:$0xff]
  %v35 = vld [vmem:[%s0 + $0x88] sm:$0xff]
  %v36 = vld [vmem:[%s0 + $0x90] sm:$0xff]
  %v37 = vld [vmem:[%s0 + $0x98] sm:$0xff]
  %v38 = vld [vmem:[%s0 + $0xa0] sm:$0xff]
  %v39 = vld [vmem:[%s0 + $0xa8] sm:$0xff]
  %v40 = vld [vmem:[%s0 + $0xb0] sm:$0xff]
  %v41 = vld [vmem:[%s0 + $0xb8] sm:$0xff]
  %v42 = vld [vmem:[%s0 + $0xc0] sm:$0xff]
  %v43 = vld [vmem:[%s0 + $0xc8] sm:$0xff]
  %v44 = vld [vmem:[%s0 + $0xd0] sm:$0xff]
  %v45 = vld [vmem:[%s0 + $0xd8] sm:$0xff]
  %v46 = vld [vmem:[%s0 + $0xe0] sm:$0xff]
  %v47 = vld [vmem:[%s0 + $0xe8] sm:$0xff]
  %v48 = vld [vmem:[%s0 + $0xf0] sm:$0xff]
  %v49 = vld [vmem:[%s0 + $0xf8] sm:$0xff]
  %v50 = vld [vmem:[%s1] sm:$0xf]
  %v51 = vld [vmem:[%s1 + $0x4] sm:$0xf]
  %v52 = vld [vmem:[%s1 + $0x8] sm:$0xf]
  %v53 = vld [vmem:[%s1 + $0xc] sm:$0xf]
  %v54 = vld [vmem:[%s1 + $0x10] sm:$0xf]
  %v55 = vld [vmem:[%s1 + $0x14] sm:$0xf]
  %v56 = vld [vmem:[%s1 + $0x18] sm:$0xf]
  %v57 = vld [vmem:[%s1 + $0x1c] sm:$0xf]
  %v58 = vld [vmem:[%s1 + $0x20] sm:$0xf]
  %v59 = vld [vmem:[%s1 + $0x24] sm:$0xf]
  %v60 = vld [vmem:[%s1 + $0x28] sm:$0xf]
  %v61 = vld [vmem:[%s1 + $0x2c] sm:$0xf]
  %v62 = vld [vmem:[%s1 + $0x30] sm:$0xf]
  %v63 = vld [vmem:[%s1 + $0x34] sm:$0xf]
  %v64 = vld [vmem:[%s1 + $0x38] sm:$0xf]
  %v65 = vld [vmem:[%s1 + $0x3c] sm:$0xf]
  %v66 = vld [vmem:[%s1 + $0x40] sm:$0xf]
  %v67 = vld [vmem:[%s1 + $0x44] sm:$0xf]
  %v68 = vld [vmem:[%s1 + $0x48] sm:$0xf]
  %v69 = vld [vmem:[%s1 + $0x4c] sm:$0xf]
  %v70 = vld [vmem:[%s1 + $0x50] sm:$0xf]
  %v71 = vld [vmem:[%s1 + $0x54] sm:$0xf]
  %v72 = vld [vmem:[%s1 + $0x58] sm:$0xf]
  %v73 = vld [vmem:[%s1 + $0x5c] sm:$0xf]
  %v74 = vld [vmem:[%s1 + $0x60] sm:$0xf]
  %v75 = vld [vmem:[%s1 + $0x64] sm:$0xf]
  %v76 = vld [vmem:[%s1 + $0x68] sm:$0xf]
  %v77 = vld [vmem:[%s1 + $0x6c] sm:$0xf]
  %v78 = vld [vmem:[%s1 + $0x70] sm:$0xf]
  %v79 = vld [vmem:[%s1 + $0x74] sm:$0xf]
  %v80 = vld [vmem:[%s1 + $0x78] sm:$0xf]
  %v81 = vld [vmem:[%s1 + $0x7c] sm:$0xf]
  %v82 = vld [vmem:[%s1 + $0x80] sm:$0xf]
  %v83 = vld [vmem:[%s1 + $0x84] sm:$0xf]
  %v84 = vld [vmem:[%s1 + $0x88] sm:$0xf]
  %v85 = vld [vmem:[%s1 + $0x8c] sm:$0xf]
  %v86 = vld [vmem:[%s1 + $0x90] sm:$0xf]
  %v87 = vld [vmem:[%s1 + $0x94] sm:$0xf]
  %v88 = vld [vmem:[%s1 + $0x98] sm:$0xf]
  %v89 = vld [vmem:[%s1 + $0x9c] sm:$0xf]
  %v90 = vld [vmem:[%s1 + $0xa0] sm:$0xf]
  %v91 = vld [vmem:[%s1 + $0xa4] sm:$0xf]
  %v92 = vld [vmem:[%s1 + $0xa8] sm:$0xf]
  %v93 = vld [vmem:[%s1 + $0xac] sm:$0xf]
  %v94 = vld [vmem:[%s1 + $0xb0] sm:$0xf]
  %v95 = vld [vmem:[%s1 + $0xb4] sm:$0xf]
  %v96 = vld [vmem:[%s1 + $0xb8] sm:$0xf]
  %v97 = vld [vmem:[%s1 + $0xbc] sm:$0xf]
  %v98 = vld [vmem:[%s1 + $0xc0] sm:$0xf]
  %v99 = vld [vmem:[%s1 + $0xc4] sm:$0xf]
  %v100 = vld [vmem:[%s1 + $0xc8] sm:$0xf]
  %v101 = vld [vmem:[%s1 + $0xcc] sm:$0xf]
  %v102 = vld [vmem:[%s1 + $0xd0] sm:$0xf]
  %v103 = vld [vmem:[%s1 + $0xd4] sm:$0xf]
  %v104 = vld [vmem:[%s1 + $0xd8] sm:$0xf]
  %v105 = vld [vmem:[%s1 + $0xdc] sm:$0xf]
  %v106 = vld [vmem:[%s1 + $0xe0] sm:$0xf]
  %v107 = vld [vmem:[%s1 + $0xe4] sm:$0xf]
  %v108 = vld [vmem:[%s1 + $0xe8] sm:$0xf]
  %v109 = vld [vmem:[%s1 + $0xec] sm:$0xf]
  %v110 = vld [vmem:[%s1 + $0xf0] sm:$0xf]
  %v111 = vld [vmem:[%s1 + $0xf4] sm:$0xf]
  %v112 = vld [vmem:[%s1 + $0xf8] sm:$0xf]
  %v113 = vld [vmem:[%s1 + $0xfc] sm:$0xf]
  %v146 = vunpack.c.l.b16 %v18
  %v147 = vunpack.c.h.b16 %v18
  %v148 = vunpack.c.l.b16 %v19
  %v149 = vunpack.c.h.b16 %v19
  %v150 = vunpack.c.l.b16 %v20
  %v151 = vunpack.c.h.b16 %v20
  %v152 = vunpack.c.l.b16 %v21
  %v153 = vunpack.c.h.b16 %v21
  %v154 = vunpack.c.l.b16 %v22
  %v155 = vunpack.c.h.b16 %v22
  %v156 = vunpack.c.l.b16 %v23
  %v157 = vunpack.c.h.b16 %v23
  %v158 = vunpack.c.l.b16 %v24
  %v159 = vunpack.c.h.b16 %v24
  %v160 = vunpack.c.l.b16 %v25
  %v161 = vunpack.c.h.b16 %v25
  %v162 = vunpack.c.l.b16 %v26
  %v163 = vunpack.c.h.b16 %v26
  %v164 = vunpack.c.l.b16 %v27
  %v165 = vunpack.c.h.b16 %v27
  %v166 = vunpack.c.l.b16 %v28
  %v167 = vunpack.c.h.b16 %v28
  %v168 = vunpack.c.l.b16 %v29
  %v169 = vunpack.c.h.b16 %v29
  %v170 = vunpack.c.l.b16 %v30
  %v171 = vunpack.c.h.b16 %v30
  %v172 = vunpack.c.l.b16 %v31
  %v173 = vunpack.c.h.b16 %v31
  %v174 = vunpack.c.l.b16 %v32
  %v175 = vunpack.c.h.b16 %v32
  %v176 = vunpack.c.l.b16 %v33
  %v177 = vunpack.c.h.b16 %v33
  %v178 = vunpack.c.l.b16 %v34
  %v179 = vunpack.c.h.b16 %v34
  %v180 = vunpack.c.l.b16 %v35
  %v181 = vunpack.c.h.b16 %v35
  %v182 = vunpack.c.l.b16 %v36
  %v183 = vunpack.c.h.b16 %v36
  %v184 = vunpack.c.l.b16 %v37
  %v185 = vunpack.c.h.b16 %v37
  %v186 = vunpack.c.l.b16 %v38
  %v187 = vunpack.c.h.b16 %v38
  %v188 = vunpack.c.l.b16 %v39
  %v189 = vunpack.c.h.b16 %v39
  %v190 = vunpack.c.l.b16 %v40
  %v191 = vunpack.c.h.b16 %v40
  %v192 = vunpack.c.l.b16 %v41
  %v193 = vunpack.c.h.b16 %v41
  %v194 = vunpack.c.l.b16 %v42
  %v195 = vunpack.c.h.b16 %v42
  %v196 = vunpack.c.l.b16 %v43
  %v197 = vunpack.c.h.b16 %v43
  %v198 = vunpack.c.l.b16 %v44
  %v199 = vunpack.c.h.b16 %v44
  %v200 = vunpack.c.l.b16 %v45
  %v201 = vunpack.c.h.b16 %v45
  %v202 = vunpack.c.l.b16 %v46
  %v203 = vunpack.c.h.b16 %v46
  %v204 = vunpack.c.l.b16 %v47
  %v205 = vunpack.c.h.b16 %v47
  %v206 = vunpack.c.l.b16 %v48
  %v207 = vunpack.c.h.b16 %v48
  %v208 = vunpack.c.l.b16 %v49
  %v209 = vunpack.c.h.b16 %v49
  %v210 = vpack.c.b16 %v150, %v146
  %v211 = vpack.c.b16 %v151, %v147
  %v212 = vpack.c.b16 %v152, %v148
  %v213 = vpack.c.b16 %v153, %v149
  %v214 = vpack.c.b16 %v158, %v154
  %v215 = vpack.c.b16 %v159, %v155
  %v216 = vpack.c.b16 %v160, %v156
  %v217 = vpack.c.b16 %v161, %v157
  %v218 = vpack.c.b16 %v166, %v162
  %v219 = vpack.c.b16 %v167, %v163
  %v220 = vpack.c.b16 %v168, %v164
  %v221 = vpack.c.b16 %v169, %v165
  %v222 = vpack.c.b16 %v174, %v170
  %v223 = vpack.c.b16 %v175, %v171
  %v224 = vpack.c.b16 %v176, %v172
  %v225 = vpack.c.b16 %v177, %v173
  %v226 = vpack.c.b16 %v182, %v178
  %v227 = vpack.c.b16 %v183, %v179
  %v228 = vpack.c.b16 %v184, %v180
  %v229 = vpack.c.b16 %v185, %v181
  %v230 = vpack.c.b16 %v190, %v186
  %v231 = vpack.c.b16 %v191, %v187
  %v232 = vpack.c.b16 %v192, %v188
  %v233 = vpack.c.b16 %v193, %v189
  %v234 = vpack.c.b16 %v198, %v194
  %v235 = vpack.c.b16 %v199, %v195
  %v236 = vpack.c.b16 %v200, %v196
  %v237 = vpack.c.b16 %v201, %v197
  %v238 = vpack.c.b16 %v206, %v202
  %v239 = vpack.c.b16 %v207, %v203
  %v240 = vpack.c.b16 %v208, %v204
  %v241 = vpack.c.b16 %v209, %v205
  %v338 = vunpack.c.l.b16 %v50
  %v339 = vunpack.c.l.b16 %v51
  %v340 = vunpack.c.l.b16 %v52
  %v341 = vunpack.c.l.b16 %v53
  %v342 = vunpack.c.l.b16 %v54
  %v343 = vunpack.c.l.b16 %v55
  %v344 = vunpack.c.l.b16 %v56
  %v345 = vunpack.c.l.b16 %v57
  %v346 = vunpack.c.l.b16 %v58
  %v347 = vunpack.c.l.b16 %v59
  %v348 = vunpack.c.l.b16 %v60
  %v349 = vunpack.c.l.b16 %v61
  %v350 = vunpack.c.l.b16 %v62
  %v351 = vunpack.c.l.b16 %v63
  %v352 = vunpack.c.l.b16 %v64
  %v353 = vunpack.c.l.b16 %v65
  %v354 = vunpack.c.l.b16 %v66
  %v355 = vunpack.c.l.b16 %v67
  %v356 = vunpack.c.l.b16 %v68
  %v357 = vunpack.c.l.b16 %v69
  %v358 = vunpack.c.l.b16 %v70
  %v359 = vunpack.c.l.b16 %v71
  %v360 = vunpack.c.l.b16 %v72
  %v361 = vunpack.c.l.b16 %v73
  %v362 = vunpack.c.l.b16 %v74
  %v363 = vunpack.c.l.b16 %v75
  %v364 = vunpack.c.l.b16 %v76
  %v365 = vunpack.c.l.b16 %v77
  %v366 = vunpack.c.l.b16 %v78
  %v367 = vunpack.c.l.b16 %v79
  %v368 = vunpack.c.l.b16 %v80
  %v369 = vunpack.c.l.b16 %v81
  %v370 = vunpack.c.l.b16 %v82
  %v371 = vunpack.c.l.b16 %v83
  %v372 = vunpack.c.l.b16 %v84
  %v373 = vunpack.c.l.b16 %v85
  %v374 = vunpack.c.l.b16 %v86
  %v375 = vunpack.c.l.b16 %v87
  %v376 = vunpack.c.l.b16 %v88
  %v377 = vunpack.c.l.b16 %v89
  %v378 = vunpack.c.l.b16 %v90
  %v379 = vunpack.c.l.b16 %v91
  %v380 = vunpack.c.l.b16 %v92
  %v381 = vunpack.c.l.b16 %v93
  %v382 = vunpack.c.l.b16 %v94
  %v383 = vunpack.c.l.b16 %v95
  %v384 = vunpack.c.l.b16 %v96
  %v385 = vunpack.c.l.b16 %v97
  %v386 = vunpack.c.l.b16 %v98
  %v387 = vunpack.c.l.b16 %v99
  %v388 = vunpack.c.l.b16 %v100
  %v389 = vunpack.c.l.b16 %v101
  %v390 = vunpack.c.l.b16 %v102
  %v391 = vunpack.c.l.b16 %v103
  %v392 = vunpack.c.l.b16 %v104
  %v393 = vunpack.c.l.b16 %v105
  %v394 = vunpack.c.l.b16 %v106
  %v395 = vunpack.c.l.b16 %v107
  %v396 = vunpack.c.l.b16 %v108
  %v397 = vunpack.c.l.b16 %v109
  %v398 = vunpack.c.l.b16 %v110
  %v399 = vunpack.c.l.b16 %v111
  %v400 = vunpack.c.l.b16 %v112
  %v401 = vunpack.c.l.b16 %v113
  %v402 = vpack.c.b16 %v339, %v338
  %v403 = vpack.c.b16 %v341, %v340
  %v404 = vpack.c.b16 %v343, %v342
  %v405 = vpack.c.b16 %v345, %v344
  %v406 = vpack.c.b16 %v347, %v346
  %v407 = vpack.c.b16 %v349, %v348
  %v408 = vpack.c.b16 %v351, %v350
  %v409 = vpack.c.b16 %v353, %v352
  %v410 = vpack.c.b16 %v355, %v354
  %v411 = vpack.c.b16 %v357, %v356
  %v412 = vpack.c.b16 %v359, %v358
  %v413 = vpack.c.b16 %v361, %v360
  %v414 = vpack.c.b16 %v363, %v362
  %v415 = vpack.c.b16 %v365, %v364
  %v416 = vpack.c.b16 %v367, %v366
  %v417 = vpack.c.b16 %v369, %v368
  %v418 = vpack.c.b16 %v371, %v370
  %v419 = vpack.c.b16 %v373, %v372
  %v420 = vpack.c.b16 %v375, %v374
  %v421 = vpack.c.b16 %v377, %v376
  %v422 = vpack.c.b16 %v379, %v378
  %v423 = vpack.c.b16 %v381, %v380
  %v424 = vpack.c.b16 %v383, %v382
  %v425 = vpack.c.b16 %v385, %v384
  %v426 = vpack.c.b16 %v387, %v386
  %v427 = vpack.c.b16 %v389, %v388
  %v428 = vpack.c.b16 %v391, %v390
  %v429 = vpack.c.b16 %v393, %v392
  %v430 = vpack.c.b16 %v395, %v394
  %v431 = vpack.c.b16 %v397, %v396
  %v432 = vpack.c.b16 %v399, %v398
  %v433 = vpack.c.b16 %v401, %v400
  %466 = vmatprep.subr.bf16.mxu0 0
  %467 = vmatpush1.bf16.msra.mxu0 %v402
  %468 = vmatprep.subr.bf16.mxu0 0
  %469 = vmatpush1.bf16.msra.mxu0 %v403
  %470 = vmatprep.subr.bf16.mxu0 0
  %471 = vmatpush1.bf16.msra.mxu0 %v404
  %472 = vmatprep.subr.bf16.mxu0 0
  %473 = vmatpush1.bf16.msra.mxu0 %v405
  %474 = vmatprep.subr.bf16.mxu0 0
  %475 = vmatpush1.bf16.msra.mxu0 %v406
  %476 = vmatprep.subr.bf16.mxu0 0
  %477 = vmatpush1.bf16.msra.mxu0 %v407
  %478 = vmatprep.subr.bf16.mxu0 0
  %479 = vmatpush1.bf16.msra.mxu0 %v408
  %480 = vmatprep.subr.bf16.mxu0 0
  %481 = vmatpush1.bf16.msra.mxu0 %v409
  %482 = vmatprep.subr.bf16.mxu0 0
  %483 = vmatpush1.bf16.msra.mxu0 %v410
  %484 = vmatprep.subr.bf16.mxu0 0
  %485 = vmatpush1.bf16.msra.mxu0 %v411
  %486 = vmatprep.subr.bf16.mxu0 0
  %487 = vmatpush1.bf16.msra.mxu0 %v412
  %488 = vmatprep.subr.bf16.mxu0 0
  %489 = vmatpush1.bf16.msra.mxu0 %v413
  %490 = vmatprep.subr.bf16.mxu0 0
  %491 = vmatpush1.bf16.msra.mxu0 %v414
  %492 = vmatprep.subr.bf16.mxu0 0
  %493 = vmatpush1.bf16.msra.mxu0 %v415
  %494 = vmatprep.subr.bf16.mxu0 0
  %495 = vmatpush1.bf16.msra.mxu0 %v416
  %496 = vmatprep.subr.bf16.mxu0 0
  %497 = vmatpush1.bf16.msra.mxu0 %v417
  %498 = vmatprep.mubr.bf16.mxu0 %v211
  %499 = vmatmul.mubr.bf16.gmra.mrb[0].mxu0 %v210
  %v500 = vpop.f32.mrb[0].mxu0
  %v501 = vadd.f32 0.0, %v500
  %v502 = vpop.f32.mrb[0].mxu0
  %v503 = vpop.f32.mrb[0].mxu0
  %v504 = vadd.f32 0.0, %v503
  %v505 = vpop.f32.mrb[0].mxu0
  %506 = vmatprep.mubr.bf16.mxu0 %v215
  %507 = vmatmul.mubr.bf16.gmra.mrb[0].mxu0 %v214
  %v508 = vpop.f32.mrb[0].mxu0
  %v509 = vadd.f32 0.0, %v508
  %v510 = vpop.f32.mrb[0].mxu0
  %v511 = vpop.f32.mrb[0].mxu0
  %v512 = vadd.f32 0.0, %v511
  %v513 = vpop.f32.mrb[0].mxu0
  %514 = vmatprep.mubr.bf16.mxu0 %v219
  %515 = vmatmul.mubr.bf16.gmra.mrb[0].mxu0 %v218
  %v516 = vpop.f32.mrb[0].mxu0
  %v517 = vadd.f32 0.0, %v516
  %v518 = vpop.f32.mrb[0].mxu0
  %v519 = vpop.f32.mrb[0].mxu0
  %v520 = vadd.f32 0.0, %v519
  %v521 = vpop.f32.mrb[0].mxu0
  %522 = vmatprep.mubr.bf16.mxu0 %v223
  %523 = vmatmul.mubr.bf16.gmra.mrb[0].mxu0 %v222
  %v524 = vpop.f32.mrb[0].mxu0
  %v525 = vadd.f32 0.0, %v524
  %v526 = vpop.f32.mrb[0].mxu0
  %v527 = vpop.f32.mrb[0].mxu0
  %v528 = vadd.f32 0.0, %v527
  %v529 = vpop.f32.mrb[0].mxu0
  %530 = vmatprep.mubr.bf16.mxu0 %v227
  %531 = vmatmul.mubr.bf16.gmra.mrb[0].mxu0 %v226
  %v532 = vpop.f32.mrb[0].mxu0
  %v533 = vadd.f32 0.0, %v532
  %v534 = vpop.f32.mrb[0].mxu0
  %v535 = vpop.f32.mrb[0].mxu0
  %v536 = vadd.f32 0.0, %v535
  %v537 = vpop.f32.mrb[0].mxu0
  %538 = vmatprep.mubr.bf16.mxu0 %v231
  %539 = vmatmul.mubr.bf16.gmra.mrb[0].mxu0 %v230
  %v540 = vpop.f32.mrb[0].mxu0
  %v541 = vadd.f32 0.0, %v540
  %v542 = vpop.f32.mrb[0].mxu0
  %v543 = vpop.f32.mrb[0].mxu0
  %v544 = vadd.f32 0.0, %v543
  %v545 = vpop.f32.mrb[0].mxu0
  %546 = vmatprep.mubr.bf16.mxu0 %v235
  %547 = vmatmul.mubr.bf16.gmra.mrb[0].mxu0 %v234
  %v548 = vpop.f32.mrb[0].mxu0
  %v549 = vadd.f32 0.0, %v548
  %v550 = vpop.f32.mrb[0].mxu0
  %v551 = vpop.f32.mrb[0].mxu0
  %v552 = vadd.f32 0.0, %v551
  %v553 = vpop.f32.mrb[0].mxu0
  %554 = vmatprep.mubr.bf16.mxu0 %v239
  %555 = vmatmul.mubr.bf16.gmra.mrb[0].mxu0 %v238
  %v556 = vpop.f32.mrb[0].mxu0
  %v557 = vadd.f32 0.0, %v556
  %v558 = vpop.f32.mrb[0].mxu0
  %v559 = vpop.f32.mrb[0].mxu0
  %v560 = vadd.f32 0.0, %v559
  %v561 = vpop.f32.mrb[0].mxu0
  %562 = vdwg.mxu0
  %563 = vmatprep.subr.bf16.mxu0 0
  %564 = vmatpush1.bf16.msra.mxu0 %v418
  %565 = vmatprep.subr.bf16.mxu0 0
  %566 = vmatpush1.bf16.msra.mxu0 %v419
  %567 = vmatprep.subr.bf16.mxu0 0
  %568 = vmatpush1.bf16.msra.mxu0 %v420
  %569 = vmatprep.subr.bf16.mxu0 0
  %570 = vmatpush1.bf16.msra.mxu0 %v421
  %571 = vmatprep.subr.bf16.mxu0 0
  %572 = vmatpush1.bf16.msra.mxu0 %v422
  %573 = vmatprep.subr.bf16.mxu0 0
  %574 = vmatpush1.bf16.msra.mxu0 %v423
  %575 = vmatprep.subr.bf16.mxu0 0
  %576 = vmatpush1.bf16.msra.mxu0 %v424
  %577 = vmatprep.subr.bf16.mxu0 0
  %578 = vmatpush1.bf16.msra.mxu0 %v425
  %579 = vmatprep.subr.bf16.mxu0 0
  %580 = vmatpush1.bf16.msra.mxu0 %v426
  %581 = vmatprep.subr.bf16.mxu0 0
  %582 = vmatpush1.bf16.msra.mxu0 %v427
  %583 = vmatprep.subr.bf16.mxu0 0
  %584 = vmatpush1.bf16.msra.mxu0 %v428
  %585 = vmatprep.subr.bf16.mxu0 0
  %586 = vmatpush1.bf16.msra.mxu0 %v429
  %587 = vmatprep.subr.bf16.mxu0 0
  %588 = vmatpush1.bf16.msra.mxu0 %v430
  %589 = vmatprep.subr.bf16.mxu0 0
  %590 = vmatpush1.bf16.msra.mxu0 %v431
  %591 = vmatprep.subr.bf16.mxu0 0
  %592 = vmatpush1.bf16.msra.mxu0 %v432
  %593 = vmatprep.subr.bf16.mxu0 0
  %594 = vmatpush1.bf16.msra.mxu0 %v433
  %595 = vmatprep.mubr.bf16.mxu0 %v213
  %596 = vmatmul.mubr.bf16.gmra.mrb[0].mxu0 %v212
  %v597 = vpop.f32.mrb[0].mxu0
  %v598 = vadd.f32 %v501, %v597
  %v599 = vpop.f32.mrb[0].mxu0
  %v600 = vpop.f32.mrb[0].mxu0
  %v601 = vadd.f32 %v504, %v600
  %v602 = vpop.f32.mrb[0].mxu0
  %603 = vmatprep.mubr.bf16.mxu0 %v217
  %604 = vmatmul.mubr.bf16.gmra.mrb[0].mxu0 %v216
  %v605 = vpop.f32.mrb[0].mxu0
  %v606 = vadd.f32 %v509, %v605
  %v607 = vpop.f32.mrb[0].mxu0
  %v608 = vpop.f32.mrb[0].mxu0
  %v609 = vadd.f32 %v512, %v608
  %v610 = vpop.f32.mrb[0].mxu0
  %611 = vmatprep.mubr.bf16.mxu0 %v221
  %612 = vmatmul.mubr.bf16.gmra.mrb[0].mxu0 %v220
  %v613 = vpop.f32.mrb[0].mxu0
  %v614 = vadd.f32 %v517, %v613
  %v615 = vpop.f32.mrb[0].mxu0
  %v616 = vpop.f32.mrb[0].mxu0
  %v617 = vadd.f32 %v520, %v616
  %v618 = vpop.f32.mrb[0].mxu0
  %619 = vmatprep.mubr.bf16.mxu0 %v225
  %620 = vmatmul.mubr.bf16.gmra.mrb[0].mxu0 %v224
  %v621 = vpop.f32.mrb[0].mxu0
  %v622 = vadd.f32 %v525, %v621
  %v623 = vpop.f32.mrb[0].mxu0
  %v624 = vpop.f32.mrb[0].mxu0
  %v625 = vadd.f32 %v528, %v624
  %v626 = vpop.f32.mrb[0].mxu0
  %627 = vmatprep.mubr.bf16.mxu0 %v229
  %628 = vmatmul.mubr.bf16.gmra.mrb[0].mxu0 %v228
  %v629 = vpop.f32.mrb[0].mxu0
  %v630 = vadd.f32 %v533, %v629
  %v631 = vpop.f32.mrb[0].mxu0
  %v632 = vpop.f32.mrb[0].mxu0
  %v633 = vadd.f32 %v536, %v632
  %v634 = vpop.f32.mrb[0].mxu0
  %635 = vmatprep.mubr.bf16.mxu0 %v233
  %636 = vmatmul.mubr.bf16.gmra.mrb[0].mxu0 %v232
  %v637 = vpop.f32.mrb[0].mxu0
  %v638 = vadd.f32 %v541, %v637
  %v639 = vpop.f32.mrb[0].mxu0
  %v640 = vpop.f32.mrb[0].mxu0
  %v641 = vadd.f32 %v544, %v640
  %v642 = vpop.f32.mrb[0].mxu0
  %643 = vmatprep.mubr.bf16.mxu0 %v237
  %644 = vmatmul.mubr.bf16.gmra.mrb[0].mxu0 %v236
  %v645 = vpop.f32.mrb[0].mxu0
  %v646 = vadd.f32 %v549, %v645
  %v647 = vpop.f32.mrb[0].mxu0
  %v648 = vpop.f32.mrb[0].mxu0
  %v649 = vadd.f32 %v552, %v648
  %v650 = vpop.f32.mrb[0].mxu0
  %651 = vmatprep.mubr.bf16.mxu0 %v241
  %652 = vmatmul.mubr.bf16.gmra.mrb[0].mxu0 %v240
  %v653 = vpop.f32.mrb[0].mxu0
  %v654 = vadd.f32 %v557, %v653
  %v655 = vpop.f32.mrb[0].mxu0
  %v656 = vpop.f32.mrb[0].mxu0
  %v657 = vadd.f32 %v560, %v656
  %v658 = vpop.f32.mrb[0].mxu0
  %659 = vdwg.mxu0
  %v660 = vadd.f32 %v598, %v601
  %v661 = vadd.f32 %v660, %v606
  %v662 = vadd.f32 %v661, %v609
  %v663 = vadd.f32 %v662, %v614
  %v664 = vadd.f32 %v663, %v617
  %v665 = vadd.f32 %v664, %v622
  %v666 = vadd.f32 %v665, %v625
  %v667 = vadd.f32 %v666, %v630
  %v668 = vadd.f32 %v667, %v633
  %v669 = vadd.f32 %v668, %v638
  %v670 = vadd.f32 %v669, %v641
  %v671 = vadd.f32 %v670, %v646
  %v672 = vadd.f32 %v671, %v649
  %v673 = vadd.f32 %v672, %v654
  %v674 = vadd.f32 %v673, %v657
  %v675 = vrot.slane %v674, 4
  %v676 = vadd.f32 %v674, %v675
  %v677 = vrot.slane %v676, 2
  %v678 = vadd.f32 %v676, %v677
  %v679 = vrot.slane %v678, 1
  %v680 = vadd.f32 %v678, %v679
  %v681 = vmul.f32 %v680, 0.0078125
  %v682 = vmul.f32 %v598, %v598
  %v683 = vmul.f32 %v601, %v601
  %v684 = vmul.f32 %v606, %v606
  %v685 = vmul.f32 %v609, %v609
  %v686 = vmul.f32 %v614, %v614
  %v687 = vmul.f32 %v617, %v617
  %v688 = vmul.f32 %v622, %v622
  %v689 = vmul.f32 %v625, %v625
  %v690 = vmul.f32 %v630, %v630
  %v691 = vmul.f32 %v633, %v633
  %v692 = vmul.f32 %v638, %v638
  %v693 = vmul.f32 %v641, %v641
  %v694 = vmul.f32 %v646, %v646
  %v695 = vmul.f32 %v649, %v649
  %v696 = vmul.f32 %v654, %v654
  %v697 = vmul.f32 %v657, %v657
  %v698 = vadd.f32 %v682, %v683
  %v699 = vadd.f32 %v698, %v684
  %v700 = vadd.f32 %v699, %v685
  %v701 = vadd.f32 %v700, %v686
  %v702 = vadd.f32 %v701, %v687
  %v703 = vadd.f32 %v702, %v688
  %v704 = vadd.f32 %v703, %v689
  %v705 = vadd.f32 %v704, %v690
  %v706 = vadd.f32 %v705, %v691
  %v707 = vadd.f32 %v706, %v692
  %v708 = vadd.f32 %v707, %v693
  %v709 = vadd.f32 %v708, %v694
  %v710 = vadd.f32 %v709, %v695
  %v711 = vadd.f32 %v710, %v696
  %v712 = vadd.f32 %v711, %v697
  %v713 = vrot.slane %v712, 4
  %v714 = vadd.f32 %v712, %v713
  %v715 = vrot.slane %v714, 2
  %v716 = vadd.f32 %v714, %v715
  %v717 = vrot.slane %v716, 1
  %v718 = vadd.f32 %v716, %v717
  %v719 = vmul.f32 %v718, 0.0078125
  %v720 = vmul.f32 %v681, %v681
  %v721 = vsub.f32 %v719, %v720
  %v722 = vmax.f32 %v721, 0.0
  %v723 = vld [vmem:[%s2] sm:$0x1]
  %v724 = vadd.f32 %v722, 1e-05
  %v725 = vrsqrt.pop %v724
  %v726 = vmul.f32 %v723, %v725
  %v727 = vld [vmem:[%s3] sm:$0x1]
  %v728 = vmul.f32 %v681, %v726
  %v729 = vsub.f32 %v727, %v728
  %v731 = vlaneseq
  %v732 = vshrl.u32 %v731, 7
  %v733 = vsub.s32 0, %v732
  %v734 = vrot.slane %v726, %v733
  %v736 = vmul.f32 %v598, %v734
  %v737 = vmul.f32 %v601, %v734
  %v738 = vmul.f32 %v606, %v734
  %v739 = vmul.f32 %v609, %v734
  %v740 = vmul.f32 %v614, %v734
  %v741 = vmul.f32 %v617, %v734
  %v742 = vmul.f32 %v622, %v734
  %v743 = vmul.f32 %v625, %v734
  %v744 = vmul.f32 %v630, %v734
  %v745 = vmul.f32 %v633, %v734
  %v746 = vmul.f32 %v638, %v734
  %v747 = vmul.f32 %v641, %v734
  %v748 = vmul.f32 %v646, %v734
  %v749 = vmul.f32 %v649, %v734
  %v750 = vmul.f32 %v654, %v734
  %v751 = vmul.f32 %v657, %v734
  %v753 = vlaneseq
  %v754 = vshrl.u32 %v753, 7
  %v755 = vsub.s32 0, %v754
  %v756 = vrot.slane %v729, %v755
  %v758 = vadd.f32 %v736, %v756
  %v759 = vadd.f32 %v737, %v756
  %v760 = vadd.f32 %v738, %v756
  %v761 = vadd.f32 %v739, %v756
  %v762 = vadd.f32 %v740, %v756
  %v763 = vadd.f32 %v741, %v756
  %v764 = vadd.f32 %v742, %v756
  %v765 = vadd.f32 %v743, %v756
  %v766 = vadd.f32 %v744, %v756
  %v767 = vadd.f32 %v745, %v756
  %v768 = vadd.f32 %v746, %v756
  %v769 = vadd.f32 %v747, %v756
  %v770 = vadd.f32 %v748, %v756
  %v771 = vadd.f32 %v749, %v756
  %v772 = vadd.f32 %v750, %v756
  %v773 = vadd.f32 %v751, %v756
  %v774 = vmax.f32 %v758, 0.0
  %v775 = vmax.f32 %v759, 0.0
  %v776 = vmax.f32 %v760, 0.0
  %v777 = vmax.f32 %v761, 0.0
  %v778 = vmax.f32 %v762, 0.0
  %v779 = vmax.f32 %v763, 0.0
  %v780 = vmax.f32 %v764, 0.0
  %v781 = vmax.f32 %v765, 0.0
  %v782 = vmax.f32 %v766, 0.0
  %v783 = vmax.f32 %v767, 0.0
  %v784 = vmax.f32 %v768, 0.0
  %v785 = vmax.f32 %v769, 0.0
  %v786 = vmax.f32 %v770, 0.0
  %v787 = vmax.f32 %v771, 0.0
  %v788 = vmax.f32 %v772, 0.0
  %v789 = vmax.f32 %v773, 0.0
  %v790 = vpack.c.bf16 %v775, %v774
  %v791 = vpack.c.bf16 %v777, %v776
  %v792 = vpack.c.bf16 %v779, %v778
  %v793 = vpack.c.bf16 %v781, %v780
  %v794 = vpack.c.bf16 %v783, %v782
  %v795 = vpack.c.bf16 %v785, %v784
  %v796 = vpack.c.bf16 %v787, %v786
  %v797 = vpack.c.bf16 %v789, %v788
  %v806 = vunpack.c.l.b16 %v790
  %v807 = vunpack.c.h.b16 %v790
  %v808 = vunpack.c.l.b16 %v791
  %v809 = vunpack.c.h.b16 %v791
  %v810 = vunpack.c.l.b16 %v792
  %v811 = vunpack.c.h.b16 %v792
  %v812 = vunpack.c.l.b16 %v793
  %v813 = vunpack.c.h.b16 %v793
  %v814 = vunpack.c.l.b16 %v794
  %v815 = vunpack.c.h.b16 %v794
  %v816 = vunpack.c.l.b16 %v795
  %v817 = vunpack.c.h.b16 %v795
  %v818 = vunpack.c.l.b16 %v796
  %v819 = vunpack.c.h.b16 %v796
  %v820 = vunpack.c.l.b16 %v797
  %v821 = vunpack.c.h.b16 %v797
  %v822 = vpack.c.b16 %v806, %v806
  %v823 = vpack.c.b16 %v807, %v807
  %v824 = vpack.c.b16 %v808, %v808
  %v825 = vpack.c.b16 %v809, %v809
  %v826 = vpack.c.b16 %v810, %v810
  %v827 = vpack.c.b16 %v811, %v811
  %v828 = vpack.c.b16 %v812, %v812
  %v829 = vpack.c.b16 %v813, %v813
  %v830 = vpack.c.b16 %v814, %v814
  %v831 = vpack.c.b16 %v815, %v815
  %v832 = vpack.c.b16 %v816, %v816
  %v833 = vpack.c.b16 %v817, %v817
  %v834 = vpack.c.b16 %v818, %v818
  %v835 = vpack.c.b16 %v819, %v819
  %v836 = vpack.c.b16 %v820, %v820
  %v837 = vpack.c.b16 %v821, %v821
  %854 = vst [vmem:[%s4] sm:$0xf] %v822
  %855 = vst [vmem:[%s4 + $0x4] sm:$0xf] %v823
  %856 = vst [vmem:[%s4 + $0x8] sm:$0xf] %v824
  %857 = vst [vmem:[%s4 + $0xc] sm:$0xf] %v825
  %858 = vst [vmem:[%s4 + $0x10] sm:$0xf] %v826
  %859 = vst [vmem:[%s4 + $0x14] sm:$0xf] %v827
  %860 = vst [vmem:[%s4 + $0x18] sm:$0xf] %v828
  %861 = vst [vmem:[%s4 + $0x1c] sm:$0xf] %v829
  %862 = vst [vmem:[%s4 + $0x20] sm:$0xf] %v830
  %863 = vst [vmem:[%s4 + $0x24] sm:$0xf] %v831
  %864 = vst [vmem:[%s4 + $0x28] sm:$0xf] %v832
  %865 = vst [vmem:[%s4 + $0x2c] sm:$0xf] %v833
  %866 = vst [vmem:[%s4 + $0x30] sm:$0xf] %v834
  %867 = vst [vmem:[%s4 + $0x34] sm:$0xf] %v835
  %868 = vst [vmem:[%s4 + $0x38] sm:$0xf] %v836
  %869 = vst [vmem:[%s4 + $0x3c] sm:$0xf] %v837
  // Predicated region
  $region18: #{discriminator_forward.5} parent=0 // pred_check
    _
  $region19: #{discriminator_forward.5} parent=0 // pred_check_branch
    %871 = sbr.rel (0) target = $region21
  $region20: #{discriminator_forward.5} parent=0 // pred_region
    _
  $region21: #{discriminator_forward.5} parent=0 // pred_fallthru
    _
  // Predicated region
  $region22: #{discriminator_forward.5} parent=0 // pred_check
    _
  $region23: #{discriminator_forward.5} parent=0 // pred_check_branch
    %873 = sbr.rel (0) target = $region25
  $region24: #{discriminator_forward.5} parent=0 // pred_region
    _
  $region25: #{discriminator_forward.5} parent=0 // pred_fallthru
    _

// kernel: discriminator_forward.6
$region0: #{discriminator_forward.6}
  #allocation0 [shape = 'u32[]', space=smem, size = 0x4, offset = 0x4, fixed_abs, tag = 'smem constant byte address 0x4 - core index']
  #allocation1 [shape = 'u32[144,128]{1,0:T(1,128)}', space=vmem, size = 0x12000, scoped, tag = 'internal scratch']
  %s0 = inlined_call_operand.vmem [shape: bf16[32,1024], index: 0, kind: input, shape index: {}]
  %s1 = inlined_call_operand.vmem [shape: bf16[1024,128], index: 1, kind: input, shape index: {}]
  %s2 = inlined_call_operand.vmem [shape: f32[1,128], index: 2, kind: input, shape index: {}]
  %s3 = inlined_call_operand.vmem [shape: f32[1,128], index: 3, kind: input, shape index: {}]
  %s4 = inlined_call_operand.vmem [shape: bf16[32,128], index: 4, kind: output, shape index: {}]
  %s5 = sld [smem:[#allocation0]]
  $region26: #{discriminator_forward.6} parent=0
    _
  %s7 = ssub.s32 1, %s5
  %s8 = scalar_select 0, %s7, %s5
  // Predicated region
  $region2: #{discriminator_forward.6} parent=0 // pred_check
    _
  $region3: #{discriminator_forward.6} parent=0 // pred_check_branch
    %10 = sbr.rel (0) target = $region5
  $region4: #{discriminator_forward.6} parent=0 // pred_region
    _
  $region5: #{discriminator_forward.6} parent=0 // pred_fallthru
    _
  // Predicated region
  $region6: #{discriminator_forward.6} parent=0 // pred_check
    _
  $region7: #{discriminator_forward.6} parent=0 // pred_check_branch
    %12 = sbr.rel (0) target = $region9
  $region8: #{discriminator_forward.6} parent=0 // pred_region
    _
  $region9: #{discriminator_forward.6} parent=0 // pred_fallthru
    _
  // Predicated region
  $region10: #{discriminator_forward.6} parent=0 // pred_check
    _
  $region11: #{discriminator_forward.6} parent=0 // pred_check_branch
    %14 = sbr.rel (0) target = $region13
  $region12: #{discriminator_forward.6} parent=0 // pred_region
    _
  $region13: #{discriminator_forward.6} parent=0 // pred_fallthru
    _
  // Predicated region
  $region14: #{discriminator_forward.6} parent=0 // pred_check
    _
  $region15: #{discriminator_forward.6} parent=0 // pred_check_branch
    %16 = sbr.rel (0) target = $region17
  $region16: #{discriminator_forward.6} parent=0 // pred_region
    _
  $region17: #{discriminator_forward.6} parent=0 // pred_fallthru
    _
  %v18 = vld [vmem:[%s0] sm:$0xff]
  %v19 = vld [vmem:[%s0 + $0x8] sm:$0xff]
  %v20 = vld [vmem:[%s0 + $0x10] sm:$0xff]
  %v21 = vld [vmem:[%s0 + $0x18] sm:$0xff]
  %v22 = vld [vmem:[%s0 + $0x20] sm:$0xff]
  %v23 = vld [vmem:[%s0 + $0x28] sm:$0xff]
  %v24 = vld [vmem:[%s0 + $0x30] sm:$0xff]
  %v25 = vld [vmem:[%s0 + $0x38] sm:$0xff]
  %v26 = vld [vmem:[%s0 + $0x40] sm:$0xff]
  %v27 = vld [vmem:[%s0 + $0x48] sm:$0xff]
  %v28 = vld [vmem:[%s0 + $0x50] sm:$0xff]
  %v29 = vld [vmem:[%s0 + $0x58] sm:$0xff]
  %v30 = vld [vmem:[%s0 + $0x60] sm:$0xff]
  %v31 = vld [vmem:[%s0 + $0x68] sm:$0xff]
  %v32 = vld [vmem:[%s0 + $0x70] sm:$0xff]
  %v33 = vld [vmem:[%s0 + $0x78] sm:$0xff]
  %v34 = vld [vmem:[%s1] sm:$0xf]
  %v35 = vld [vmem:[%s1 + $0x4] sm:$0xf]
  %v36 = vld [vmem:[%s1 + $0x8] sm:$0xf]
  %v37 = vld [vmem:[%s1 + $0xc] sm:$0xf]
  %v38 = vld [vmem:[%s1 + $0x10] sm:$0xf]
  %v39 = vld [vmem:[%s1 + $0x14] sm:$0xf]
  %v40 = vld [vmem:[%s1 + $0x18] sm:$0xf]
  %v41 = vld [vmem:[%s1 + $0x1c] sm:$0xf]
  %v42 = vld [vmem:[%s1 + $0x20] sm:$0xf]
  %v43 = vld [vmem:[%s1 + $0x24] sm:$0xf]
  %v44 = vld [vmem:[%s1 + $0x28] sm:$0xf]
  %v45 = vld [vmem:[%s1 + $0x2c] sm:$0xf]
  %v46 = vld [vmem:[%s1 + $0x30] sm:$0xf]
  %v47 = vld [vmem:[%s1 + $0x34] sm:$0xf]
  %v48 = vld [vmem:[%s1 + $0x38] sm:$0xf]
  %v49 = vld [vmem:[%s1 + $0x3c] sm:$0xf]
  %v50 = vld [vmem:[%s1 + $0x40] sm:$0xf]
  %v51 = vld [vmem:[%s1 + $0x44] sm:$0xf]
  %v52 = vld [vmem:[%s1 + $0x48] sm:$0xf]
  %v53 = vld [vmem:[%s1 + $0x4c] sm:$0xf]
  %v54 = vld [vmem:[%s1 + $0x50] sm:$0xf]
  %v55 = vld [vmem:[%s1 + $0x54] sm:$0xf]
  %v56 = vld [vmem:[%s1 + $0x58] sm:$0xf]
  %v57 = vld [vmem:[%s1 + $0x5c] sm:$0xf]
  %v58 = vld [vmem:[%s1 + $0x60] sm:$0xf]
  %v59 = vld [vmem:[%s1 + $0x64] sm:$0xf]
  %v60 = vld [vmem:[%s1 + $0x68] sm:$0xf]
  %v61 = vld [vmem:[%s1 + $0x6c] sm:$0xf]
  %v62 = vld [vmem:[%s1 + $0x70] sm:$0xf]
  %v63 = vld [vmem:[%s1 + $0x74] sm:$0xf]
  %v64 = vld [vmem:[%s1 + $0x78] sm:$0xf]
  %v65 = vld [vmem:[%s1 + $0x7c] sm:$0xf]
  %v66 = vld [vmem:[%s1 + $0x80] sm:$0xf]
  %v67 = vld [vmem:[%s1 + $0x84] sm:$0xf]
  %v68 = vld [vmem:[%s1 + $0x88] sm:$0xf]
  %v69 = vld [vmem:[%s1 + $0x8c] sm:$0xf]
  %v70 = vld [vmem:[%s1 + $0x90] sm:$0xf]
  %v71 = vld [vmem:[%s1 + $0x94] sm:$0xf]
  %v72 = vld [vmem:[%s1 + $0x98] sm:$0xf]
  %v73 = vld [vmem:[%s1 + $0x9c] sm:$0xf]
  %v74 = vld [vmem:[%s1 + $0xa0] sm:$0xf]
  %v75 = vld [vmem:[%s1 + $0xa4] sm:$0xf]
  %v76 = vld [vmem:[%s1 + $0xa8] sm:$0xf]
  %v77 = vld [vmem:[%s1 + $0xac] sm:$0xf]
  %v78 = vld [vmem:[%s1 + $0xb0] sm:$0xf]
  %v79 = vld [vmem:[%s1 + $0xb4] sm:$0xf]
  %v80 = vld [vmem:[%s1 + $0xb8] sm:$0xf]
  %v81 = vld [vmem:[%s1 + $0xbc] sm:$0xf]
  %v82 = vld [vmem:[%s1 + $0xc0] sm:$0xf]
  %v83 = vld [vmem:[%s1 + $0xc4] sm:$0xf]
  %v84 = vld [vmem:[%s1 + $0xc8] sm:$0xf]
  %v85 = vld [vmem:[%s1 + $0xcc] sm:$0xf]
  %v86 = vld [vmem:[%s1 + $0xd0] sm:$0xf]
  %v87 = vld [vmem:[%s1 + $0xd4] sm:$0xf]
  %v88 = vld [vmem:[%s1 + $0xd8] sm:$0xf]
  %v89 = vld [vmem:[%s1 + $0xdc] sm:$0xf]
  %v90 = vld [vmem:[%s1 + $0xe0] sm:$0xf]
  %v91 = vld [vmem:[%s1 + $0xe4] sm:$0xf]
  %v92 = vld [vmem:[%s1 + $0xe8] sm:$0xf]
  %v93 = vld [vmem:[%s1 + $0xec] sm:$0xf]
  %v94 = vld [vmem:[%s1 + $0xf0] sm:$0xf]
  %v95 = vld [vmem:[%s1 + $0xf4] sm:$0xf]
  %v96 = vld [vmem:[%s1 + $0xf8] sm:$0xf]
  %v97 = vld [vmem:[%s1 + $0xfc] sm:$0xf]
  %v98 = vld [vmem:[%s1 + $0x100] sm:$0xf]
  %v99 = vld [vmem:[%s1 + $0x104] sm:$0xf]
  %v100 = vld [vmem:[%s1 + $0x108] sm:$0xf]
  %v101 = vld [vmem:[%s1 + $0x10c] sm:$0xf]
  %v102 = vld [vmem:[%s1 + $0x110] sm:$0xf]
  %v103 = vld [vmem:[%s1 + $0x114] sm:$0xf]
  %v104 = vld [vmem:[%s1 + $0x118] sm:$0xf]
  %v105 = vld [vmem:[%s1 + $0x11c] sm:$0xf]
  %v106 = vld [vmem:[%s1 + $0x120] sm:$0xf]
  %v107 = vld [vmem:[%s1 + $0x124] sm:$0xf]
  %v108 = vld [vmem:[%s1 + $0x128] sm:$0xf]
  %v109 = vld [vmem:[%s1 + $0x12c] sm:$0xf]
  %v110 = vld [vmem:[%s1 + $0x130] sm:$0xf]
  %v111 = vld [vmem:[%s1 + $0x134] sm:$0xf]
  %v112 = vld [vmem:[%s1 + $0x138] sm:$0xf]
  %v113 = vld [vmem:[%s1 + $0x13c] sm:$0xf]
  %v114 = vld [vmem:[%s1 + $0x140] sm:$0xf]
  %v115 = vld [vmem:[%s1 + $0x144] sm:$0xf]
  %v116 = vld [vmem:[%s1 + $0x148] sm:$0xf]
  %v117 = vld [vmem:[%s1 + $0x14c] sm:$0xf]
  %v118 = vld [vmem:[%s1 + $0x150] sm:$0xf]
  %v119 = vld [vmem:[%s1 + $0x154] sm:$0xf]
  %v120 = vld [vmem:[%s1 + $0x158] sm:$0xf]
  %v121 = vld [vmem:[%s1 + $0x15c] sm:$0xf]
  %v122 = vld [vmem:[%s1 + $0x160] sm:$0xf]
  %v123 = vld [vmem:[%s1 + $0x164] sm:$0xf]
  %v124 = vld [vmem:[%s1 + $0x168] sm:$0xf]
  %v125 = vld [vmem:[%s1 + $0x16c] sm:$0xf]
  %v126 = vld [vmem:[%s1 + $0x170] sm:$0xf]
  %v127 = vld [vmem:[%s1 + $0x174] sm:$0xf]
  %v128 = vld [vmem:[%s1 + $0x178] sm:$0xf]
  %v129 = vld [vmem:[%s1 + $0x17c] sm:$0xf]
  %v130 = vld [vmem:[%s1 + $0x180] sm:$0xf]
  %v131 = vld [vmem:[%s1 + $0x184] sm:$0xf]
  %v132 = vld [vmem:[%s1 + $0x188] sm:$0xf]
  %v133 = vld [vmem:[%s1 + $0x18c] sm:$0xf]
  %v134 = vld [vmem:[%s1 + $0x190] sm:$0xf]
  %v135 = vld [vmem:[%s1 + $0x194] sm:$0xf]
  %v136 = vld [vmem:[%s1 + $0x198] sm:$0xf]
  %v137 = vld [vmem:[%s1 + $0x19c] sm:$0xf]
  %v138 = vld [vmem:[%s1 + $0x1a0] sm:$0xf]
  %v139 = vld [vmem:[%s1 + $0x1a4] sm:$0xf]
  %v140 = vld [vmem:[%s1 + $0x1a8] sm:$0xf]
  %v141 = vld [vmem:[%s1 + $0x1ac] sm:$0xf]
  %v142 = vld [vmem:[%s1 + $0x1b0] sm:$0xf]
  %v143 = vld [vmem:[%s1 + $0x1b4] sm:$0xf]
  %v144 = vld [vmem:[%s1 + $0x1b8] sm:$0xf]
  %v145 = vld [vmem:[%s1 + $0x1bc] sm:$0xf]
  %v146 = vld [vmem:[%s1 + $0x1c0] sm:$0xf]
  %v147 = vld [vmem:[%s1 + $0x1c4] sm:$0xf]
  %v148 = vld [vmem:[%s1 + $0x1c8] sm:$0xf]
  %v149 = vld [vmem:[%s1 + $0x1cc] sm:$0xf]
  %v150 = vld [vmem:[%s1 + $0x1d0] sm:$0xf]
  %v151 = vld [vmem:[%s1 + $0x1d4] sm:$0xf]
  %v152 = vld [vmem:[%s1 + $0x1d8] sm:$0xf]
  %v153 = vld [vmem:[%s1 + $0x1dc] sm:$0xf]
  %v154 = vld [vmem:[%s1 + $0x1e0] sm:$0xf]
  %v155 = vld [vmem:[%s1 + $0x1e4] sm:$0xf]
  %v156 = vld [vmem:[%s1 + $0x1e8] sm:$0xf]
  %v157 = vld [vmem:[%s1 + $0x1ec] sm:$0xf]
  %v158 = vld [vmem:[%s1 + $0x1f0] sm:$0xf]
  %v159 = vld [vmem:[%s1 + $0x1f4] sm:$0xf]
  %v160 = vld [vmem:[%s1 + $0x1f8] sm:$0xf]
  %v161 = vld [vmem:[%s1 + $0x1fc] sm:$0xf]
  %v178 = vunpack.c.l.b16 %v18
  %v179 = vunpack.c.h.b16 %v18
  %v180 = vunpack.c.l.b16 %v19
  %v181 = vunpack.c.h.b16 %v19
  %v182 = vunpack.c.l.b16 %v20
  %v183 = vunpack.c.h.b16 %v20
  %v184 = vunpack.c.l.b16 %v21
  %v185 = vunpack.c.h.b16 %v21
  %v186 = vunpack.c.l.b16 %v22
  %v187 = vunpack.c.h.b16 %v22
  %v188 = vunpack.c.l.b16 %v23
  %v189 = vunpack.c.h.b16 %v23
  %v190 = vunpack.c.l.b16 %v24
  %v191 = vunpack.c.h.b16 %v24
  %v192 = vunpack.c.l.b16 %v25
  %v193 = vunpack.c.h.b16 %v25
  %v194 = vunpack.c.l.b16 %v26
  %v195 = vunpack.c.h.b16 %v26
  %v196 = vunpack.c.l.b16 %v27
  %v197 = vunpack.c.h.b16 %v27
  %v198 = vunpack.c.l.b16 %v28
  %v199 = vunpack.c.h.b16 %v28
  %v200 = vunpack.c.l.b16 %v29
  %v201 = vunpack.c.h.b16 %v29
  %v202 = vunpack.c.l.b16 %v30
  %v203 = vunpack.c.h.b16 %v30
  %v204 = vunpack.c.l.b16 %v31
  %v205 = vunpack.c.h.b16 %v31
  %v206 = vunpack.c.l.b16 %v32
  %v207 = vunpack.c.h.b16 %v32
  %v208 = vunpack.c.l.b16 %v33
  %v209 = vunpack.c.h.b16 %v33
  %v210 = vpack.c.b16 %v186, %v178
  %v211 = vpack.c.b16 %v187, %v179
  %v212 = vpack.c.b16 %v188, %v180
  %v213 = vpack.c.b16 %v189, %v181
  %v214 = vpack.c.b16 %v190, %v182
  %v215 = vpack.c.b16 %v191, %v183
  %v216 = vpack.c.b16 %v192, %v184
  %v217 = vpack.c.b16 %v193, %v185
  %v218 = vpack.c.b16 %v202, %v194
  %v219 = vpack.c.b16 %v203, %v195
  %v220 = vpack.c.b16 %v204, %v196
  %v221 = vpack.c.b16 %v205, %v197
  %v222 = vpack.c.b16 %v206, %v198
  %v223 = vpack.c.b16 %v207, %v199
  %v224 = vpack.c.b16 %v208, %v200
  %v225 = vpack.c.b16 %v209, %v201
  %v370 = vunpack.c.l.b16 %v34
  %v371 = vunpack.c.l.b16 %v35
  %v372 = vunpack.c.l.b16 %v36
  %v373 = vunpack.c.l.b16 %v37
  %v374 = vunpack.c.l.b16 %v38
  %v375 = vunpack.c.l.b16 %v39
  %v376 = vunpack.c.l.b16 %v40
  %v377 = vunpack.c.l.b16 %v41
  %v378 = vunpack.c.l.b16 %v42
  %v379 = vunpack.c.l.b16 %v43
  %v380 = vunpack.c.l.b16 %v44
  %v381 = vunpack.c.l.b16 %v45
  %v382 = vunpack.c.l.b16 %v46
  %v383 = vunpack.c.l.b16 %v47
  %v384 = vunpack.c.l.b16 %v48
  %v385 = vunpack.c.l.b16 %v49
  %v386 = vunpack.c.l.b16 %v50
  %v387 = vunpack.c.l.b16 %v51
  %v388 = vunpack.c.l.b16 %v52
  %v389 = vunpack.c.l.b16 %v53
  %v390 = vunpack.c.l.b16 %v54
  %v391 = vunpack.c.l.b16 %v55
  %v392 = vunpack.c.l.b16 %v56
  %v393 = vunpack.c.l.b16 %v57
  %v394 = vunpack.c.l.b16 %v58
  %v395 = vunpack.c.l.b16 %v59
  %v396 = vunpack.c.l.b16 %v60
  %v397 = vunpack.c.l.b16 %v61
  %v398 = vunpack.c.l.b16 %v62
  %v399 = vunpack.c.l.b16 %v63
  %v400 = vunpack.c.l.b16 %v64
  %v401 = vunpack.c.l.b16 %v65
  %v402 = vunpack.c.l.b16 %v66
  %v403 = vunpack.c.l.b16 %v67
  %v404 = vunpack.c.l.b16 %v68
  %v405 = vunpack.c.l.b16 %v69
  %v406 = vunpack.c.l.b16 %v70
  %v407 = vunpack.c.l.b16 %v71
  %v408 = vunpack.c.l.b16 %v72
  %v409 = vunpack.c.l.b16 %v73
  %v410 = vunpack.c.l.b16 %v74
  %v411 = vunpack.c.l.b16 %v75
  %v412 = vunpack.c.l.b16 %v76
  %v413 = vunpack.c.l.b16 %v77
  %v414 = vunpack.c.l.b16 %v78
  %v415 = vunpack.c.l.b16 %v79
  %v416 = vunpack.c.l.b16 %v80
  %v417 = vunpack.c.l.b16 %v81
  %v418 = vunpack.c.l.b16 %v82
  %v419 = vunpack.c.l.b16 %v83
  %v420 = vunpack.c.l.b16 %v84
  %v421 = vunpack.c.l.b16 %v85
  %v422 = vunpack.c.l.b16 %v86
  %v423 = vunpack.c.l.b16 %v87
  %v424 = vunpack.c.l.b16 %v88
  %v425 = vunpack.c.l.b16 %v89
  %v426 = vunpack.c.l.b16 %v90
  %v427 = vunpack.c.l.b16 %v91
  %v428 = vunpack.c.l.b16 %v92
  %v429 = vunpack.c.l.b16 %v93
  %v430 = vunpack.c.l.b16 %v94
  %v431 = vunpack.c.l.b16 %v95
  %v432 = vunpack.c.l.b16 %v96
  %v433 = vunpack.c.l.b16 %v97
  %v434 = vunpack.c.l.b16 %v98
  %v435 = vunpack.c.l.b16 %v99
  %v436 = vunpack.c.l.b16 %v100
  %v437 = vunpack.c.l.b16 %v101
  %v438 = vunpack.c.l.b16 %v102
  %v439 = vunpack.c.l.b16 %v103
  %v440 = vunpack.c.l.b16 %v104
  %v441 = vunpack.c.l.b16 %v105
  %v442 = vunpack.c.l.b16 %v106
  %v443 = vunpack.c.l.b16 %v107
  %v444 = vunpack.c.l.b16 %v108
  %v445 = vunpack.c.l.b16 %v109
  %v446 = vunpack.c.l.b16 %v110
  %v447 = vunpack.c.l.b16 %v111
  %v448 = vunpack.c.l.b16 %v112
  %v449 = vunpack.c.l.b16 %v113
  %v450 = vunpack.c.l.b16 %v114
  %v451 = vunpack.c.l.b16 %v115
  %v452 = vunpack.c.l.b16 %v116
  %v453 = vunpack.c.l.b16 %v117
  %v454 = vunpack.c.l.b16 %v118
  %v455 = vunpack.c.l.b16 %v119
  %v456 = vunpack.c.l.b16 %v120
  %v457 = vunpack.c.l.b16 %v121
  %v458 = vunpack.c.l.b16 %v122
  %v459 = vunpack.c.l.b16 %v123
  %v460 = vunpack.c.l.b16 %v124
  %v461 = vunpack.c.l.b16 %v125
  %v462 = vunpack.c.l.b16 %v126
  %v463 = vunpack.c.l.b16 %v127
  %v464 = vunpack.c.l.b16 %v128
  %v465 = vunpack.c.l.b16 %v129
  %v466 = vunpack.c.l.b16 %v130
  %v467 = vunpack.c.l.b16 %v131
  %v468 = vunpack.c.l.b16 %v132
  %v469 = vunpack.c.l.b16 %v133
  %v470 = vunpack.c.l.b16 %v134
  %v471 = vunpack.c.l.b16 %v135
  %v472 = vunpack.c.l.b16 %v136
  %v473 = vunpack.c.l.b16 %v137
  %v474 = vunpack.c.l.b16 %v138
  %v475 = vunpack.c.l.b16 %v139
  %v476 = vunpack.c.l.b16 %v140
  %v477 = vunpack.c.l.b16 %v141
  %v478 = vunpack.c.l.b16 %v142
  %v479 = vunpack.c.l.b16 %v143
  %v480 = vunpack.c.l.b16 %v144
  %v481 = vunpack.c.l.b16 %v145
  %v482 = vunpack.c.l.b16 %v146
  %v483 = vunpack.c.l.b16 %v147
  %v484 = vunpack.c.l.b16 %v148
  %v485 = vunpack.c.l.b16 %v149
  %v486 = vunpack.c.l.b16 %v150
  %v487 = vunpack.c.l.b16 %v151
  %v488 = vunpack.c.l.b16 %v152
  %v489 = vunpack.c.l.b16 %v153
  %v490 = vunpack.c.l.b16 %v154
  %v491 = vunpack.c.l.b16 %v155
  %v492 = vunpack.c.l.b16 %v156
  %v493 = vunpack.c.l.b16 %v157
  %v494 = vunpack.c.l.b16 %v158
  %v495 = vunpack.c.l.b16 %v159
  %v496 = vunpack.c.l.b16 %v160
  %v497 = vunpack.c.l.b16 %v161
  %v498 = vpack.c.b16 %v371, %v370
  %v499 = vpack.c.b16 %v373, %v372
  %v500 = vpack.c.b16 %v375, %v374
  %v501 = vpack.c.b16 %v377, %v376
  %v502 = vpack.c.b16 %v379, %v378
  %v503 = vpack.c.b16 %v381, %v380
  %v504 = vpack.c.b16 %v383, %v382
  %v505 = vpack.c.b16 %v385, %v384
  %v506 = vpack.c.b16 %v387, %v386
  %v507 = vpack.c.b16 %v389, %v388
  %v508 = vpack.c.b16 %v391, %v390
  %v509 = vpack.c.b16 %v393, %v392
  %v510 = vpack.c.b16 %v395, %v394
  %v511 = vpack.c.b16 %v397, %v396
  %v512 = vpack.c.b16 %v399, %v398
  %v513 = vpack.c.b16 %v401, %v400
  %v514 = vpack.c.b16 %v403, %v402
  %v515 = vpack.c.b16 %v405, %v404
  %v516 = vpack.c.b16 %v407, %v406
  %v517 = vpack.c.b16 %v409, %v408
  %v518 = vpack.c.b16 %v411, %v410
  %v519 = vpack.c.b16 %v413, %v412
  %v520 = vpack.c.b16 %v415, %v414
  %v521 = vpack.c.b16 %v417, %v416
  %v522 = vpack.c.b16 %v419, %v418
  %v523 = vpack.c.b16 %v421, %v420
  %v524 = vpack.c.b16 %v423, %v422
  %v525 = vpack.c.b16 %v425, %v424
  %v526 = vpack.c.b16 %v427, %v426
  %v527 = vpack.c.b16 %v429, %v428
  %v528 = vpack.c.b16 %v431, %v430
  %v529 = vpack.c.b16 %v433, %v432
  %v530 = vpack.c.b16 %v435, %v434
  %v531 = vpack.c.b16 %v437, %v436
  %v532 = vpack.c.b16 %v439, %v438
  %v533 = vpack.c.b16 %v441, %v440
  %v534 = vpack.c.b16 %v443, %v442
  %v535 = vpack.c.b16 %v445, %v444
  %v536 = vpack.c.b16 %v447, %v446
  %v537 = vpack.c.b16 %v449, %v448
  %v538 = vpack.c.b16 %v451, %v450
  %v539 = vpack.c.b16 %v453, %v452
  %v540 = vpack.c.b16 %v455, %v454
  %v541 = vpack.c.b16 %v457, %v456
  %v542 = vpack.c.b16 %v459, %v458
  %v543 = vpack.c.b16 %v461, %v460
  %v544 = vpack.c.b16 %v463, %v462
  %v545 = vpack.c.b16 %v465, %v464
  %v546 = vpack.c.b16 %v467, %v466
  %v547 = vpack.c.b16 %v469, %v468
  %v548 = vpack.c.b16 %v471, %v470
  %v549 = vpack.c.b16 %v473, %v472
  %v550 = vpack.c.b16 %v475, %v474
  %v551 = vpack.c.b16 %v477, %v476
  %v552 = vpack.c.b16 %v479, %v478
  %v553 = vpack.c.b16 %v481, %v480
  %v554 = vpack.c.b16 %v483, %v482
  %v555 = vpack.c.b16 %v485, %v484
  %v556 = vpack.c.b16 %v487, %v486
  %v557 = vpack.c.b16 %v489, %v488
  %v558 = vpack.c.b16 %v491, %v490
  %v559 = vpack.c.b16 %v493, %v492
  %v560 = vpack.c.b16 %v495, %v494
  %v561 = vpack.c.b16 %v497, %v496
  %626 = vmatprep.subr.bf16.mxu0 0
  %627 = vmatpush1.bf16.msra.mxu0 %v498
  %628 = vmatprep.subr.bf16.mxu0 0
  %629 = vmatpush1.bf16.msra.mxu0 %v499
  %630 = vmatprep.subr.bf16.mxu0 0
  %631 = vmatpush1.bf16.msra.mxu0 %v500
  %632 = vmatprep.subr.bf16.mxu0 0
  %633 = vmatpush1.bf16.msra.mxu0 %v501
  %634 = vmatprep.subr.bf16.mxu0 0
  %635 = vmatpush1.bf16.msra.mxu0 %v502
  %636 = vmatprep.subr.bf16.mxu0 0
  %637 = vmatpush1.bf16.msra.mxu0 %v503
  %638 = vmatprep.subr.bf16.mxu0 0
  %639 = vmatpush1.bf16.msra.mxu0 %v504
  %640 = vmatprep.subr.bf16.mxu0 0
  %641 = vmatpush1.bf16.msra.mxu0 %v505
  %642 = vmatprep.subr.bf16.mxu0 0
  %643 = vmatpush1.bf16.msra.mxu0 %v506
  %644 = vmatprep.subr.bf16.mxu0 0
  %645 = vmatpush1.bf16.msra.mxu0 %v507
  %646 = vmatprep.subr.bf16.mxu0 0
  %647 = vmatpush1.bf16.msra.mxu0 %v508
  %648 = vmatprep.subr.bf16.mxu0 0
  %649 = vmatpush1.bf16.msra.mxu0 %v509
  %650 = vmatprep.subr.bf16.mxu0 0
  %651 = vmatpush1.bf16.msra.mxu0 %v510
  %652 = vmatprep.subr.bf16.mxu0 0
  %653 = vmatpush1.bf16.msra.mxu0 %v511
  %654 = vmatprep.subr.bf16.mxu0 0
  %655 = vmatpush1.bf16.msra.mxu0 %v512
  %656 = vmatprep.subr.bf16.mxu0 0
  %657 = vmatpush1.bf16.msra.mxu0 %v513
  %658 = vmatprep.mubr.bf16.mxu0 %v211
  %659 = vmatmul.mubr.bf16.gmra.mrb[0].mxu0 %v210
  %v660 = vpop.f32.mrb[0].mxu0
  %v661 = vadd.f32 0.0, %v660
  %v662 = vpop.f32.mrb[0].mxu0
  %v663 = vpop.f32.mrb[0].mxu0
  %v664 = vadd.f32 0.0, %v663
  %v665 = vpop.f32.mrb[0].mxu0
  %666 = vmatprep.mubr.bf16.mxu0 %v219
  %667 = vmatmul.mubr.bf16.gmra.mrb[0].mxu0 %v218
  %v668 = vpop.f32.mrb[0].mxu0
  %v669 = vadd.f32 0.0, %v668
  %v670 = vpop.f32.mrb[0].mxu0
  %v671 = vpop.f32.mrb[0].mxu0
  %v672 = vadd.f32 0.0, %v671
  %v673 = vpop.f32.mrb[0].mxu0
  %674 = vdwg.mxu0
  %675 = vmatprep.subr.bf16.mxu0 0
  %676 = vmatpush1.bf16.msra.mxu0 %v514
  %677 = vmatprep.subr.bf16.mxu0 0
  %678 = vmatpush1.bf16.msra.mxu0 %v515
  %679 = vmatprep.subr.bf16.mxu0 0
  %680 = vmatpush1.bf16.msra.mxu0 %v516
  %681 = vmatprep.subr.bf16.mxu0 0
  %682 = vmatpush1.bf16.msra.mxu0 %v517
  %683 = vmatprep.subr.bf16.mxu0 0
  %684 = vmatpush1.bf16.msra.mxu0 %v518
  %685 = vmatprep.subr.bf16.mxu0 0
  %686 = vmatpush1.bf16.msra.mxu0 %v519
  %687 = vmatprep.subr.bf16.mxu0 0
  %688 = vmatpush1.bf16.msra.mxu0 %v520
  %689 = vmatprep.subr.bf16.mxu0 0
  %690 = vmatpush1.bf16.msra.mxu0 %v521
  %691 = vmatprep.subr.bf16.mxu0 0
  %692 = vmatpush1.bf16.msra.mxu0 %v522
  %693 = vmatprep.subr.bf16.mxu0 0
  %694 = vmatpush1.bf16.msra.mxu0 %v523
  %695 = vmatprep.subr.bf16.mxu0 0
  %696 = vmatpush1.bf16.msra.mxu0 %v524
  %697 = vmatprep.subr.bf16.mxu0 0
  %698 = vmatpush1.bf16.msra.mxu0 %v525
  %699 = vmatprep.subr.bf16.mxu0 0
  %700 = vmatpush1.bf16.msra.mxu0 %v526
  %701 = vmatprep.subr.bf16.mxu0 0
  %702 = vmatpush1.bf16.msra.mxu0 %v527
  %703 = vmatprep.subr.bf16.mxu0 0
  %704 = vmatpush1.bf16.msra.mxu0 %v528
  %705 = vmatprep.subr.bf16.mxu0 0
  %706 = vmatpush1.bf16.msra.mxu0 %v529
  %707 = vmatprep.mubr.bf16.mxu0 %v213
  %708 = vmatmul.mubr.bf16.gmra.mrb[0].mxu0 %v212
  %v709 = vpop.f32.mrb[0].mxu0
  %v710 = vadd.f32 %v661, %v709
  %v711 = vpop.f32.mrb[0].mxu0
  %v712 = vpop.f32.mrb[0].mxu0
  %v713 = vadd.f32 %v664, %v712
  %v714 = vpop.f32.mrb[0].mxu0
  %715 = vmatprep.mubr.bf16.mxu0 %v221
  %716 = vmatmul.mubr.bf16.gmra.mrb[0].mxu0 %v220
  %v717 = vpop.f32.mrb[0].mxu0
  %v718 = vadd.f32 %v669, %v717
  %v719 = vpop.f32.mrb[0].mxu0
  %v720 = vpop.f32.mrb[0].mxu0
  %v721 = vadd.f32 %v672, %v720
  %v722 = vpop.f32.mrb[0].mxu0
  %723 = vdwg.mxu0
  %724 = vmatprep.subr.bf16.mxu0 0
  %725 = vmatpush1.bf16.msra.mxu0 %v530
  %726 = vmatprep.subr.bf16.mxu0 0
  %727 = vmatpush1.bf16.msra.mxu0 %v531
  %728 = vmatprep.subr.bf16.mxu0 0
  %729 = vmatpush1.bf16.msra.mxu0 %v532
  %730 = vmatprep.subr.bf16.mxu0 0
  %731 = vmatpush1.bf16.msra.mxu0 %v533
  %732 = vmatprep.subr.bf16.mxu0 0
  %733 = vmatpush1.bf16.msra.mxu0 %v534
  %734 = vmatprep.subr.bf16.mxu0 0
  %735 = vmatpush1.bf16.msra.mxu0 %v535
  %736 = vmatprep.subr.bf16.mxu0 0
  %737 = vmatpush1.bf16.msra.mxu0 %v536
  %738 = vmatprep.subr.bf16.mxu0 0
  %739 = vmatpush1.bf16.msra.mxu0 %v537
  %740 = vmatprep.subr.bf16.mxu0 0
  %741 = vmatpush1.bf16.msra.mxu0 %v538
  %742 = vmatprep.subr.bf16.mxu0 0
  %743 = vmatpush1.bf16.msra.mxu0 %v539
  %744 = vmatprep.subr.bf16.mxu0 0
  %745 = vmatpush1.bf16.msra.mxu0 %v540
  %746 = vmatprep.subr.bf16.mxu0 0
  %747 = vmatpush1.bf16.msra.mxu0 %v541
  %748 = vmatprep.subr.bf16.mxu0 0
  %749 = vmatpush1.bf16.msra.mxu0 %v542
  %750 = vmatprep.subr.bf16.mxu0 0
  %751 = vmatpush1.bf16.msra.mxu0 %v543
  %752 = vmatprep.subr.bf16.mxu0 0
  %753 = vmatpush1.bf16.msra.mxu0 %v544
  %754 = vmatprep.subr.bf16.mxu0 0
  %755 = vmatpush1.bf16.msra.mxu0 %v545
  %756 = vmatprep.mubr.bf16.mxu0 %v215
  %757 = vmatmul.mubr.bf16.gmra.mrb[0].mxu0 %v214
  %v758 = vpop.f32.mrb[0].mxu0
  %v759 = vadd.f32 %v710, %v758
  %v760 = vpop.f32.mrb[0].mxu0
  %v761 = vpop.f32.mrb[0].mxu0
  %v762 = vadd.f32 %v713, %v761
  %v763 = vpop.f32.mrb[0].mxu0
  %764 = vmatprep.mubr.bf16.mxu0 %v223
  %765 = vmatmul.mubr.bf16.gmra.mrb[0].mxu0 %v222
  %v766 = vpop.f32.mrb[0].mxu0
  %v767 = vadd.f32 %v718, %v766
  %v768 = vpop.f32.mrb[0].mxu0
  %v769 = vpop.f32.mrb[0].mxu0
  %v770 = vadd.f32 %v721, %v769
  %v771 = vpop.f32.mrb[0].mxu0
  %772 = vdwg.mxu0
  %773 = vmatprep.subr.bf16.mxu0 0
  %774 = vmatpush1.bf16.msra.mxu0 %v546
  %775 = vmatprep.subr.bf16.mxu0 0
  %776 = vmatpush1.bf16.msra.mxu0 %v547
  %777 = vmatprep.subr.bf16.mxu0 0
  %778 = vmatpush1.bf16.msra.mxu0 %v548
  %779 = vmatprep.subr.bf16.mxu0 0
  %780 = vmatpush1.bf16.msra.mxu0 %v549
  %781 = vmatprep.subr.bf16.mxu0 0
  %782 = vmatpush1.bf16.msra.mxu0 %v550
  %783 = vmatprep.subr.bf16.mxu0 0
  %784 = vmatpush1.bf16.msra.mxu0 %v551
  %785 = vmatprep.subr.bf16.mxu0 0
  %786 = vmatpush1.bf16.msra.mxu0 %v552
  %787 = vmatprep.subr.bf16.mxu0 0
  %788 = vmatpush1.bf16.msra.mxu0 %v553
  %789 = vmatprep.subr.bf16.mxu0 0
  %790 = vmatpush1.bf16.msra.mxu0 %v554
  %791 = vmatprep.subr.bf16.mxu0 0
  %792 = vmatpush1.bf16.msra.mxu0 %v555
  %793 = vmatprep.subr.bf16.mxu0 0
  %794 = vmatpush1.bf16.msra.mxu0 %v556
  %795 = vmatprep.subr.bf16.mxu0 0
  %796 = vmatpush1.bf16.msra.mxu0 %v557
  %797 = vmatprep.subr.bf16.mxu0 0
  %798 = vmatpush1.bf16.msra.mxu0 %v558
  %799 = vmatprep.subr.bf16.mxu0 0
  %800 = vmatpush1.bf16.msra.mxu0 %v559
  %801 = vmatprep.subr.bf16.mxu0 0
  %802 = vmatpush1.bf16.msra.mxu0 %v560
  %803 = vmatprep.subr.bf16.mxu0 0
  %804 = vmatpush1.bf16.msra.mxu0 %v561
  %805 = vmatprep.mubr.bf16.mxu0 %v217
  %806 = vmatmul.mubr.bf16.gmra.mrb[0].mxu0 %v216
  %v807 = vpop.f32.mrb[0].mxu0
  %v808 = vadd.f32 %v759, %v807
  %v809 = vpop.f32.mrb[0].mxu0
  %v810 = vpop.f32.mrb[0].mxu0
  %v811 = vadd.f32 %v762, %v810
  %v812 = vpop.f32.mrb[0].mxu0
  %813 = vmatprep.mubr.bf16.mxu0 %v225
  %814 = vmatmul.mubr.bf16.gmra.mrb[0].mxu0 %v224
  %v815 = vpop.f32.mrb[0].mxu0
  %v816 = vadd.f32 %v767, %v815
  %v817 = vpop.f32.mrb[0].mxu0
  %v818 = vpop.f32.mrb[0].mxu0
  %v819 = vadd.f32 %v770, %v818
  %v820 = vpop.f32.mrb[0].mxu0
  %821 = vdwg.mxu0
  %v822 = vadd.f32 %v808, %v811
  %v823 = vadd.f32 %v822, %v816
  %v824 = vadd.f32 %v823, %v819
  %v825 = vrot.slane %v824, 4
  %v826 = vadd.f32 %v824, %v825
  %v827 = vrot.slane %v826, 2
  %v828 = vadd.f32 %v826, %v827
  %v829 = vrot.slane %v828, 1
  %v830 = vadd.f32 %v828, %v829
  %v831 = vmul.f32 %v830, 0.03125
  %v832 = vmul.f32 %v808, %v808
  %v833 = vmul.f32 %v811, %v811
  %v834 = vmul.f32 %v816, %v816
  %v835 = vmul.f32 %v819, %v819
  %v836 = vadd.f32 %v832, %v833
  %v837 = vadd.f32 %v836, %v834
  %v838 = vadd.f32 %v837, %v835
  %v839 = vrot.slane %v838, 4
  %v840 = vadd.f32 %v838, %v839
  %v841 = vrot.slane %v840, 2
  %v842 = vadd.f32 %v840, %v841
  %v843 = vrot.slane %v842, 1
  %v844 = vadd.f32 %v842, %v843
  %v845 = vmul.f32 %v844, 0.03125
  %v846 = vmul.f32 %v831, %v831
  %v847 = vsub.f32 %v845, %v846
  %v848 = vmax.f32 %v847, 0.0
  %v849 = vld [vmem:[%s2] sm:$0x1]
  %v850 = vadd.f32 %v848, 1e-05
  %v851 = vrsqrt.pop %v850
  %v852 = vmul.f32 %v849, %v851
  %v853 = vld [vmem:[%s3] sm:$0x1]
  %v854 = vmul.f32 %v831, %v852
  %v855 = vsub.f32 %v853, %v854
  %v857 = vlaneseq
  %v858 = vshrl.u32 %v857, 7
  %v859 = vsub.s32 0, %v858
  %v860 = vrot.slane %v852, %v859
  %v862 = vmul.f32 %v808, %v860
  %v863 = vmul.f32 %v811, %v860
  %v864 = vmul.f32 %v816, %v860
  %v865 = vmul.f32 %v819, %v860
  %v867 = vlaneseq
  %v868 = vshrl.u32 %v867, 7
  %v869 = vsub.s32 0, %v868
  %v870 = vrot.slane %v855, %v869
  %v872 = vadd.f32 %v862, %v870
  %v873 = vadd.f32 %v863, %v870
  %v874 = vadd.f32 %v864, %v870
  %v875 = vadd.f32 %v865, %v870
  %v876 = vmax.f32 %v872, 0.0
  %v877 = vmax.f32 %v873, 0.0
  %v878 = vmax.f32 %v874, 0.0
  %v879 = vmax.f32 %v875, 0.0
  %v880 = vpack.c.bf16 %v877, %v876
  %v881 = vpack.c.bf16 %v879, %v878
  %v884 = vunpack.c.l.b16 %v880
  %v885 = vunpack.c.h.b16 %v880
  %v886 = vunpack.c.l.b16 %v881
  %v887 = vunpack.c.h.b16 %v881
  %v888 = vpack.c.b16 %v884, %v884
  %v889 = vpack.c.b16 %v885, %v885
  %v890 = vpack.c.b16 %v886, %v886
  %v891 = vpack.c.b16 %v887, %v887
  %896 = vst [vmem:[%s4] sm:$0xf] %v888
  %897 = vst [vmem:[%s4 + $0x4] sm:$0xf] %v889
  %898 = vst [vmem:[%s4 + $0x8] sm:$0xf] %v890
  %899 = vst [vmem:[%s4 + $0xc] sm:$0xf] %v891
  // Predicated region
  $region18: #{discriminator_forward.6} parent=0 // pred_check
    _
  $region19: #{discriminator_forward.6} parent=0 // pred_check_branch
    %901 = sbr.rel (0) target = $region21
  $region20: #{discriminator_forward.6} parent=0 // pred_region
    _
  $region21: #{discriminator_forward.6} parent=0 // pred_fallthru
    _
  // Predicated region
  $region22: #{discriminator_forward.6} parent=0 // pred_check
    _
  $region23: #{discriminator_forward.6} parent=0 // pred_check_branch
    %903 = sbr.rel (0) target = $region25
  $region24: #{discriminator_forward.6} parent=0 // pred_region
    _
  $region25: #{discriminator_forward.6} parent=0 // pred_fallthru
    _

// kernel: discriminator_forward.7
$region0: #{discriminator_forward.7}
  #allocation0 [shape = 'u32[]', space=smem, size = 0x4, offset = 0x4, fixed_abs, tag = 'smem constant byte address 0x4 - core index']
  #allocation1 [shape = 'u32[144,128]{1,0:T(1,128)}', space=vmem, size = 0x12000, scoped, tag = 'internal scratch']
  %s0 = inlined_call_operand.vmem [shape: bf16[24,2048], index: 0, kind: input, shape index: {}]
  %s1 = inlined_call_operand.vmem [shape: bf16[2048,128], index: 1, kind: input, shape index: {}]
  %s2 = inlined_call_operand.vmem [shape: f32[1,128], index: 2, kind: input, shape index: {}]
  %s3 = inlined_call_operand.vmem [shape: f32[24,128], index: 3, kind: output, shape index: {}]
  %s4 = sld [smem:[#allocation0]]
  $region22: #{discriminator_forward.7} parent=0
    _
  %s6 = ssub.s32 1, %s4
  %s7 = scalar_select 0, %s6, %s4
  // Predicated region
  $region2: #{discriminator_forward.7} parent=0 // pred_check
    _
  $region3: #{discriminator_forward.7} parent=0 // pred_check_branch
    %9 = sbr.rel (0) target = $region5
  $region4: #{discriminator_forward.7} parent=0 // pred_region
    _
  $region5: #{discriminator_forward.7} parent=0 // pred_fallthru
    _
  // Predicated region
  $region6: #{discriminator_forward.7} parent=0 // pred_check
    _
  $region7: #{discriminator_forward.7} parent=0 // pred_check_branch
    %11 = sbr.rel (0) target = $region9
  $region8: #{discriminator_forward.7} parent=0 // pred_region
    _
  $region9: #{discriminator_forward.7} parent=0 // pred_fallthru
    _
  // Predicated region
  $region10: #{discriminator_forward.7} parent=0 // pred_check
    _
  $region11: #{discriminator_forward.7} parent=0 // pred_check_branch
    %13 = sbr.rel (0) target = $region13
  $region12: #{discriminator_forward.7} parent=0 // pred_region
    _
  $region13: #{discriminator_forward.7} parent=0 // pred_fallthru
    _
  %v15 = vld [vmem:[%s0] sm:$0xff]
  %v16 = vld [vmem:[%s0 + $0x8] sm:$0xff]
  %v17 = vld [vmem:[%s0 + $0x10] sm:$0xff]
  %v18 = vld [vmem:[%s0 + $0x18] sm:$0xff]
  %v19 = vld [vmem:[%s0 + $0x20] sm:$0xff]
  %v20 = vld [vmem:[%s0 + $0x28] sm:$0xff]
  %v21 = vld [vmem:[%s0 + $0x30] sm:$0xff]
  %v22 = vld [vmem:[%s0 + $0x38] sm:$0xff]
  %v23 = vld [vmem:[%s0 + $0x40] sm:$0xff]
  %v24 = vld [vmem:[%s0 + $0x48] sm:$0xff]
  %v25 = vld [vmem:[%s0 + $0x50] sm:$0xff]
  %v26 = vld [vmem:[%s0 + $0x58] sm:$0xff]
  %v27 = vld [vmem:[%s0 + $0x60] sm:$0xff]
  %v28 = vld [vmem:[%s0 + $0x68] sm:$0xff]
  %v29 = vld [vmem:[%s0 + $0x70] sm:$0xff]
  %v30 = vld [vmem:[%s0 + $0x78] sm:$0xff]
  %v31 = vld [vmem:[%s0 + $0x80] sm:$0xff]
  %v32 = vld [vmem:[%s0 + $0x88] sm:$0xff]
  %v33 = vld [vmem:[%s0 + $0x90] sm:$0xff]
  %v34 = vld [vmem:[%s0 + $0x98] sm:$0xff]
  %v35 = vld [vmem:[%s0 + $0xa0] sm:$0xff]
  %v36 = vld [vmem:[%s0 + $0xa8] sm:$0xff]
  %v37 = vld [vmem:[%s0 + $0xb0] sm:$0xff]
  %v38 = vld [vmem:[%s0 + $0xb8] sm:$0xff]
  %v39 = vld [vmem:[%s1] sm:$0xf]
  %v40 = vld [vmem:[%s1 + $0x4] sm:$0xf]
  %v41 = vld [vmem:[%s1 + $0x8] sm:$0xf]
  %v42 = vld [vmem:[%s1 + $0xc] sm:$0xf]
  %v43 = vld [vmem:[%s1 + $0x10] sm:$0xf]
  %v44 = vld [vmem:[%s1 + $0x14] sm:$0xf]
  %v45 = vld [vmem:[%s1 + $0x18] sm:$0xf]
  %v46 = vld [vmem:[%s1 + $0x1c] sm:$0xf]
  %v47 = vld [vmem:[%s1 + $0x20] sm:$0xf]
  %v48 = vld [vmem:[%s1 + $0x24] sm:$0xf]
  %v49 = vld [vmem:[%s1 + $0x28] sm:$0xf]
  %v50 = vld [vmem:[%s1 + $0x2c] sm:$0xf]
  %v51 = vld [vmem:[%s1 + $0x30] sm:$0xf]
  %v52 = vld [vmem:[%s1 + $0x34] sm:$0xf]
  %v53 = vld [vmem:[%s1 + $0x38] sm:$0xf]
  %v54 = vld [vmem:[%s1 + $0x3c] sm:$0xf]
  %v55 = vld [vmem:[%s1 + $0x40] sm:$0xf]
  %v56 = vld [vmem:[%s1 + $0x44] sm:$0xf]
  %v57 = vld [vmem:[%s1 + $0x48] sm:$0xf]
  %v58 = vld [vmem:[%s1 + $0x4c] sm:$0xf]
  %v59 = vld [vmem:[%s1 + $0x50] sm:$0xf]
  %v60 = vld [vmem:[%s1 + $0x54] sm:$0xf]
  %v61 = vld [vmem:[%s1 + $0x58] sm:$0xf]
  %v62 = vld [vmem:[%s1 + $0x5c] sm:$0xf]
  %v63 = vld [vmem:[%s1 + $0x60] sm:$0xf]
  %v64 = vld [vmem:[%s1 + $0x64] sm:$0xf]
  %v65 = vld [vmem:[%s1 + $0x68] sm:$0xf]
  %v66 = vld [vmem:[%s1 + $0x6c] sm:$0xf]
  %v67 = vld [vmem:[%s1 + $0x70] sm:$0xf]
  %v68 = vld [vmem:[%s1 + $0x74] sm:$0xf]
  %v69 = vld [vmem:[%s1 + $0x78] sm:$0xf]
  %v70 = vld [vmem:[%s1 + $0x7c] sm:$0xf]
  %v71 = vld [vmem:[%s1 + $0x80] sm:$0xf]
  %v72 = vld [vmem:[%s1 + $0x84] sm:$0xf]
  %v73 = vld [vmem:[%s1 + $0x88] sm:$0xf]
  %v74 = vld [vmem:[%s1 + $0x8c] sm:$0xf]
  %v75 = vld [vmem:[%s1 + $0x90] sm:$0xf]
  %v76 = vld [vmem:[%s1 + $0x94] sm:$0xf]
  %v77 = vld [vmem:[%s1 + $0x98] sm:$0xf]
  %v78 = vld [vmem:[%s1 + $0x9c] sm:$0xf]
  %v79 = vld [vmem:[%s1 + $0xa0] sm:$0xf]
  %v80 = vld [vmem:[%s1 + $0xa4] sm:$0xf]
  %v81 = vld [vmem:[%s1 + $0xa8] sm:$0xf]
  %v82 = vld [vmem:[%s1 + $0xac] sm:$0xf]
  %v83 = vld [vmem:[%s1 + $0xb0] sm:$0xf]
  %v84 = vld [vmem:[%s1 + $0xb4] sm:$0xf]
  %v85 = vld [vmem:[%s1 + $0xb8] sm:$0xf]
  %v86 = vld [vmem:[%s1 + $0xbc] sm:$0xf]
  %v87 = vld [vmem:[%s1 + $0xc0] sm:$0xf]
  %v88 = vld [vmem:[%s1 + $0xc4] sm:$0xf]
  %v89 = vld [vmem:[%s1 + $0xc8] sm:$0xf]
  %v90 = vld [vmem:[%s1 + $0xcc] sm:$0xf]
  %v91 = vld [vmem:[%s1 + $0xd0] sm:$0xf]
  %v92 = vld [vmem:[%s1 + $0xd4] sm:$0xf]
  %v93 = vld [vmem:[%s1 + $0xd8] sm:$0xf]
  %v94 = vld [vmem:[%s1 + $0xdc] sm:$0xf]
  %v95 = vld [vmem:[%s1 + $0xe0] sm:$0xf]
  %v96 = vld [vmem:[%s1 + $0xe4] sm:$0xf]
  %v97 = vld [vmem:[%s1 + $0xe8] sm:$0xf]
  %v98 = vld [vmem:[%s1 + $0xec] sm:$0xf]
  %v99 = vld [vmem:[%s1 + $0xf0] sm:$0xf]
  %v100 = vld [vmem:[%s1 + $0xf4] sm:$0xf]
  %v101 = vld [vmem:[%s1 + $0xf8] sm:$0xf]
  %v102 = vld [vmem:[%s1 + $0xfc] sm:$0xf]
  %v103 = vld [vmem:[%s1 + $0x100] sm:$0xf]
  %v104 = vld [vmem:[%s1 + $0x104] sm:$0xf]
  %v105 = vld [vmem:[%s1 + $0x108] sm:$0xf]
  %v106 = vld [vmem:[%s1 + $0x10c] sm:$0xf]
  %v107 = vld [vmem:[%s1 + $0x110] sm:$0xf]
  %v108 = vld [vmem:[%s1 + $0x114] sm:$0xf]
  %v109 = vld [vmem:[%s1 + $0x118] sm:$0xf]
  %v110 = vld [vmem:[%s1 + $0x11c] sm:$0xf]
  %v111 = vld [vmem:[%s1 + $0x120] sm:$0xf]
  %v112 = vld [vmem:[%s1 + $0x124] sm:$0xf]
  %v113 = vld [vmem:[%s1 + $0x128] sm:$0xf]
  %v114 = vld [vmem:[%s1 + $0x12c] sm:$0xf]
  %v115 = vld [vmem:[%s1 + $0x130] sm:$0xf]
  %v116 = vld [vmem:[%s1 + $0x134] sm:$0xf]
  %v117 = vld [vmem:[%s1 + $0x138] sm:$0xf]
  %v118 = vld [vmem:[%s1 + $0x13c] sm:$0xf]
  %v119 = vld [vmem:[%s1 + $0x140] sm:$0xf]
  %v120 = vld [vmem:[%s1 + $0x144] sm:$0xf]
  %v121 = vld [vmem:[%s1 + $0x148] sm:$0xf]
  %v122 = vld [vmem:[%s1 + $0x14c] sm:$0xf]
  %v123 = vld [vmem:[%s1 + $0x150] sm:$0xf]
  %v124 = vld [vmem:[%s1 + $0x154] sm:$0xf]
  %v125 = vld [vmem:[%s1 + $0x158] sm:$0xf]
  %v126 = vld [vmem:[%s1 + $0x15c] sm:$0xf]
  %v127 = vld [vmem:[%s1 + $0x160] sm:$0xf]
  %v128 = vld [vmem:[%s1 + $0x164] sm:$0xf]
  %v129 = vld [vmem:[%s1 + $0x168] sm:$0xf]
  %v130 = vld [vmem:[%s1 + $0x16c] sm:$0xf]
  %v131 = vld [vmem:[%s1 + $0x170] sm:$0xf]
  %v132 = vld [vmem:[%s1 + $0x174] sm:$0xf]
  %v133 = vld [vmem:[%s1 + $0x178] sm:$0xf]
  %v134 = vld [vmem:[%s1 + $0x17c] sm:$0xf]
  %v135 = vld [vmem:[%s1 + $0x180] sm:$0xf]
  %v136 = vld [vmem:[%s1 + $0x184] sm:$0xf]
  %v137 = vld [vmem:[%s1 + $0x188] sm:$0xf]
  %v138 = vld [vmem:[%s1 + $0x18c] sm:$0xf]
  %v139 = vld [vmem:[%s1 + $0x190] sm:$0xf]
  %v140 = vld [vmem:[%s1 + $0x194] sm:$0xf]
  %v141 = vld [vmem:[%s1 + $0x198] sm:$0xf]
  %v142 = vld [vmem:[%s1 + $0x19c] sm:$0xf]
  %v143 = vld [vmem:[%s1 + $0x1a0] sm:$0xf]
  %v144 = vld [vmem:[%s1 + $0x1a4] sm:$0xf]
  %v145 = vld [vmem:[%s1 + $0x1a8] sm:$0xf]
  %v146 = vld [vmem:[%s1 + $0x1ac] sm:$0xf]
  %v147 = vld [vmem:[%s1 + $0x1b0] sm:$0xf]
  %v148 = vld [vmem:[%s1 + $0x1b4] sm:$0xf]
  %v149 = vld [vmem:[%s1 + $0x1b8] sm:$0xf]
  %v150 = vld [vmem:[%s1 + $0x1bc] sm:$0xf]
  %v151 = vld [vmem:[%s1 + $0x1c0] sm:$0xf]
  %v152 = vld [vmem:[%s1 + $0x1c4] sm:$0xf]
  %v153 = vld [vmem:[%s1 + $0x1c8] sm:$0xf]
  %v154 = vld [vmem:[%s1 + $0x1cc] sm:$0xf]
  %v155 = vld [vmem:[%s1 + $0x1d0] sm:$0xf]
  %v156 = vld [vmem:[%s1 + $0x1d4] sm:$0xf]
  %v157 = vld [vmem:[%s1 + $0x1d8] sm:$0xf]
  %v158 = vld [vmem:[%s1 + $0x1dc] sm:$0xf]
  %v159 = vld [vmem:[%s1 + $0x1e0] sm:$0xf]
  %v160 = vld [vmem:[%s1 + $0x1e4] sm:$0xf]
  %v161 = vld [vmem:[%s1 + $0x1e8] sm:$0xf]
  %v162 = vld [vmem:[%s1 + $0x1ec] sm:$0xf]
  %v163 = vld [vmem:[%s1 + $0x1f0] sm:$0xf]
  %v164 = vld [vmem:[%s1 + $0x1f4] sm:$0xf]
  %v165 = vld [vmem:[%s1 + $0x1f8] sm:$0xf]
  %v166 = vld [vmem:[%s1 + $0x1fc] sm:$0xf]
  %v167 = vld [vmem:[%s1 + $0x200] sm:$0xf]
  %v168 = vld [vmem:[%s1 + $0x204] sm:$0xf]
  %v169 = vld [vmem:[%s1 + $0x208] sm:$0xf]
  %v170 = vld [vmem:[%s1 + $0x20c] sm:$0xf]
  %v171 = vld [vmem:[%s1 + $0x210] sm:$0xf]
  %v172 = vld [vmem:[%s1 + $0x214] sm:$0xf]
  %v173 = vld [vmem:[%s1 + $0x218] sm:$0xf]
  %v174 = vld [vmem:[%s1 + $0x21c] sm:$0xf]
  %v175 = vld [vmem:[%s1 + $0x220] sm:$0xf]
  %v176 = vld [vmem:[%s1 + $0x224] sm:$0xf]
  %v177 = vld [vmem:[%s1 + $0x228] sm:$0xf]
  %v178 = vld [vmem:[%s1 + $0x22c] sm:$0xf]
  %v179 = vld [vmem:[%s1 + $0x230] sm:$0xf]
  %v180 = vld [vmem:[%s1 + $0x234] sm:$0xf]
  %v181 = vld [vmem:[%s1 + $0x238] sm:$0xf]
  %v182 = vld [vmem:[%s1 + $0x23c] sm:$0xf]
  %v183 = vld [vmem:[%s1 + $0x240] sm:$0xf]
  %v184 = vld [vmem:[%s1 + $0x244] sm:$0xf]
  %v185 = vld [vmem:[%s1 + $0x248] sm:$0xf]
  %v186 = vld [vmem:[%s1 + $0x24c] sm:$0xf]
  %v187 = vld [vmem:[%s1 + $0x250] sm:$0xf]
  %v188 = vld [vmem:[%s1 + $0x254] sm:$0xf]
  %v189 = vld [vmem:[%s1 + $0x258] sm:$0xf]
  %v190 = vld [vmem:[%s1 + $0x25c] sm:$0xf]
  %v191 = vld [vmem:[%s1 + $0x260] sm:$0xf]
  %v192 = vld [vmem:[%s1 + $0x264] sm:$0xf]
  %v193 = vld [vmem:[%s1 + $0x268] sm:$0xf]
  %v194 = vld [vmem:[%s1 + $0x26c] sm:$0xf]
  %v195 = vld [vmem:[%s1 + $0x270] sm:$0xf]
  %v196 = vld [vmem:[%s1 + $0x274] sm:$0xf]
  %v197 = vld [vmem:[%s1 + $0x278] sm:$0xf]
  %v198 = vld [vmem:[%s1 + $0x27c] sm:$0xf]
  %v199 = vld [vmem:[%s1 + $0x280] sm:$0xf]
  %v200 = vld [vmem:[%s1 + $0x284] sm:$0xf]
  %v201 = vld [vmem:[%s1 + $0x288] sm:$0xf]
  %v202 = vld [vmem:[%s1 + $0x28c] sm:$0xf]
  %v203 = vld [vmem:[%s1 + $0x290] sm:$0xf]
  %v204 = vld [vmem:[%s1 + $0x294] sm:$0xf]
  %v205 = vld [vmem:[%s1 + $0x298] sm:$0xf]
  %v206 = vld [vmem:[%s1 + $0x29c] sm:$0xf]
  %v207 = vld [vmem:[%s1 + $0x2a0] sm:$0xf]
  %v208 = vld [vmem:[%s1 + $0x2a4] sm:$0xf]
  %v209 = vld [vmem:[%s1 + $0x2a8] sm:$0xf]
  %v210 = vld [vmem:[%s1 + $0x2ac] sm:$0xf]
  %v211 = vld [vmem:[%s1 + $0x2b0] sm:$0xf]
  %v212 = vld [vmem:[%s1 + $0x2b4] sm:$0xf]
  %v213 = vld [vmem:[%s1 + $0x2b8] sm:$0xf]
  %v214 = vld [vmem:[%s1 + $0x2bc] sm:$0xf]
  %v215 = vld [vmem:[%s1 + $0x2c0] sm:$0xf]
  %v216 = vld [vmem:[%s1 + $0x2c4] sm:$0xf]
  %v217 = vld [vmem:[%s1 + $0x2c8] sm:$0xf]
  %v218 = vld [vmem:[%s1 + $0x2cc] sm:$0xf]
  %v219 = vld [vmem:[%s1 + $0x2d0] sm:$0xf]
  %v220 = vld [vmem:[%s1 + $0x2d4] sm:$0xf]
  %v221 = vld [vmem:[%s1 + $0x2d8] sm:$0xf]
  %v222 = vld [vmem:[%s1 + $0x2dc] sm:$0xf]
  %v223 = vld [vmem:[%s1 + $0x2e0] sm:$0xf]
  %v224 = vld [vmem:[%s1 + $0x2e4] sm:$0xf]
  %v225 = vld [vmem:[%s1 + $0x2e8] sm:$0xf]
  %v226 = vld [vmem:[%s1 + $0x2ec] sm:$0xf]
  %v227 = vld [vmem:[%s1 + $0x2f0] sm:$0xf]
  %v228 = vld [vmem:[%s1 + $0x2f4] sm:$0xf]
  %v229 = vld [vmem:[%s1 + $0x2f8] sm:$0xf]
  %v230 = vld [vmem:[%s1 + $0x2fc] sm:$0xf]
  %v231 = vld [vmem:[%s1 + $0x300] sm:$0xf]
  %v232 = vld [vmem:[%s1 + $0x304] sm:$0xf]
  %v233 = vld [vmem:[%s1 + $0x308] sm:$0xf]
  %v234 = vld [vmem:[%s1 + $0x30c] sm:$0xf]
  %v235 = vld [vmem:[%s1 + $0x310] sm:$0xf]
  %v236 = vld [vmem:[%s1 + $0x314] sm:$0xf]
  %v237 = vld [vmem:[%s1 + $0x318] sm:$0xf]
  %v238 = vld [vmem:[%s1 + $0x31c] sm:$0xf]
  %v239 = vld [vmem:[%s1 + $0x320] sm:$0xf]
  %v240 = vld [vmem:[%s1 + $0x324] sm:$0xf]
  %v241 = vld [vmem:[%s1 + $0x328] sm:$0xf]
  %v242 = vld [vmem:[%s1 + $0x32c] sm:$0xf]
  %v243 = vld [vmem:[%s1 + $0x330] sm:$0xf]
  %v244 = vld [vmem:[%s1 + $0x334] sm:$0xf]
  %v245 = vld [vmem:[%s1 + $0x338] sm:$0xf]
  %v246 = vld [vmem:[%s1 + $0x33c] sm:$0xf]
  %v247 = vld [vmem:[%s1 + $0x340] sm:$0xf]
  %v248 = vld [vmem:[%s1 + $0x344] sm:$0xf]
  %v249 = vld [vmem:[%s1 + $0x348] sm:$0xf]
  %v250 = vld [vmem:[%s1 + $0x34c] sm:$0xf]
  %v251 = vld [vmem:[%s1 + $0x350] sm:$0xf]
  %v252 = vld [vmem:[%s1 + $0x354] sm:$0xf]
  %v253 = vld [vmem:[%s1 + $0x358] sm:$0xf]
  %v254 = vld [vmem:[%s1 + $0x35c] sm:$0xf]
  %v255 = vld [vmem:[%s1 + $0x360] sm:$0xf]
  %v256 = vld [vmem:[%s1 + $0x364] sm:$0xf]
  %v257 = vld [vmem:[%s1 + $0x368] sm:$0xf]
  %v258 = vld [vmem:[%s1 + $0x36c] sm:$0xf]
  %v259 = vld [vmem:[%s1 + $0x370] sm:$0xf]
  %v260 = vld [vmem:[%s1 + $0x374] sm:$0xf]
  %v261 = vld [vmem:[%s1 + $0x378] sm:$0xf]
  %v262 = vld [vmem:[%s1 + $0x37c] sm:$0xf]
  %v263 = vld [vmem:[%s1 + $0x380] sm:$0xf]
  %v264 = vld [vmem:[%s1 + $0x384] sm:$0xf]
  %v265 = vld [vmem:[%s1 + $0x388] sm:$0xf]
  %v266 = vld [vmem:[%s1 + $0x38c] sm:$0xf]
  %v267 = vld [vmem:[%s1 + $0x390] sm:$0xf]
  %v268 = vld [vmem:[%s1 + $0x394] sm:$0xf]
  %v269 = vld [vmem:[%s1 + $0x398] sm:$0xf]
  %v270 = vld [vmem:[%s1 + $0x39c] sm:$0xf]
  %v271 = vld [vmem:[%s1 + $0x3a0] sm:$0xf]
  %v272 = vld [vmem:[%s1 + $0x3a4] sm:$0xf]
  %v273 = vld [vmem:[%s1 + $0x3a8] sm:$0xf]
  %v274 = vld [vmem:[%s1 + $0x3ac] sm:$0xf]
  %v275 = vld [vmem:[%s1 + $0x3b0] sm:$0xf]
  %v276 = vld [vmem:[%s1 + $0x3b4] sm:$0xf]
  %v277 = vld [vmem:[%s1 + $0x3b8] sm:$0xf]
  %v278 = vld [vmem:[%s1 + $0x3bc] sm:$0xf]
  %v279 = vld [vmem:[%s1 + $0x3c0] sm:$0xf]
  %v280 = vld [vmem:[%s1 + $0x3c4] sm:$0xf]
  %v281 = vld [vmem:[%s1 + $0x3c8] sm:$0xf]
  %v282 = vld [vmem:[%s1 + $0x3cc] sm:$0xf]
  %v283 = vld [vmem:[%s1 + $0x3d0] sm:$0xf]
  %v284 = vld [vmem:[%s1 + $0x3d4] sm:$0xf]
  %v285 = vld [vmem:[%s1 + $0x3d8] sm:$0xf]
  %v286 = vld [vmem:[%s1 + $0x3dc] sm:$0xf]
  %v287 = vld [vmem:[%s1 + $0x3e0] sm:$0xf]
  %v288 = vld [vmem:[%s1 + $0x3e4] sm:$0xf]
  %v289 = vld [vmem:[%s1 + $0x3e8] sm:$0xf]
  %v290 = vld [vmem:[%s1 + $0x3ec] sm:$0xf]
  %v291 = vld [vmem:[%s1 + $0x3f0] sm:$0xf]
  %v292 = vld [vmem:[%s1 + $0x3f4] sm:$0xf]
  %v293 = vld [vmem:[%s1 + $0x3f8] sm:$0xf]
  %v294 = vld [vmem:[%s1 + $0x3fc] sm:$0xf]
  %v295 = vld [vmem:[%s2] sm:$0x1]
  %v297 = vlaneseq
  %v298 = vshrl.u32 %v297, 7
  %v299 = vsub.s32 0, %v298
  %v300 = vrot.slane %v295, %v299
  %v326 = vunpack.c.l.b16 %v15
  %v327 = vunpack.c.h.b16 %v15
  %v328 = vunpack.c.l.b16 %v16
  %v329 = vunpack.c.h.b16 %v16
  %v330 = vunpack.c.l.b16 %v17
  %v331 = vunpack.c.h.b16 %v17
  %v332 = vunpack.c.l.b16 %v18
  %v333 = vunpack.c.h.b16 %v18
  %v334 = vunpack.c.l.b16 %v19
  %v335 = vunpack.c.h.b16 %v19
  %v336 = vunpack.c.l.b16 %v20
  %v337 = vunpack.c.h.b16 %v20
  %v338 = vunpack.c.l.b16 %v21
  %v339 = vunpack.c.h.b16 %v21
  %v340 = vunpack.c.l.b16 %v22
  %v341 = vunpack.c.h.b16 %v22
  %v342 = vunpack.c.l.b16 %v23
  %v343 = vunpack.c.h.b16 %v23
  %v344 = vunpack.c.l.b16 %v24
  %v345 = vunpack.c.h.b16 %v24
  %v346 = vunpack.c.l.b16 %v25
  %v347 = vunpack.c.h.b16 %v25
  %v348 = vunpack.c.l.b16 %v26
  %v349 = vunpack.c.h.b16 %v26
  %v350 = vunpack.c.l.b16 %v27
  %v351 = vunpack.c.h.b16 %v27
  %v352 = vunpack.c.l.b16 %v28
  %v353 = vunpack.c.h.b16 %v28
  %v354 = vunpack.c.l.b16 %v29
  %v355 = vunpack.c.h.b16 %v29
  %v356 = vunpack.c.l.b16 %v30
  %v357 = vunpack.c.h.b16 %v30
  %v358 = vunpack.c.l.b16 %v31
  %v359 = vunpack.c.h.b16 %v31
  %v360 = vunpack.c.l.b16 %v32
  %v361 = vunpack.c.h.b16 %v32
  %v362 = vunpack.c.l.b16 %v33
  %v363 = vunpack.c.h.b16 %v33
  %v364 = vunpack.c.l.b16 %v34
  %v365 = vunpack.c.h.b16 %v34
  %v366 = vunpack.c.l.b16 %v35
  %v367 = vunpack.c.h.b16 %v35
  %v368 = vunpack.c.l.b16 %v36
  %v369 = vunpack.c.h.b16 %v36
  %v370 = vunpack.c.l.b16 %v37
  %v371 = vunpack.c.h.b16 %v37
  %v372 = vunpack.c.l.b16 %v38
  %v373 = vunpack.c.h.b16 %v38
  %v374 = vpack.c.b16 %v342, %v326
  %v375 = vpack.c.b16 %v343, %v327
  %v376 = vpack.c.b16 %v344, %v328
  %v377 = vpack.c.b16 %v345, %v329
  %v378 = vpack.c.b16 %v346, %v330
  %v379 = vpack.c.b16 %v347, %v331
  %v380 = vpack.c.b16 %v348, %v332
  %v381 = vpack.c.b16 %v349, %v333
  %v382 = vpack.c.b16 %v350, %v334
  %v383 = vpack.c.b16 %v351, %v335
  %v384 = vpack.c.b16 %v352, %v336
  %v385 = vpack.c.b16 %v353, %v337
  %v386 = vpack.c.b16 %v354, %v338
  %v387 = vpack.c.b16 %v355, %v339
  %v388 = vpack.c.b16 %v356, %v340
  %v389 = vpack.c.b16 %v357, %v341
  %v390 = vpack.c.b16 %v358, %v358
  %v391 = vpack.c.b16 %v359, %v359
  %v392 = vpack.c.b16 %v360, %v360
  %v393 = vpack.c.b16 %v361, %v361
  %v394 = vpack.c.b16 %v362, %v362
  %v395 = vpack.c.b16 %v363, %v363
  %v396 = vpack.c.b16 %v364, %v364
  %v397 = vpack.c.b16 %v365, %v365
  %v398 = vpack.c.b16 %v366, %v366
  %v399 = vpack.c.b16 %v367, %v367
  %v400 = vpack.c.b16 %v368, %v368
  %v401 = vpack.c.b16 %v369, %v369
  %v402 = vpack.c.b16 %v370, %v370
  %v403 = vpack.c.b16 %v371, %v371
  %v404 = vpack.c.b16 %v372, %v372
  %v405 = vpack.c.b16 %v373, %v373
  %v694 = vunpack.c.l.b16 %v39
  %v695 = vunpack.c.l.b16 %v40
  %v696 = vunpack.c.l.b16 %v41
  %v697 = vunpack.c.l.b16 %v42
  %v698 = vunpack.c.l.b16 %v43
  %v699 = vunpack.c.l.b16 %v44
  %v700 = vunpack.c.l.b16 %v45
  %v701 = vunpack.c.l.b16 %v46
  %v702 = vunpack.c.l.b16 %v47
  %v703 = vunpack.c.l.b16 %v48
  %v704 = vunpack.c.l.b16 %v49
  %v705 = vunpack.c.l.b16 %v50
  %v706 = vunpack.c.l.b16 %v51
  %v707 = vunpack.c.l.b16 %v52
  %v708 = vunpack.c.l.b16 %v53
  %v709 = vunpack.c.l.b16 %v54
  %v710 = vunpack.c.l.b16 %v55
  %v711 = vunpack.c.l.b16 %v56
  %v712 = vunpack.c.l.b16 %v57
  %v713 = vunpack.c.l.b16 %v58
  %v714 = vunpack.c.l.b16 %v59
  %v715 = vunpack.c.l.b16 %v60
  %v716 = vunpack.c.l.b16 %v61
  %v717 = vunpack.c.l.b16 %v62
  %v718 = vunpack.c.l.b16 %v63
  %v719 = vunpack.c.l.b16 %v64
  %v720 = vunpack.c.l.b16 %v65
  %v721 = vunpack.c.l.b16 %v66
  %v722 = vunpack.c.l.b16 %v67
  %v723 = vunpack.c.l.b16 %v68
  %v724 = vunpack.c.l.b16 %v69
  %v725 = vunpack.c.l.b16 %v70
  %v726 = vunpack.c.l.b16 %v71
  %v727 = vunpack.c.l.b16 %v72
  %v728 = vunpack.c.l.b16 %v73
  %v729 = vunpack.c.l.b16 %v74
  %v730 = vunpack.c.l.b16 %v75
  %v731 = vunpack.c.l.b16 %v76
  %v732 = vunpack.c.l.b16 %v77
  %v733 = vunpack.c.l.b16 %v78
  %v734 = vunpack.c.l.b16 %v79
  %v735 = vunpack.c.l.b16 %v80
  %v736 = vunpack.c.l.b16 %v81
  %v737 = vunpack.c.l.b16 %v82
  %v738 = vunpack.c.l.b16 %v83
  %v739 = vunpack.c.l.b16 %v84
  %v740 = vunpack.c.l.b16 %v85
  %v741 = vunpack.c.l.b16 %v86
  %v742 = vunpack.c.l.b16 %v87
  %v743 = vunpack.c.l.b16 %v88
  %v744 = vunpack.c.l.b16 %v89
  %v745 = vunpack.c.l.b16 %v90
  %v746 = vunpack.c.l.b16 %v91
  %v747 = vunpack.c.l.b16 %v92
  %v748 = vunpack.c.l.b16 %v93
  %v749 = vunpack.c.l.b16 %v94
  %v750 = vunpack.c.l.b16 %v95
  %v751 = vunpack.c.l.b16 %v96
  %v752 = vunpack.c.l.b16 %v97
  %v753 = vunpack.c.l.b16 %v98
  %v754 = vunpack.c.l.b16 %v99
  %v755 = vunpack.c.l.b16 %v100
  %v756 = vunpack.c.l.b16 %v101
  %v757 = vunpack.c.l.b16 %v102
  %v758 = vunpack.c.l.b16 %v103
  %v759 = vunpack.c.l.b16 %v104
  %v760 = vunpack.c.l.b16 %v105
  %v761 = vunpack.c.l.b16 %v106
  %v762 = vunpack.c.l.b16 %v107
  %v763 = vunpack.c.l.b16 %v108
  %v764 = vunpack.c.l.b16 %v109
  %v765 = vunpack.c.l.b16 %v110
  %v766 = vunpack.c.l.b16 %v111
  %v767 = vunpack.c.l.b16 %v112
  %v768 = vunpack.c.l.b16 %v113
  %v769 = vunpack.c.l.b16 %v114
  %v770 = vunpack.c.l.b16 %v115
  %v771 = vunpack.c.l.b16 %v116
  %v772 = vunpack.c.l.b16 %v117
  %v773 = vunpack.c.l.b16 %v118
  %v774 = vunpack.c.l.b16 %v119
  %v775 = vunpack.c.l.b16 %v120
  %v776 = vunpack.c.l.b16 %v121
  %v777 = vunpack.c.l.b16 %v122
  %v778 = vunpack.c.l.b16 %v123
  %v779 = vunpack.c.l.b16 %v124
  %v780 = vunpack.c.l.b16 %v125
  %v781 = vunpack.c.l.b16 %v126
  %v782 = vunpack.c.l.b16 %v127
  %v783 = vunpack.c.l.b16 %v128
  %v784 = vunpack.c.l.b16 %v129
  %v785 = vunpack.c.l.b16 %v130
  %v786 = vunpack.c.l.b16 %v131
  %v787 = vunpack.c.l.b16 %v132
  %v788 = vunpack.c.l.b16 %v133
  %v789 = vunpack.c.l.b16 %v134
  %v790 = vunpack.c.l.b16 %v135
  %v791 = vunpack.c.l.b16 %v136
  %v792 = vunpack.c.l.b16 %v137
  %v793 = vunpack.c.l.b16 %v138
  %v794 = vunpack.c.l.b16 %v139
  %v795 = vunpack.c.l.b16 %v140
  %v796 = vunpack.c.l.b16 %v141
  %v797 = vunpack.c.l.b16 %v142
  %v798 = vunpack.c.l.b16 %v143
  %v799 = vunpack.c.l.b16 %v144
  %v800 = vunpack.c.l.b16 %v145
  %v801 = vunpack.c.l.b16 %v146
  %v802 = vunpack.c.l.b16 %v147
  %v803 = vunpack.c.l.b16 %v148
  %v804 = vunpack.c.l.b16 %v149
  %v805 = vunpack.c.l.b16 %v150
  %v806 = vunpack.c.l.b16 %v151
  %v807 = vunpack.c.l.b16 %v152
  %v808 = vunpack.c.l.b16 %v153
  %v809 = vunpack.c.l.b16 %v154
  %v810 = vunpack.c.l.b16 %v155
  %v811 = vunpack.c.l.b16 %v156
  %v812 = vunpack.c.l.b16 %v157
  %v813 = vunpack.c.l.b16 %v158
  %v814 = vunpack.c.l.b16 %v159
  %v815 = vunpack.c.l.b16 %v160
  %v816 = vunpack.c.l.b16 %v161
  %v817 = vunpack.c.l.b16 %v162
  %v818 = vunpack.c.l.b16 %v163
  %v819 = vunpack.c.l.b16 %v164
  %v820 = vunpack.c.l.b16 %v165
  %v821 = vunpack.c.l.b16 %v166
  %v822 = vunpack.c.l.b16 %v167
  %v823 = vunpack.c.l.b16 %v168
  %v824 = vunpack.c.l.b16 %v169
  %v825 = vunpack.c.l.b16 %v170
  %v826 = vunpack.c.l.b16 %v171
  %v827 = vunpack.c.l.b16 %v172
  %v828 = vunpack.c.l.b16 %v173
  %v829 = vunpack.c.l.b16 %v174
  %v830 = vunpack.c.l.b16 %v175
  %v831 = vunpack.c.l.b16 %v176
  %v832 = vunpack.c.l.b16 %v177
  %v833 = vunpack.c.l.b16 %v178
  %v834 = vunpack.c.l.b16 %v179
  %v835 = vunpack.c.l.b16 %v180
  %v836 = vunpack.c.l.b16 %v181
  %v837 = vunpack.c.l.b16 %v182
  %v838 = vunpack.c.l.b16 %v183
  %v839 = vunpack.c.l.b16 %v184
  %v840 = vunpack.c.l.b16 %v185
  %v841 = vunpack.c.l.b16 %v186
  %v842 = vunpack.c.l.b16 %v187
  %v843 = vunpack.c.l.b16 %v188
  %v844 = vunpack.c.l.b16 %v189
  %v845 = vunpack.c.l.b16 %v190
  %v846 = vunpack.c.l.b16 %v191
  %v847 = vunpack.c.l.b16 %v192
  %v848 = vunpack.c.l.b16 %v193
  %v849 = vunpack.c.l.b16 %v194
  %v850 = vunpack.c.l.b16 %v195
  %v851 = vunpack.c.l.b16 %v196
  %v852 = vunpack.c.l.b16 %v197
  %v853 = vunpack.c.l.b16 %v198
  %v854 = vunpack.c.l.b16 %v199
  %v855 = vunpack.c.l.b16 %v200
  %v856 = vunpack.c.l.b16 %v201
  %v857 = vunpack.c.l.b16 %v202
  %v858 = vunpack.c.l.b16 %v203
  %v859 = vunpack.c.l.b16 %v204
  %v860 = vunpack.c.l.b16 %v205
  %v861 = vunpack.c.l.b16 %v206
  %v862 = vunpack.c.l.b16 %v207
  %v863 = vunpack.c.l.b16 %v208
  %v864 = vunpack.c.l.b16 %v209
  %v865 = vunpack.c.l.b16 %v210
  %v866 = vunpack.c.l.b16 %v211
  %v867 = vunpack.c.l.b16 %v212
  %v868 = vunpack.c.l.b16 %v213
  %v869 = vunpack.c.l.b16 %v214
  %v870 = vunpack.c.l.b16 %v215
  %v871 = vunpack.c.l.b16 %v216
  %v872 = vunpack.c.l.b16 %v217
  %v873 = vunpack.c.l.b16 %v218
  %v874 = vunpack.c.l.b16 %v219
  %v875 = vunpack.c.l.b16 %v220
  %v876 = vunpack.c.l.b16 %v221
  %v877 = vunpack.c.l.b16 %v222
  %v878 = vunpack.c.l.b16 %v223
  %v879 = vunpack.c.l.b16 %v224
  %v880 = vunpack.c.l.b16 %v225
  %v881 = vunpack.c.l.b16 %v226
  %v882 = vunpack.c.l.b16 %v227
  %v883 = vunpack.c.l.b16 %v228
  %v884 = vunpack.c.l.b16 %v229
  %v885 = vunpack.c.l.b16 %v230
  %v886 = vunpack.c.l.b16 %v231
  %v887 = vunpack.c.l.b16 %v232
  %v888 = vunpack.c.l.b16 %v233
  %v889 = vunpack.c.l.b16 %v234
  %v890 = vunpack.c.l.b16 %v235
  %v891 = vunpack.c.l.b16 %v236
  %v892 = vunpack.c.l.b16 %v237
  %v893 = vunpack.c.l.b16 %v238
  %v894 = vunpack.c.l.b16 %v239
  %v895 = vunpack.c.l.b16 %v240
  %v896 = vunpack.c.l.b16 %v241
  %v897 = vunpack.c.l.b16 %v242
  %v898 = vunpack.c.l.b16 %v243
  %v899 = vunpack.c.l.b16 %v244
  %v900 = vunpack.c.l.b16 %v245
  %v901 = vunpack.c.l.b16 %v246
  %v902 = vunpack.c.l.b16 %v247
  %v903 = vunpack.c.l.b16 %v248
  %v904 = vunpack.c.l.b16 %v249
  %v905 = vunpack.c.l.b16 %v250
  %v906 = vunpack.c.l.b16 %v251
  %v907 = vunpack.c.l.b16 %v252
  %v908 = vunpack.c.l.b16 %v253
  %v909 = vunpack.c.l.b16 %v254
  %v910 = vunpack.c.l.b16 %v255
  %v911 = vunpack.c.l.b16 %v256
  %v912 = vunpack.c.l.b16 %v257
  %v913 = vunpack.c.l.b16 %v258
  %v914 = vunpack.c.l.b16 %v259
  %v915 = vunpack.c.l.b16 %v260
  %v916 = vunpack.c.l.b16 %v261
  %v917 = vunpack.c.l.b16 %v262
  %v918 = vunpack.c.l.b16 %v263
  %v919 = vunpack.c.l.b16 %v264
  %v920 = vunpack.c.l.b16 %v265
  %v921 = vunpack.c.l.b16 %v266
  %v922 = vunpack.c.l.b16 %v267
  %v923 = vunpack.c.l.b16 %v268
  %v924 = vunpack.c.l.b16 %v269
  %v925 = vunpack.c.l.b16 %v270
  %v926 = vunpack.c.l.b16 %v271
  %v927 = vunpack.c.l.b16 %v272
  %v928 = vunpack.c.l.b16 %v273
  %v929 = vunpack.c.l.b16 %v274
  %v930 = vunpack.c.l.b16 %v275
  %v931 = vunpack.c.l.b16 %v276
  %v932 = vunpack.c.l.b16 %v277
  %v933 = vunpack.c.l.b16 %v278
  %v934 = vunpack.c.l.b16 %v279
  %v935 = vunpack.c.l.b16 %v280
  %v936 = vunpack.c.l.b16 %v281
  %v937 = vunpack.c.l.b16 %v282
  %v938 = vunpack.c.l.b16 %v283
  %v939 = vunpack.c.l.b16 %v284
  %v940 = vunpack.c.l.b16 %v285
  %v941 = vunpack.c.l.b16 %v286
  %v942 = vunpack.c.l.b16 %v287
  %v943 = vunpack.c.l.b16 %v288
  %v944 = vunpack.c.l.b16 %v289
  %v945 = vunpack.c.l.b16 %v290
  %v946 = vunpack.c.l.b16 %v291
  %v947 = vunpack.c.l.b16 %v292
  %v948 = vunpack.c.l.b16 %v293
  %v949 = vunpack.c.l.b16 %v294
  %v950 = vpack.c.b16 %v695, %v694
  %v951 = vpack.c.b16 %v697, %v696
  %v952 = vpack.c.b16 %v699, %v698
  %v953 = vpack.c.b16 %v701, %v700
  %v954 = vpack.c.b16 %v703, %v702
  %v955 = vpack.c.b16 %v705, %v704
  %v956 = vpack.c.b16 %v707, %v706
  %v957 = vpack.c.b16 %v709, %v708
  %v958 = vpack.c.b16 %v711, %v710
  %v959 = vpack.c.b16 %v713, %v712
  %v960 = vpack.c.b16 %v715, %v714
  %v961 = vpack.c.b16 %v717, %v716
  %v962 = vpack.c.b16 %v719, %v718
  %v963 = vpack.c.b16 %v721, %v720
  %v964 = vpack.c.b16 %v723, %v722
  %v965 = vpack.c.b16 %v725, %v724
  %v966 = vpack.c.b16 %v727, %v726
  %v967 = vpack.c.b16 %v729, %v728
  %v968 = vpack.c.b16 %v731, %v730
  %v969 = vpack.c.b16 %v733, %v732
  %v970 = vpack.c.b16 %v735, %v734
  %v971 = vpack.c.b16 %v737, %v736
  %v972 = vpack.c.b16 %v739, %v738
  %v973 = vpack.c.b16 %v741, %v740
  %v974 = vpack.c.b16 %v743, %v742
  %v975 = vpack.c.b16 %v745, %v744
  %v976 = vpack.c.b16 %v747, %v746
  %v977 = vpack.c.b16 %v749, %v748
  %v978 = vpack.c.b16 %v751, %v750
  %v979 = vpack.c.b16 %v753, %v752
  %v980 = vpack.c.b16 %v755, %v754
  %v981 = vpack.c.b16 %v757, %v756
  %v982 = vpack.c.b16 %v759, %v758
  %v983 = vpack.c.b16 %v761, %v760
  %v984 = vpack.c.b16 %v763, %v762
  %v985 = vpack.c.b16 %v765, %v764
  %v986 = vpack.c.b16 %v767, %v766
  %v987 = vpack.c.b16 %v769, %v768
  %v988 = vpack.c.b16 %v771, %v770
  %v989 = vpack.c.b16 %v773, %v772
  %v990 = vpack.c.b16 %v775, %v774
  %v991 = vpack.c.b16 %v777, %v776
  %v992 = vpack.c.b16 %v779, %v778
  %v993 = vpack.c.b16 %v781, %v780
  %v994 = vpack.c.b16 %v783, %v782
  %v995 = vpack.c.b16 %v785, %v784
  %v996 = vpack.c.b16 %v787, %v786
  %v997 = vpack.c.b16 %v789, %v788
  %v998 = vpack.c.b16 %v791, %v790
  %v999 = vpack.c.b16 %v793, %v792
  %v1000 = vpack.c.b16 %v795, %v794
  %v1001 = vpack.c.b16 %v797, %v796
  %v1002 = vpack.c.b16 %v799, %v798
  %v1003 = vpack.c.b16 %v801, %v800
  %v1004 = vpack.c.b16 %v803, %v802
  %v1005 = vpack.c.b16 %v805, %v804
  %v1006 = vpack.c.b16 %v807, %v806
  %v1007 = vpack.c.b16 %v809, %v808
  %v1008 = vpack.c.b16 %v811, %v810
  %v1009 = vpack.c.b16 %v813, %v812
  %v1010 = vpack.c.b16 %v815, %v814
  %v1011 = vpack.c.b16 %v817, %v816
  %v1012 = vpack.c.b16 %v819, %v818
  %v1013 = vpack.c.b16 %v821, %v820
  %v1014 = vpack.c.b16 %v823, %v822
  %v1015 = vpack.c.b16 %v825, %v824
  %v1016 = vpack.c.b16 %v827, %v826
  %v1017 = vpack.c.b16 %v829, %v828
  %v1018 = vpack.c.b16 %v831, %v830
  %v1019 = vpack.c.b16 %v833, %v832
  %v1020 = vpack.c.b16 %v835, %v834
  %v1021 = vpack.c.b16 %v837, %v836
  %v1022 = vpack.c.b16 %v839, %v838
  %v1023 = vpack.c.b16 %v841, %v840
  %v1024 = vpack.c.b16 %v843, %v842
  %v1025 = vpack.c.b16 %v845, %v844
  %v1026 = vpack.c.b16 %v847, %v846
  %v1027 = vpack.c.b16 %v849, %v848
  %v1028 = vpack.c.b16 %v851, %v850
  %v1029 = vpack.c.b16 %v853, %v852
  %v1030 = vpack.c.b16 %v855, %v854
  %v1031 = vpack.c.b16 %v857, %v856
  %v1032 = vpack.c.b16 %v859, %v858
  %v1033 = vpack.c.b16 %v861, %v860
  %v1034 = vpack.c.b16 %v863, %v862
  %v1035 = vpack.c.b16 %v865, %v864
  %v1036 = vpack.c.b16 %v867, %v866
  %v1037 = vpack.c.b16 %v869, %v868
  %v1038 = vpack.c.b16 %v871, %v870
  %v1039 = vpack.c.b16 %v873, %v872
  %v1040 = vpack.c.b16 %v875, %v874
  %v1041 = vpack.c.b16 %v877, %v876
  %v1042 = vpack.c.b16 %v879, %v878
  %v1043 = vpack.c.b16 %v881, %v880
  %v1044 = vpack.c.b16 %v883, %v882
  %v1045 = vpack.c.b16 %v885, %v884
  %v1046 = vpack.c.b16 %v887, %v886
  %v1047 = vpack.c.b16 %v889, %v888
  %v1048 = vpack.c.b16 %v891, %v890
  %v1049 = vpack.c.b16 %v893, %v892
  %v1050 = vpack.c.b16 %v895, %v894
  %v1051 = vpack.c.b16 %v897, %v896
  %v1052 = vpack.c.b16 %v899, %v898
  %v1053 = vpack.c.b16 %v901, %v900
  %v1054 = vpack.c.b16 %v903, %v902
  %v1055 = vpack.c.b16 %v905, %v904
  %v1056 = vpack.c.b16 %v907, %v906
  %v1057 = vpack.c.b16 %v909, %v908
  %v1058 = vpack.c.b16 %v911, %v910
  %v1059 = vpack.c.b16 %v913, %v912
  %v1060 = vpack.c.b16 %v915, %v914
  %v1061 = vpack.c.b16 %v917, %v916
  %v1062 = vpack.c.b16 %v919, %v918
  %v1063 = vpack.c.b16 %v921, %v920
  %v1064 = vpack.c.b16 %v923, %v922
  %v1065 = vpack.c.b16 %v925, %v924
  %v1066 = vpack.c.b16 %v927, %v926
  %v1067 = vpack.c.b16 %v929, %v928
  %v1068 = vpack.c.b16 %v931, %v930
  %v1069 = vpack.c.b16 %v933, %v932
  %v1070 = vpack.c.b16 %v935, %v934
  %v1071 = vpack.c.b16 %v937, %v936
  %v1072 = vpack.c.b16 %v939, %v938
  %v1073 = vpack.c.b16 %v941, %v940
  %v1074 = vpack.c.b16 %v943, %v942
  %v1075 = vpack.c.b16 %v945, %v944
  %v1076 = vpack.c.b16 %v947, %v946
  %v1077 = vpack.c.b16 %v949, %v948
  %1206 = vmatprep.subr.bf16.mxu0 0
  %1207 = vmatpush1.bf16.msra.mxu0 %v950
  %1208 = vmatprep.subr.bf16.mxu0 0
  %1209 = vmatpush1.bf16.msra.mxu0 %v951
  %1210 = vmatprep.subr.bf16.mxu0 0
  %1211 = vmatpush1.bf16.msra.mxu0 %v952
  %1212 = vmatprep.subr.bf16.mxu0 0
  %1213 = vmatpush1.bf16.msra.mxu0 %v953
  %1214 = vmatprep.subr.bf16.mxu0 0
  %1215 = vmatpush1.bf16.msra.mxu0 %v954
  %1216 = vmatprep.subr.bf16.mxu0 0
  %1217 = vmatpush1.bf16.msra.mxu0 %v955
  %1218 = vmatprep.subr.bf16.mxu0 0
  %1219 = vmatpush1.bf16.msra.mxu0 %v956
  %1220 = vmatprep.subr.bf16.mxu0 0
  %1221 = vmatpush1.bf16.msra.mxu0 %v957
  %1222 = vmatprep.subr.bf16.mxu0 0
  %1223 = vmatpush1.bf16.msra.mxu0 %v958
  %1224 = vmatprep.subr.bf16.mxu0 0
  %1225 = vmatpush1.bf16.msra.mxu0 %v959
  %1226 = vmatprep.subr.bf16.mxu0 0
  %1227 = vmatpush1.bf16.msra.mxu0 %v960
  %1228 = vmatprep.subr.bf16.mxu0 0
  %1229 = vmatpush1.bf16.msra.mxu0 %v961
  %1230 = vmatprep.subr.bf16.mxu0 0
  %1231 = vmatpush1.bf16.msra.mxu0 %v962
  %1232 = vmatprep.subr.bf16.mxu0 0
  %1233 = vmatpush1.bf16.msra.mxu0 %v963
  %1234 = vmatprep.subr.bf16.mxu0 0
  %1235 = vmatpush1.bf16.msra.mxu0 %v964
  %1236 = vmatprep.subr.bf16.mxu0 0
  %1237 = vmatpush1.bf16.msra.mxu0 %v965
  %1238 = vmatprep.mubr.bf16.mxu0 %v375
  %1239 = vmatmul.mubr.bf16.gmra.mrb[0].mxu0 %v374
  %v1240 = vpop.f32.mrb[0].mxu0
  %v1241 = vadd.f32 %v300, %v1240
  %v1242 = vpop.f32.mrb[0].mxu0
  %v1243 = vpop.f32.mrb[0].mxu0
  %v1244 = vadd.f32 %v300, %v1243
  %v1245 = vpop.f32.mrb[0].mxu0
  %1246 = vmatprep.mubr.bf16.mxu0 %v391
  %1247 = vmatmul.mubr.bf16.gmra.mrb[0].mxu0 %v390
  %v1248 = vpop.f32.mrb[0].mxu0
  %v1249 = vadd.f32 %v300, %v1248
  %v1250 = vpop.f32.mrb[0].mxu0
  %v1251 = vpop.f32.mrb[0].mxu0
  %v1252 = vpop.f32.mrb[0].mxu0
  %1253 = vdwg.mxu0
  %1254 = vmatprep.subr.bf16.mxu0 0
  %1255 = vmatpush1.bf16.msra.mxu0 %v966
  %1256 = vmatprep.subr.bf16.mxu0 0
  %1257 = vmatpush1.bf16.msra.mxu0 %v967
  %1258 = vmatprep.subr.bf16.mxu0 0
  %1259 = vmatpush1.bf16.msra.mxu0 %v968
  %1260 = vmatprep.subr.bf16.mxu0 0
  %1261 = vmatpush1.bf16.msra.mxu0 %v969
  %1262 = vmatprep.subr.bf16.mxu0 0
  %1263 = vmatpush1.bf16.msra.mxu0 %v970
  %1264 = vmatprep.subr.bf16.mxu0 0
  %1265 = vmatpush1.bf16.msra.mxu0 %v971
  %1266 = vmatprep.subr.bf16.mxu0 0
  %1267 = vmatpush1.bf16.msra.mxu0 %v972
  %1268 = vmatprep.subr.bf16.mxu0 0
  %1269 = vmatpush1.bf16.msra.mxu0 %v973
  %1270 = vmatprep.subr.bf16.mxu0 0
  %1271 = vmatpush1.bf16.msra.mxu0 %v974
  %1272 = vmatprep.subr.bf16.mxu0 0
  %1273 = vmatpush1.bf16.msra.mxu0 %v975
  %1274 = vmatprep.subr.bf16.mxu0 0
  %1275 = vmatpush1.bf16.msra.mxu0 %v976
  %1276 = vmatprep.subr.bf16.mxu0 0
  %1277 = vmatpush1.bf16.msra.mxu0 %v977
  %1278 = vmatprep.subr.bf16.mxu0 0
  %1279 = vmatpush1.bf16.msra.mxu0 %v978
  %1280 = vmatprep.subr.bf16.mxu0 0
  %1281 = vmatpush1.bf16.msra.mxu0 %v979
  %1282 = vmatprep.subr.bf16.mxu0 0
  %1283 = vmatpush1.bf16.msra.mxu0 %v980
  %1284 = vmatprep.subr.bf16.mxu0 0
  %1285 = vmatpush1.bf16.msra.mxu0 %v981
  %1286 = vmatprep.mubr.bf16.mxu0 %v377
  %1287 = vmatmul.mubr.bf16.gmra.mrb[0].mxu0 %v376
  %v1288 = vpop.f32.mrb[0].mxu0
  %v1289 = vadd.f32 %v1241, %v1288
  %v1290 = vpop.f32.mrb[0].mxu0
  %v1291 = vpop.f32.mrb[0].mxu0
  %v1292 = vadd.f32 %v1244, %v1291
  %v1293 = vpop.f32.mrb[0].mxu0
  %1294 = vmatprep.mubr.bf16.mxu0 %v393
  %1295 = vmatmul.mubr.bf16.gmra.mrb[0].mxu0 %v392
  %v1296 = vpop.f32.mrb[0].mxu0
  %v1297 = vadd.f32 %v1249, %v1296
  %v1298 = vpop.f32.mrb[0].mxu0
  %v1299 = vpop.f32.mrb[0].mxu0
  %v1300 = vpop.f32.mrb[0].mxu0
  %1301 = vdwg.mxu0
  %1302 = vmatprep.subr.bf16.mxu0 0
  %1303 = vmatpush1.bf16.msra.mxu0 %v982
  %1304 = vmatprep.subr.bf16.mxu0 0
  %1305 = vmatpush1.bf16.msra.mxu0 %v983
  %1306 = vmatprep.subr.bf16.mxu0 0
  %1307 = vmatpush1.bf16.msra.mxu0 %v984
  %1308 = vmatprep.subr.bf16.mxu0 0
  %1309 = vmatpush1.bf16.msra.mxu0 %v985
  %1310 = vmatprep.subr.bf16.mxu0 0
  %1311 = vmatpush1.bf16.msra.mxu0 %v986
  %1312 = vmatprep.subr.bf16.mxu0 0
  %1313 = vmatpush1.bf16.msra.mxu0 %v987
  %1314 = vmatprep.subr.bf16.mxu0 0
  %1315 = vmatpush1.bf16.msra.mxu0 %v988
  %1316 = vmatprep.subr.bf16.mxu0 0
  %1317 = vmatpush1.bf16.msra.mxu0 %v989
  %1318 = vmatprep.subr.bf16.mxu0 0
  %1319 = vmatpush1.bf16.msra.mxu0 %v990
  %1320 = vmatprep.subr.bf16.mxu0 0
  %1321 = vmatpush1.bf16.msra.mxu0 %v991
  %1322 = vmatprep.subr.bf16.mxu0 0
  %1323 = vmatpush1.bf16.msra.mxu0 %v992
  %1324 = vmatprep.subr.bf16.mxu0 0
  %1325 = vmatpush1.bf16.msra.mxu0 %v993
  %1326 = vmatprep.subr.bf16.mxu0 0
  %1327 = vmatpush1.bf16.msra.mxu0 %v994
  %1328 = vmatprep.subr.bf16.mxu0 0
  %1329 = vmatpush1.bf16.msra.mxu0 %v995
  %1330 = vmatprep.subr.bf16.mxu0 0
  %1331 = vmatpush1.bf16.msra.mxu0 %v996
  %1332 = vmatprep.subr.bf16.mxu0 0
  %1333 = vmatpush1.bf16.msra.mxu0 %v997
  %1334 = vmatprep.mubr.bf16.mxu0 %v379
  %1335 = vmatmul.mubr.bf16.gmra.mrb[0].mxu0 %v378
  %v1336 = vpop.f32.mrb[0].mxu0
  %v1337 = vadd.f32 %v1289, %v1336
  %v1338 = vpop.f32.mrb[0].mxu0
  %v1339 = vpop.f32.mrb[0].mxu0
  %v1340 = vadd.f32 %v1292, %v1339
  %v1341 = vpop.f32.mrb[0].mxu0
  %1342 = vmatprep.mubr.bf16.mxu0 %v395
  %1343 = vmatmul.mubr.bf16.gmra.mrb[0].mxu0 %v394
  %v1344 = vpop.f32.mrb[0].mxu0
  %v1345 = vadd.f32 %v1297, %v1344
  %v1346 = vpop.f32.mrb[0].mxu0
  %v1347 = vpop.f32.mrb[0].mxu0
  %v1348 = vpop.f32.mrb[0].mxu0
  %1349 = vdwg.mxu0
  %1350 = vmatprep.subr.bf16.mxu0 0
  %1351 = vmatpush1.bf16.msra.mxu0 %v998
  %1352 = vmatprep.subr.bf16.mxu0 0
  %1353 = vmatpush1.bf16.msra.mxu0 %v999
  %1354 = vmatprep.subr.bf16.mxu0 0
  %1355 = vmatpush1.bf16.msra.mxu0 %v1000
  %1356 = vmatprep.subr.bf16.mxu0 0
  %1357 = vmatpush1.bf16.msra.mxu0 %v1001
  %1358 = vmatprep.subr.bf16.mxu0 0
  %1359 = vmatpush1.bf16.msra.mxu0 %v1002
  %1360 = vmatprep.subr.bf16.mxu0 0
  %1361 = vmatpush1.bf16.msra.mxu0 %v1003
  %1362 = vmatprep.subr.bf16.mxu0 0
  %1363 = vmatpush1.bf16.msra.mxu0 %v1004
  %1364 = vmatprep.subr.bf16.mxu0 0
  %1365 = vmatpush1.bf16.msra.mxu0 %v1005
  %1366 = vmatprep.subr.bf16.mxu0 0
  %1367 = vmatpush1.bf16.msra.mxu0 %v1006
  %1368 = vmatprep.subr.bf16.mxu0 0
  %1369 = vmatpush1.bf16.msra.mxu0 %v1007
  %1370 = vmatprep.subr.bf16.mxu0 0
  %1371 = vmatpush1.bf16.msra.mxu0 %v1008
  %1372 = vmatprep.subr.bf16.mxu0 0
  %1373 = vmatpush1.bf16.msra.mxu0 %v1009
  %1374 = vmatprep.subr.bf16.mxu0 0
  %1375 = vmatpush1.bf16.msra.mxu0 %v1010
  %1376 = vmatprep.subr.bf16.mxu0 0
  %1377 = vmatpush1.bf16.msra.mxu0 %v1011
  %1378 = vmatprep.subr.bf16.mxu0 0
  %1379 = vmatpush1.bf16.msra.mxu0 %v1012
  %1380 = vmatprep.subr.bf16.mxu0 0
  %1381 = vmatpush1.bf16.msra.mxu0 %v1013
  %1382 = vmatprep.mubr.bf16.mxu0 %v381
  %1383 = vmatmul.mubr.bf16.gmra.mrb[0].mxu0 %v380
  %v1384 = vpop.f32.mrb[0].mxu0
  %v1385 = vadd.f32 %v1337, %v1384
  %v1386 = vpop.f32.mrb[0].mxu0
  %v1387 = vpop.f32.mrb[0].mxu0
  %v1388 = vadd.f32 %v1340, %v1387
  %v1389 = vpop.f32.mrb[0].mxu0
  %1390 = vmatprep.mubr.bf16.mxu0 %v397
  %1391 = vmatmul.mubr.bf16.gmra.mrb[0].mxu0 %v396
  %v1392 = vpop.f32.mrb[0].mxu0
  %v1393 = vadd.f32 %v1345, %v1392
  %v1394 = vpop.f32.mrb[0].mxu0
  %v1395 = vpop.f32.mrb[0].mxu0
  %v1396 = vpop.f32.mrb[0].mxu0
  %1397 = vdwg.mxu0
  %1398 = vmatprep.subr.bf16.mxu0 0
  %1399 = vmatpush1.bf16.msra.mxu0 %v1014
  %1400 = vmatprep.subr.bf16.mxu0 0
  %1401 = vmatpush1.bf16.msra.mxu0 %v1015
  %1402 = vmatprep.subr.bf16.mxu0 0
  %1403 = vmatpush1.bf16.msra.mxu0 %v1016
  %1404 = vmatprep.subr.bf16.mxu0 0
  %1405 = vmatpush1.bf16.msra.mxu0 %v1017
  %1406 = vmatprep.subr.bf16.mxu0 0
  %1407 = vmatpush1.bf16.msra.mxu0 %v1018
  %1408 = vmatprep.subr.bf16.mxu0 0
  %1409 = vmatpush1.bf16.msra.mxu0 %v1019
  %1410 = vmatprep.subr.bf16.mxu0 0
  %1411 = vmatpush1.bf16.msra.mxu0 %v1020
  %1412 = vmatprep.subr.bf16.mxu0 0
  %1413 = vmatpush1.bf16.msra.mxu0 %v1021
  %1414 = vmatprep.subr.bf16.mxu0 0
  %1415 = vmatpush1.bf16.msra.mxu0 %v1022
  %1416 = vmatprep.subr.bf16.mxu0 0
  %1417 = vmatpush1.bf16.msra.mxu0 %v1023
  %1418 = vmatprep.subr.bf16.mxu0 0
  %1419 = vmatpush1.bf16.msra.mxu0 %v1024
  %1420 = vmatprep.subr.bf16.mxu0 0
  %1421 = vmatpush1.bf16.msra.mxu0 %v1025
  %1422 = vmatprep.subr.bf16.mxu0 0
  %1423 = vmatpush1.bf16.msra.mxu0 %v1026
  %1424 = vmatprep.subr.bf16.mxu0 0
  %1425 = vmatpush1.bf16.msra.mxu0 %v1027
  %1426 = vmatprep.subr.bf16.mxu0 0
  %1427 = vmatpush1.bf16.msra.mxu0 %v1028
  %1428 = vmatprep.subr.bf16.mxu0 0
  %1429 = vmatpush1.bf16.msra.mxu0 %v1029
  %1430 = vmatprep.mubr.bf16.mxu0 %v383
  %1431 = vmatmul.mubr.bf16.gmra.mrb[0].mxu0 %v382
  %v1432 = vpop.f32.mrb[0].mxu0
  %v1433 = vadd.f32 %v1385, %v1432
  %v1434 = vpop.f32.mrb[0].mxu0
  %v1435 = vpop.f32.mrb[0].mxu0
  %v1436 = vadd.f32 %v1388, %v1435
  %v1437 = vpop.f32.mrb[0].mxu0
  %1438 = vmatprep.mubr.bf16.mxu0 %v399
  %1439 = vmatmul.mubr.bf16.gmra.mrb[0].mxu0 %v398
  %v1440 = vpop.f32.mrb[0].mxu0
  %v1441 = vadd.f32 %v1393, %v1440
  %v1442 = vpop.f32.mrb[0].mxu0
  %v1443 = vpop.f32.mrb[0].mxu0
  %v1444 = vpop.f32.mrb[0].mxu0
  %1445 = vdwg.mxu0
  %1446 = vmatprep.subr.bf16.mxu0 0
  %1447 = vmatpush1.bf16.msra.mxu0 %v1030
  %1448 = vmatprep.subr.bf16.mxu0 0
  %1449 = vmatpush1.bf16.msra.mxu0 %v1031
  %1450 = vmatprep.subr.bf16.mxu0 0
  %1451 = vmatpush1.bf16.msra.mxu0 %v1032
  %1452 = vmatprep.subr.bf16.mxu0 0
  %1453 = vmatpush1.bf16.msra.mxu0 %v1033
  %1454 = vmatprep.subr.bf16.mxu0 0
  %1455 = vmatpush1.bf16.msra.mxu0 %v1034
  %1456 = vmatprep.subr.bf16.mxu0 0
  %1457 = vmatpush1.bf16.msra.mxu0 %v1035
  %1458 = vmatprep.subr.bf16.mxu0 0
  %1459 = vmatpush1.bf16.msra.mxu0 %v1036
  %1460 = vmatprep.subr.bf16.mxu0 0
  %1461 = vmatpush1.bf16.msra.mxu0 %v1037
  %1462 = vmatprep.subr.bf16.mxu0 0
  %1463 = vmatpush1.bf16.msra.mxu0 %v1038
  %1464 = vmatprep.subr.bf16.mxu0 0
  %1465 = vmatpush1.bf16.msra.mxu0 %v1039
  %1466 = vmatprep.subr.bf16.mxu0 0
  %1467 = vmatpush1.bf16.msra.mxu0 %v1040
  %1468 = vmatprep.subr.bf16.mxu0 0
  %1469 = vmatpush1.bf16.msra.mxu0 %v1041
  %1470 = vmatprep.subr.bf16.mxu0 0
  %1471 = vmatpush1.bf16.msra.mxu0 %v1042
  %1472 = vmatprep.subr.bf16.mxu0 0
  %1473 = vmatpush1.bf16.msra.mxu0 %v1043
  %1474 = vmatprep.subr.bf16.mxu0 0
  %1475 = vmatpush1.bf16.msra.mxu0 %v1044
  %1476 = vmatprep.subr.bf16.mxu0 0
  %1477 = vmatpush1.bf16.msra.mxu0 %v1045
  %1478 = vmatprep.mubr.bf16.mxu0 %v385
  %1479 = vmatmul.mubr.bf16.gmra.mrb[0].mxu0 %v384
  %v1480 = vpop.f32.mrb[0].mxu0
  %v1481 = vadd.f32 %v1433, %v1480
  %v1482 = vpop.f32.mrb[0].mxu0
  %v1483 = vpop.f32.mrb[0].mxu0
  %v1484 = vadd.f32 %v1436, %v1483
  %v1485 = vpop.f32.mrb[0].mxu0
  %1486 = vmatprep.mubr.bf16.mxu0 %v401
  %1487 = vmatmul.mubr.bf16.gmra.mrb[0].mxu0 %v400
  %v1488 = vpop.f32.mrb[0].mxu0
  %v1489 = vadd.f32 %v1441, %v1488
  %v1490 = vpop.f32.mrb[0].mxu0
  %v1491 = vpop.f32.mrb[0].mxu0
  %v1492 = vpop.f32.mrb[0].mxu0
  %1493 = vdwg.mxu0
  %1494 = vmatprep.subr.bf16.mxu0 0
  %1495 = vmatpush1.bf16.msra.mxu0 %v1046
  %1496 = vmatprep.subr.bf16.mxu0 0
  %1497 = vmatpush1.bf16.msra.mxu0 %v1047
  %1498 = vmatprep.subr.bf16.mxu0 0
  %1499 = vmatpush1.bf16.msra.mxu0 %v1048
  %1500 = vmatprep.subr.bf16.mxu0 0
  %1501 = vmatpush1.bf16.msra.mxu0 %v1049
  %1502 = vmatprep.subr.bf16.mxu0 0
  %1503 = vmatpush1.bf16.msra.mxu0 %v1050
  %1504 = vmatprep.subr.bf16.mxu0 0
  %1505 = vmatpush1.bf16.msra.mxu0 %v1051
  %1506 = vmatprep.subr.bf16.mxu0 0
  %1507 = vmatpush1.bf16.msra.mxu0 %v1052
  %1508 = vmatprep.subr.bf16.mxu0 0
  %1509 = vmatpush1.bf16.msra.mxu0 %v1053
  %1510 = vmatprep.subr.bf16.mxu0 0
  %1511 = vmatpush1.bf16.msra.mxu0 %v1054
  %1512 = vmatprep.subr.bf16.mxu0 0
  %1513 = vmatpush1.bf16.msra.mxu0 %v1055
  %1514 = vmatprep.subr.bf16.mxu0 0
  %1515 = vmatpush1.bf16.msra.mxu0 %v1056
  %1516 = vmatprep.subr.bf16.mxu0 0
  %1517 = vmatpush1.bf16.msra.mxu0 %v1057
  %1518 = vmatprep.subr.bf16.mxu0 0
  %1519 = vmatpush1.bf16.msra.mxu0 %v1058
  %1520 = vmatprep.subr.bf16.mxu0 0
  %1521 = vmatpush1.bf16.msra.mxu0 %v1059
  %1522 = vmatprep.subr.bf16.mxu0 0
  %1523 = vmatpush1.bf16.msra.mxu0 %v1060
  %1524 = vmatprep.subr.bf16.mxu0 0
  %1525 = vmatpush1.bf16.msra.mxu0 %v1061
  %1526 = vmatprep.mubr.bf16.mxu0 %v387
  %1527 = vmatmul.mubr.bf16.gmra.mrb[0].mxu0 %v386
  %v1528 = vpop.f32.mrb[0].mxu0
  %v1529 = vadd.f32 %v1481, %v1528
  %v1530 = vpop.f32.mrb[0].mxu0
  %v1531 = vpop.f32.mrb[0].mxu0
  %v1532 = vadd.f32 %v1484, %v1531
  %v1533 = vpop.f32.mrb[0].mxu0
  %1534 = vmatprep.mubr.bf16.mxu0 %v403
  %1535 = vmatmul.mubr.bf16.gmra.mrb[0].mxu0 %v402
  %v1536 = vpop.f32.mrb[0].mxu0
  %v1537 = vadd.f32 %v1489, %v1536
  %v1538 = vpop.f32.mrb[0].mxu0
  %v1539 = vpop.f32.mrb[0].mxu0
  %v1540 = vpop.f32.mrb[0].mxu0
  %1541 = vdwg.mxu0
  %1542 = vmatprep.subr.bf16.mxu0 0
  %1543 = vmatpush1.bf16.msra.mxu0 %v1062
  %1544 = vmatprep.subr.bf16.mxu0 0
  %1545 = vmatpush1.bf16.msra.mxu0 %v1063
  %1546 = vmatprep.subr.bf16.mxu0 0
  %1547 = vmatpush1.bf16.msra.mxu0 %v1064
  %1548 = vmatprep.subr.bf16.mxu0 0
  %1549 = vmatpush1.bf16.msra.mxu0 %v1065
  %1550 = vmatprep.subr.bf16.mxu0 0
  %1551 = vmatpush1.bf16.msra.mxu0 %v1066
  %1552 = vmatprep.subr.bf16.mxu0 0
  %1553 = vmatpush1.bf16.msra.mxu0 %v1067
  %1554 = vmatprep.subr.bf16.mxu0 0
  %1555 = vmatpush1.bf16.msra.mxu0 %v1068
  %1556 = vmatprep.subr.bf16.mxu0 0
  %1557 = vmatpush1.bf16.msra.mxu0 %v1069
  %1558 = vmatprep.subr.bf16.mxu0 0
  %1559 = vmatpush1.bf16.msra.mxu0 %v1070
  %1560 = vmatprep.subr.bf16.mxu0 0
  %1561 = vmatpush1.bf16.msra.mxu0 %v1071
  %1562 = vmatprep.subr.bf16.mxu0 0
  %1563 = vmatpush1.bf16.msra.mxu0 %v1072
  %1564 = vmatprep.subr.bf16.mxu0 0
  %1565 = vmatpush1.bf16.msra.mxu0 %v1073
  %1566 = vmatprep.subr.bf16.mxu0 0
  %1567 = vmatpush1.bf16.msra.mxu0 %v1074
  %1568 = vmatprep.subr.bf16.mxu0 0
  %1569 = vmatpush1.bf16.msra.mxu0 %v1075
  %1570 = vmatprep.subr.bf16.mxu0 0
  %1571 = vmatpush1.bf16.msra.mxu0 %v1076
  %1572 = vmatprep.subr.bf16.mxu0 0
  %1573 = vmatpush1.bf16.msra.mxu0 %v1077
  %1574 = vmatprep.mubr.bf16.mxu0 %v389
  %1575 = vmatmul.mubr.bf16.gmra.mrb[0].mxu0 %v388
  %v1576 = vpop.f32.mrb[0].mxu0
  %v1577 = vadd.f32 %v1529, %v1576
  %v1578 = vpop.f32.mrb[0].mxu0
  %v1579 = vpop.f32.mrb[0].mxu0
  %v1580 = vadd.f32 %v1532, %v1579
  %v1581 = vpop.f32.mrb[0].mxu0
  %1582 = vmatprep.mubr.bf16.mxu0 %v405
  %1583 = vmatmul.mubr.bf16.gmra.mrb[0].mxu0 %v404
  %v1584 = vpop.f32.mrb[0].mxu0
  %v1585 = vadd.f32 %v1537, %v1584
  %v1586 = vpop.f32.mrb[0].mxu0
  %v1587 = vpop.f32.mrb[0].mxu0
  %v1588 = vpop.f32.mrb[0].mxu0
  %1589 = vdwg.mxu0
  %v1590 = vxor.u32 %v1577, 2147483648
  %v1591 = vxor.u32 %v1580, 2147483648
  %v1592 = vxor.u32 %v1585, 2147483648
  %v1593 = vmul.f32 %v1590, 1.442695
  %v1594 = vpow.pop %v1593
  %v1595 = vmul.f32 %v1591, 1.442695
  %v1596 = vpow.pop %v1595
  %v1597 = vmul.f32 %v1592, 1.442695
  %v1598 = vpow.pop %v1597
  %v1599 = vadd.f32 %v1594, 1.0
  %v1600 = vadd.f32 %v1596, 1.0
  %v1601 = vadd.f32 %v1598, 1.0
  %v1602 = vrcp.pop %v1599
  %v1603 = vmul.f32 1.0, %v1602
  %v1604 = vrcp.pop %v1600
  %v1605 = vmul.f32 1.0, %v1604
  %v1606 = vrcp.pop %v1601
  %v1607 = vmul.f32 1.0, %v1606
  %1608 = vst [vmem:[%s3] sm:$0xff] %v1603
  %1609 = vst [vmem:[%s3 + $0x8] sm:$0xff] %v1605
  %1610 = vst [vmem:[%s3 + $0x10] sm:$0xff] %v1607
  // Predicated region
  $region14: #{discriminator_forward.7} parent=0 // pred_check
    _
  $region15: #{discriminator_forward.7} parent=0 // pred_check_branch
    %1612 = sbr.rel (0) target = $region17
  $region16: #{discriminator_forward.7} parent=0 // pred_region
    _
  $region17: #{discriminator_forward.7} parent=0 // pred_fallthru
    _
  // Predicated region
  $region18: #{discriminator_forward.7} parent=0 // pred_check
    _
  $region19: #{discriminator_forward.7} parent=0 // pred_check_branch
    %1614 = sbr.rel (0) target = $region21
  $region20: #{discriminator_forward.7} parent=0 // pred_region
    _
  $region21: #{discriminator_forward.7} parent=0 // pred_fallthru
    _

</llo_original>
